<compile_context>
chip_gen: v5e
topology: v5e:2x2
jax: 0.10.0
libtpu: 0.0.40
codegen_flags: <defaults>
</compile_context>

<pallas_src>
import math
import functools

import jax
import jax.numpy as jnp
from jax.experimental import pallas as pl
from jax.experimental.pallas import tpu as pltpu

# ----------------------------- model config ---------------------------------
N_LAYERS = 2
D_MODEL = 32
NUM_HEADS = 4
D_FF = 64
EPS = 1e-5

BATCH = 2
DEC_LEN = 8
ENC_LEN = 16

LANE = 128


# --------------------------- fused decoder kernel ---------------------------
def _decoder_kernel(
    x_ref, enc_ref,
    wqkv_s_ref, bqkv_s_ref, wo_s_ref, bo_s_ref,
    wq_c_ref, bq_c_ref, wkv_c_ref, bkv_c_ref, wo_c_ref, bo_c_ref,
    w1_ref, b1_ref, w2_ref, b2_ref,
    ln1_g_ref, ln1_b_ref, ln2_g_ref, ln2_b_ref, ln3_g_ref, ln3_b_ref,
    out_ref,
    xs_ref,
    *, batch, num_heads, eps):
    """One DecoderLayer per grid step; activation carried in VMEM scratch."""
    layer = pl.program_id(0)
    n_layers = pl.num_programs(0)

    B = batch
    Sq = x_ref.shape[1]
    Skv = enc_ref.shape[1]
    D = x_ref.shape[2]
    H = num_heads
    dk = D // H

    # Layer 0: seed the persistent activation scratch from the HBM input.
    @pl.when(layer == 0)
    def _():
        xs_ref[...] = x_ref[...].reshape(B * Sq, D).astype(jnp.float32)

    x = xs_ref[...]                                             # [B*Sq, D] f32
    enc = enc_ref[...].reshape(B * Skv, D).astype(jnp.float32)  # [B*Skv, D]

    # Current layer's weights (block (1, r, c) -> [r, c]).
    wqkv_s, bqkv_s = wqkv_s_ref[0], bqkv_s_ref[0]
    wo_s, bo_s = wo_s_ref[0], bo_s_ref[0]
    wq_c, bq_c = wq_c_ref[0], bq_c_ref[0]
    wkv_c, bkv_c = wkv_c_ref[0], bkv_c_ref[0]
    wo_c, bo_c = wo_c_ref[0], bo_c_ref[0]
    w1, b1 = w1_ref[0], b1_ref[0]
    w2, b2 = w2_ref[0], b2_ref[0]

    def layer_norm(y, g, b):
        mean = jnp.mean(y, axis=-1, keepdims=True)
        c = y - mean
        var = jnp.mean(c * c, axis=-1, keepdims=True)
        return c * jax.lax.rsqrt(var + eps) * g + b

    def mha(q_f, k_f, v_f, Sq_, Skv_, wo, bo):
        # q_f: [B*Sq_, D], k_f / v_f: [B*Skv_, D].
        # Head-batched attention; small static batch loop so batches never mix.
        # 1/sqrt(dk) is already folded into the Q projection.
        q3 = q_f.reshape(B, Sq_, D)
        k3 = k_f.reshape(B, Skv_, D)
        v3 = v_f.reshape(B, Skv_, D)
        outs = []
        for b_i in range(B):
            qh = q3[b_i].reshape(Sq_, H, dk).transpose(1, 0, 2)   # [H, Sq, dk]
            kh = k3[b_i].reshape(Skv_, H, dk).transpose(1, 0, 2)  # [H, Skv, dk]
            vh = v3[b_i].reshape(Skv_, H, dk).transpose(1, 0, 2)  # [H, Skv, dk]
            s = jnp.einsum('hqd,hkd->hqk', qh, kh,
                           preferred_element_type=jnp.float32)    # [H, Sq, Skv]
            m = jnp.max(s, axis=-1, keepdims=True)
            p = jnp.exp(s - m)
            p = p / jnp.sum(p, axis=-1, keepdims=True)             # exact softmax
            o = jnp.einsum('hqk,hkd->hqd', p, vh,
                           preferred_element_type=jnp.float32)     # [H, Sq, dk]
            outs.append(o.transpose(1, 0, 2).reshape(Sq_, D))      # [Sq, D]
        o_all = jnp.concatenate(outs, axis=0)                      # [B*Sq_, D]
        return jnp.dot(o_all, wo, preferred_element_type=jnp.float32) + bo

    # ------------------ self attention + residual + LN ------------------
    qkv = jnp.dot(x, wqkv_s, preferred_element_type=jnp.float32) + bqkv_s
    a = mha(qkv[:, :D], qkv[:, D:2 * D], qkv[:, 2 * D:3 * D], Sq, Sq, wo_s, bo_s)
    x = layer_norm(x + a, ln1_g_ref[0], ln1_b_ref[0])

    # ------------------ cross attention + residual + LN -----------------
    q = jnp.dot(x, wq_c, preferred_element_type=jnp.float32) + bq_c
    kv = jnp.dot(enc, wkv_c, preferred_element_type=jnp.float32) + bkv_c
    a = mha(q, kv[:, :D], kv[:, D:2 * D], Sq, Skv, wo_c, bo_c)
    x = layer_norm(x + a, ln2_g_ref[0], ln2_b_ref[0])

    # ------------------ feed forward + residual + LN --------------------
    h1 = jnp.maximum(jnp.dot(x, w1, preferred_element_type=jnp.float32) + b1, 0.0)
    # TODO(synk): nn.Dropout(p=0.1) after ReLU is identity in eval mode; omitted.
    f = jnp.dot(h1, w2, preferred_element_type=jnp.float32) + b2
    x = layer_norm(x + f, ln3_g_ref[0], ln3_b_ref[0])

    # Carry the activation to the next layer; write HBM only once at the end.
    xs_ref[...] = x

    @pl.when(layer == n_layers - 1)
    def _():
        out_ref[...] = x.reshape(B, Sq, D).astype(out_ref.dtype)


def decoder_forward(x, enc, stacked_params, *, num_heads=NUM_HEADS, eps=EPS):
    B, Sq, D = x.shape
    Skv = enc.shape[1]
    n_layers = stacked_params[0].shape[0]

    # Per-layer weight blocks streamed along the layer grid axis.
    w_specs = [pl.BlockSpec((1,) + tuple(w.shape[1:]), lambda l: (l, 0, 0))
               for w in stacked_params]

    return pl.pallas_call(
        functools.partial(_decoder_kernel, batch=B, num_heads=num_heads, eps=eps),
        out_shape=jax.ShapeDtypeStruct((B, Sq, D), x.dtype),
        grid=(n_layers,),
        in_specs=[pl.BlockSpec((B, Sq, D), lambda l: (0, 0, 0)),
                  pl.BlockSpec((B, Skv, D), lambda l: (0, 0, 0))] + w_specs,
        out_specs=pl.BlockSpec((B, Sq, D), lambda l: (0, 0, 0)),
        scratch_shapes=[pltpu.VMEM((B * Sq, D), jnp.float32)],
        compiler_params=pltpu.CompilerParams(
            dimension_semantics=("arbitrary",)),
    )(x, enc, *stacked_params)


decoder_jit = jax.jit(decoder_forward)


# ------------------------------ parameter init ------------------------------
def init_linear(key, out_f, in_f):
    k1, k2 = jax.random.split(key)
    bound = 1.0 / math.sqrt(in_f)
    w = jax.random.uniform(k1, (out_f, in_f), jnp.float32, -bound, bound)
    b = jax.random.uniform(k2, (out_f,), jnp.float32, -bound, bound)
    return w, b


def init_mha(key, d_model):
    ks = jax.random.split(key, 4)
    wq, bq = init_linear(ks[0], d_model, d_model)
    wk, bk = init_linear(ks[1], d_model, d_model)
    wv, bv = init_linear(ks[2], d_model, d_model)
    wo, bo = init_linear(ks[3], d_model, d_model)
    return dict(wq=wq, bq=bq, wk=wk, bk=bk, wv=wv, bv=bv, wo=wo, bo=bo)


def init_layer(key, d_model, d_ff):
    ks = jax.random.split(key, 4)
    self_attn = init_mha(ks[0], d_model)
    cross_attn = init_mha(ks[1], d_model)
    w1, b1 = init_linear(ks[2], d_ff, d_model)
    w2, b2 = init_linear(ks[3], d_model, d_ff)
    return dict(
        self_attn=self_attn, cross_attn=cross_attn,
        ffn_w1=w1, ffn_b1=b1, ffn_w2=w2, ffn_b2=b2,
        ln1_g=jnp.ones((d_model,), jnp.float32), ln1_b=jnp.zeros((d_model,), jnp.float32),
        ln2_g=jnp.ones((d_model,), jnp.float32), ln2_b=jnp.zeros((d_model,), jnp.float32),
        ln3_g=jnp.ones((d_model,), jnp.float32), ln3_b=jnp.zeros((d_model,), jnp.float32),
    )


# ------------------------ parameter prep (one-time) --------------------------
def _round_up(n, m=LANE):
    return ((n + m - 1) // m) * m


def _pad_cols(a, n):
    return a if a.shape[1] == n else jnp.pad(a, ((0, 0), (0, n - a.shape[1])))


def _pad_rows(a, n):
    return a if a.shape[0] == n else jnp.pad(a, ((0, n - a.shape[0]), (0, 0)))


def prep_layer_params(p, num_heads):
    """Convert torch-layout params into kernel layout: transpose to [in,out],
    fuse QKV / KV, fold 1/sqrt(dk) into Q, zero-pad fused widths to lane
    multiples (extra MACs are free; results are sliced back in-kernel)."""
    d_model = p["self_attn"]["wq"].shape[0]
    d_ff = p["ffn_w1"].shape[0]
    scale = 1.0 / math.sqrt(d_model // num_heads)
    t = jnp.transpose

    c3 = _round_up(3 * d_model)
    c2 = _round_up(2 * d_model)
    cf = _round_up(d_ff)

    sa = p["self_attn"]
    wqkv_s = _pad_cols(jnp.concatenate(
        [t(sa["wq"]) * scale, t(sa["wk"]), t(sa["wv"])], axis=1), c3)
    bqkv_s = _pad_cols(jnp.concatenate(
        [sa["bq"] * scale, sa["bk"], sa["bv"]]).reshape(1, -1), c3)
    wo_s, bo_s = t(sa["wo"]), sa["bo"].reshape(1, d_model)

    ca = p["cross_attn"]
    wq_c, bq_c = t(ca["wq"]) * scale, (ca["bq"] * scale).reshape(1, d_model)
    wkv_c = _pad_cols(jnp.concatenate([t(ca["wk"]), t(ca["wv"])], axis=1), c2)
    bkv_c = _pad_cols(jnp.concatenate([ca["bk"], ca["bv"]]).reshape(1, -1), c2)
    wo_c, bo_c = t(ca["wo"]), ca["bo"].reshape(1, d_model)

    w1 = _pad_cols(t(p["ffn_w1"]), cf)
    b1 = _pad_cols(p["ffn_b1"].reshape(1, -1), cf)
    w2 = _pad_rows(t(p["ffn_w2"]), cf)
    b2 = p["ffn_b2"].reshape(1, -1)

    r = lambda v: v.reshape(1, d_model)
    return (wqkv_s, bqkv_s, wo_s, bo_s,
            wq_c, bq_c, wkv_c, bkv_c, wo_c, bo_c,
            w1, b1, w2, b2,
            r(p["ln1_g"]), r(p["ln1_b"]),
            r(p["ln2_g"]), r(p["ln2_b"]),
            r(p["ln3_g"]), r(p["ln3_b"]))


def stack_layer_params(kparams_list):
    """Stack each prepped per-layer array along a new leading [N_LAYERS] axis."""
    n_fields = len(kparams_list[0])
    return tuple(jnp.stack([kp[i] for kp in kparams_list], axis=0)
                 for i in range(n_fields))


# ------------------------------ pure-JAX reference ---------------------------
def _ref_linear(x, w, b):
    return x @ w.T + b


def _ref_mha(xq, xkv, p, num_heads):
    B, Sq, D = xq.shape
    Skv = xkv.shape[1]
    dk = D // num_heads
    q = _ref_linear(xq, p["wq"], p["bq"]).reshape(B, Sq, num_heads, dk).transpose(0, 2, 1, 3)
    k = _ref_linear(xkv, p["wk"], p["bk"]).reshape(B, Skv, num_heads, dk).transpose(0, 2, 1, 3)
    v = _ref_linear(xkv, p["wv"], p["bv"]).reshape(B, Skv, num_heads, dk).transpose(0, 2, 1, 3)
    s = jnp.einsum("bhqd,bhkd->bhqk", q, k) / math.sqrt(dk)
    a = jax.nn.softmax(s, axis=-1)
    o = jnp.einsum("bhqk,bhkd->bhqd", a, v).transpose(0, 2, 1, 3).reshape(B, Sq, D)
    return _ref_linear(o, p["wo"], p["bo"])


def _ref_ln(y, g, b, eps=EPS):
    m = y.mean(-1, keepdims=True)
    v = ((y - m) ** 2).mean(-1, keepdims=True)
    return (y - m) / jnp.sqrt(v + eps) * g + b


def _ref_decoder(x, enc, params):
    for p in params:
        x = _ref_ln(x + _ref_mha(x, x, p["self_attn"], NUM_HEADS), p["ln1_g"], p["ln1_b"])
        x = _ref_ln(x + _ref_mha(x, enc, p["cross_attn"], NUM_HEADS), p["ln2_g"], p["ln2_b"])
        h = jnp.maximum(_ref_linear(x, p["ffn_w1"], p["ffn_b1"]), 0.0)
        x = _ref_ln(x + _ref_linear(h, p["ffn_w2"], p["ffn_b2"]), p["ln3_g"], p["ln3_b"])
    return x


# ----------------------------------- main ------------------------------------
if __name__ == "__main__":
    key = jax.random.PRNGKey(0)
    k_x, k_enc, k_params = jax.random.split(key, 3)

    x = jax.random.normal(k_x, (BATCH, DEC_LEN, D_MODEL), jnp.float32)
    encoder_output = jax.random.normal(k_enc, (BATCH, ENC_LEN, D_MODEL), jnp.float32)

    layer_keys = jax.random.split(k_params, N_LAYERS)
    params = [init_layer(layer_keys[i], D_MODEL, D_FF) for i in range(N_LAYERS)]
    stacked = stack_layer_params([prep_layer_params(p, NUM_HEADS) for p in params])

    out = decoder_jit(x, encoder_output, stacked)
    out = jax.block_until_ready(out)

    ref = _ref_decoder(x, encoder_output, params)
    assert out.shape == (BATCH, DEC_LEN, D_MODEL)
    assert jnp.allclose(out, ref, atol=2e-3, rtol=2e-3), "mismatch vs pure-JAX reference"

    print("KERNEL_OK")
</pallas_src>

<mosaic_0001>
module attributes {stable_mosaic.version = 11 : i64} {
  func.func @_decoder_kernel(%arg0: i32, %arg1: memref<2x8x32xf32, #tpu.memory_space<vmem>>, %arg2: memref<2x16x32xf32, #tpu.memory_space<vmem>>, %arg3: memref<1x32x128xf32, #tpu.memory_space<vmem>>, %arg4: memref<1x1x128xf32, #tpu.memory_space<vmem>>, %arg5: memref<1x32x32xf32, #tpu.memory_space<vmem>>, %arg6: memref<1x1x32xf32, #tpu.memory_space<vmem>>, %arg7: memref<1x32x32xf32, #tpu.memory_space<vmem>>, %arg8: memref<1x1x32xf32, #tpu.memory_space<vmem>>, %arg9: memref<1x32x128xf32, #tpu.memory_space<vmem>>, %arg10: memref<1x1x128xf32, #tpu.memory_space<vmem>>, %arg11: memref<1x32x32xf32, #tpu.memory_space<vmem>>, %arg12: memref<1x1x32xf32, #tpu.memory_space<vmem>>, %arg13: memref<1x32x128xf32, #tpu.memory_space<vmem>>, %arg14: memref<1x1x128xf32, #tpu.memory_space<vmem>>, %arg15: memref<1x128x32xf32, #tpu.memory_space<vmem>>, %arg16: memref<1x1x32xf32, #tpu.memory_space<vmem>>, %arg17: memref<1x1x32xf32, #tpu.memory_space<vmem>>, %arg18: memref<1x1x32xf32, #tpu.memory_space<vmem>>, %arg19: memref<1x1x32xf32, #tpu.memory_space<vmem>>, %arg20: memref<1x1x32xf32, #tpu.memory_space<vmem>>, %arg21: memref<1x1x32xf32, #tpu.memory_space<vmem>>, %arg22: memref<1x1x32xf32, #tpu.memory_space<vmem>>, %arg23: memref<2x8x32xf32, #tpu.memory_space<vmem>>, %arg24: memref<16x32xf32, #tpu.memory_space<vmem>>) attributes {dimension_semantics = [#tpu.dimension_semantics<arbitrary>], iteration_bounds = array<i64: 2>, scalar_prefetch = 0 : i64, scratch_operands = 1 : i64, tpu.core_type = #tpu.core_type<tc>, window_params = [{pipeline_mode = #tpu.pipeline_mode<synchronous>, transform_indices = @transform_0, window_bounds = array<i64: 2, 8, 32>}, {pipeline_mode = #tpu.pipeline_mode<synchronous>, transform_indices = @transform_1, window_bounds = array<i64: 2, 16, 32>}, {transform_indices = @transform_2, window_bounds = array<i64: 1, 32, 128>}, {transform_indices = @transform_3, window_bounds = array<i64: 1, 1, 128>}, {transform_indices = @transform_4, window_bounds = array<i64: 1, 32, 32>}, {transform_indices = @transform_5, window_bounds = array<i64: 1, 1, 32>}, {transform_indices = @transform_6, window_bounds = array<i64: 1, 32, 32>}, {transform_indices = @transform_7, window_bounds = array<i64: 1, 1, 32>}, {transform_indices = @transform_8, window_bounds = array<i64: 1, 32, 128>}, {transform_indices = @transform_9, window_bounds = array<i64: 1, 1, 128>}, {transform_indices = @transform_10, window_bounds = array<i64: 1, 32, 32>}, {transform_indices = @transform_11, window_bounds = array<i64: 1, 1, 32>}, {transform_indices = @transform_12, window_bounds = array<i64: 1, 32, 128>}, {transform_indices = @transform_13, window_bounds = array<i64: 1, 1, 128>}, {transform_indices = @transform_14, window_bounds = array<i64: 1, 128, 32>}, {transform_indices = @transform_15, window_bounds = array<i64: 1, 1, 32>}, {transform_indices = @transform_16, window_bounds = array<i64: 1, 1, 32>}, {transform_indices = @transform_17, window_bounds = array<i64: 1, 1, 32>}, {transform_indices = @transform_18, window_bounds = array<i64: 1, 1, 32>}, {transform_indices = @transform_19, window_bounds = array<i64: 1, 1, 32>}, {transform_indices = @transform_20, window_bounds = array<i64: 1, 1, 32>}, {transform_indices = @transform_21, window_bounds = array<i64: 1, 1, 32>}, {pipeline_mode = #tpu.pipeline_mode<synchronous>, transform_indices = @transform_22, window_bounds = array<i64: 2, 8, 32>}]} {
    %c0_i32 = arith.constant 0 : i32
    %0 = arith.cmpi eq, %arg0, %c0_i32 : i32
    %1 = arith.extui %0 : i1 to i32
    %c0_i32_0 = arith.constant 0 : i32
    %2 = arith.cmpi ne, %1, %c0_i32_0 : i32
    scf.if %2 {
      %c0_106 = arith.constant 0 : index
      %c0_107 = arith.constant 0 : index
      %c0_108 = arith.constant 0 : index
      %249 = vector.load %arg1[%c0_106, %c0_107, %c0_108] : memref<2x8x32xf32, #tpu.memory_space<vmem>>, vector<2x8x32xf32>
      %250 = vector.shape_cast %249 : vector<2x8x32xf32> to vector<16x32xf32>
      %c0_109 = arith.constant 0 : index
      %c0_110 = arith.constant 0 : index
      %251 = vector.load %arg24[%c0_109, %c0_110] : memref<16x32xf32, #tpu.memory_space<vmem>>, vector<16x32xf32>
      tpu.vector_store %arg24[%c0_109, %c0_110], %250 {strides = array<i32>} : memref<16x32xf32, #tpu.memory_space<vmem>>, vector<16x32xf32>,
    } else {
    }
    %c0 = arith.constant 0 : index
    %c0_1 = arith.constant 0 : index
    %3 = vector.load %arg24[%c0, %c0_1] : memref<16x32xf32, #tpu.memory_space<vmem>>, vector<16x32xf32>
    %c0_2 = arith.constant 0 : index
    %c0_3 = arith.constant 0 : index
    %c0_4 = arith.constant 0 : index
    %4 = vector.load %arg2[%c0_2, %c0_3, %c0_4] : memref<2x16x32xf32, #tpu.memory_space<vmem>>, vector<2x16x32xf32>
    %5 = vector.shape_cast %4 : vector<2x16x32xf32> to vector<32x32xf32>
    %c0_5 = arith.constant 0 : index
    %c0_6 = arith.constant 0 : index
    %c0_7 = arith.constant 0 : index
    %6 = vector.load %arg3[%c0_5, %c0_6, %c0_7] : memref<1x32x128xf32, #tpu.memory_space<vmem>>, vector<1x32x128xf32>
    %7 = vector.shape_cast %6 : vector<1x32x128xf32> to vector<32x128xf32>
    %c0_8 = arith.constant 0 : index
    %c0_9 = arith.constant 0 : index
    %c0_10 = arith.constant 0 : index
    %8 = vector.load %arg4[%c0_8, %c0_9, %c0_10] : memref<1x1x128xf32, #tpu.memory_space<vmem>>, vector<1x1x128xf32>
    %9 = vector.shape_cast %8 : vector<1x1x128xf32> to vector<1x128xf32>
    %c0_11 = arith.constant 0 : index
    %c0_12 = arith.constant 0 : index
    %c0_13 = arith.constant 0 : index
    %10 = vector.load %arg5[%c0_11, %c0_12, %c0_13] : memref<1x32x32xf32, #tpu.memory_space<vmem>>, vector<1x32x32xf32>
    %11 = vector.shape_cast %10 : vector<1x32x32xf32> to vector<32x32xf32>
    %c0_14 = arith.constant 0 : index
    %c0_15 = arith.constant 0 : index
    %c0_16 = arith.constant 0 : index
    %12 = vector.load %arg6[%c0_14, %c0_15, %c0_16] : memref<1x1x32xf32, #tpu.memory_space<vmem>>, vector<1x1x32xf32>
    %13 = vector.shape_cast %12 : vector<1x1x32xf32> to vector<1x32xf32>
    %c0_17 = arith.constant 0 : index
    %c0_18 = arith.constant 0 : index
    %c0_19 = arith.constant 0 : index
    %14 = vector.load %arg7[%c0_17, %c0_18, %c0_19] : memref<1x32x32xf32, #tpu.memory_space<vmem>>, vector<1x32x32xf32>
    %15 = vector.shape_cast %14 : vector<1x32x32xf32> to vector<32x32xf32>
    %c0_20 = arith.constant 0 : index
    %c0_21 = arith.constant 0 : index
    %c0_22 = arith.constant 0 : index
    %16 = vector.load %arg8[%c0_20, %c0_21, %c0_22] : memref<1x1x32xf32, #tpu.memory_space<vmem>>, vector<1x1x32xf32>
    %17 = vector.shape_cast %16 : vector<1x1x32xf32> to vector<1x32xf32>
    %c0_23 = arith.constant 0 : index
    %c0_24 = arith.constant 0 : index
    %c0_25 = arith.constant 0 : index
    %18 = vector.load %arg9[%c0_23, %c0_24, %c0_25] : memref<1x32x128xf32, #tpu.memory_space<vmem>>, vector<1x32x128xf32>
    %19 = vector.shape_cast %18 : vector<1x32x128xf32> to vector<32x128xf32>
    %c0_26 = arith.constant 0 : index
    %c0_27 = arith.constant 0 : index
    %c0_28 = arith.constant 0 : index
    %20 = vector.load %arg10[%c0_26, %c0_27, %c0_28] : memref<1x1x128xf32, #tpu.memory_space<vmem>>, vector<1x1x128xf32>
    %21 = vector.shape_cast %20 : vector<1x1x128xf32> to vector<1x128xf32>
    %c0_29 = arith.constant 0 : index
    %c0_30 = arith.constant 0 : index
    %c0_31 = arith.constant 0 : index
    %22 = vector.load %arg11[%c0_29, %c0_30, %c0_31] : memref<1x32x32xf32, #tpu.memory_space<vmem>>, vector<1x32x32xf32>
    %23 = vector.shape_cast %22 : vector<1x32x32xf32> to vector<32x32xf32>
    %c0_32 = arith.constant 0 : index
    %c0_33 = arith.constant 0 : index
    %c0_34 = arith.constant 0 : index
    %24 = vector.load %arg12[%c0_32, %c0_33, %c0_34] : memref<1x1x32xf32, #tpu.memory_space<vmem>>, vector<1x1x32xf32>
    %25 = vector.shape_cast %24 : vector<1x1x32xf32> to vector<1x32xf32>
    %c0_35 = arith.constant 0 : index
    %c0_36 = arith.constant 0 : index
    %c0_37 = arith.constant 0 : index
    %26 = vector.load %arg13[%c0_35, %c0_36, %c0_37] : memref<1x32x128xf32, #tpu.memory_space<vmem>>, vector<1x32x128xf32>
    %27 = vector.shape_cast %26 : vector<1x32x128xf32> to vector<32x128xf32>
    %c0_38 = arith.constant 0 : index
    %c0_39 = arith.constant 0 : index
    %c0_40 = arith.constant 0 : index
    %28 = vector.load %arg14[%c0_38, %c0_39, %c0_40] : memref<1x1x128xf32, #tpu.memory_space<vmem>>, vector<1x1x128xf32>
    %29 = vector.shape_cast %28 : vector<1x1x128xf32> to vector<1x128xf32>
    %c0_41 = arith.constant 0 : index
    %c0_42 = arith.constant 0 : index
    %c0_43 = arith.constant 0 : index
    %30 = vector.load %arg15[%c0_41, %c0_42, %c0_43] : memref<1x128x32xf32, #tpu.memory_space<vmem>>, vector<1x128x32xf32>
    %31 = vector.shape_cast %30 : vector<1x128x32xf32> to vector<128x32xf32>
    %c0_44 = arith.constant 0 : index
    %c0_45 = arith.constant 0 : index
    %c0_46 = arith.constant 0 : index
    %32 = vector.load %arg16[%c0_44, %c0_45, %c0_46] : memref<1x1x32xf32, #tpu.memory_space<vmem>>, vector<1x1x32xf32>
    %33 = vector.shape_cast %32 : vector<1x1x32xf32> to vector<1x32xf32>
    %cst = arith.constant dense<0.000000e+00> : vector<16x128xf32>
    %34 = tpu.matmul %3, %7, %cst {dimension_numbers = #tpu.dot_dimension_numbers<[1], [0], [0], [1], [0, 0, 1, 1], [], []>} : vector<16x32xf32>, vector<32x128xf32>, vector<16x128xf32> -> vector<16x128xf32>
    %35 = vector.broadcast %9 : vector<1x128xf32> to vector<16x128xf32>
    %36 = arith.addf %34, %35 : vector<16x128xf32>
    %37 = vector.extract_strided_slice %36 {offsets = [0, 0], sizes = [16, 32], strides = [1, 1]} : vector<16x128xf32> to vector<16x32xf32>
    %38 = vector.extract_strided_slice %36 {offsets = [0, 32], sizes = [16, 32], strides = [1, 1]} : vector<16x128xf32> to vector<16x32xf32>
    %39 = vector.extract_strided_slice %36 {offsets = [0, 64], sizes = [16, 32], strides = [1, 1]} : vector<16x128xf32> to vector<16x32xf32>
    %40 = vector.shape_cast %37 : vector<16x32xf32> to vector<2x8x32xf32>
    %41 = vector.shape_cast %38 : vector<16x32xf32> to vector<2x8x32xf32>
    %42 = vector.shape_cast %39 : vector<16x32xf32> to vector<2x8x32xf32>
    %43 = vector.extract_strided_slice %40 {offsets = [0, 0, 0], sizes = [1, 8, 32], strides = [1, 1, 1]} : vector<2x8x32xf32> to vector<1x8x32xf32>
    %44 = vector.shape_cast %43 : vector<1x8x32xf32> to vector<8x32xf32>
    %45 = vector.shape_cast %44 : vector<8x32xf32> to vector<8x4x8xf32>
    %46 = tpu.transpose %45, [1, 0, 2] : vector<8x4x8xf32> -> vector<4x8x8xf32>
    %47 = vector.extract_strided_slice %41 {offsets = [0, 0, 0], sizes = [1, 8, 32], strides = [1, 1, 1]} : vector<2x8x32xf32> to vector<1x8x32xf32>
    %48 = vector.shape_cast %47 : vector<1x8x32xf32> to vector<8x32xf32>
    %49 = vector.shape_cast %48 : vector<8x32xf32> to vector<8x4x8xf32>
    %50 = tpu.transpose %49, [1, 0, 2] : vector<8x4x8xf32> -> vector<4x8x8xf32>
    %51 = vector.extract_strided_slice %42 {offsets = [0, 0, 0], sizes = [1, 8, 32], strides = [1, 1, 1]} : vector<2x8x32xf32> to vector<1x8x32xf32>
    %52 = vector.shape_cast %51 : vector<1x8x32xf32> to vector<8x32xf32>
    %53 = vector.shape_cast %52 : vector<8x32xf32> to vector<8x4x8xf32>
    %54 = tpu.transpose %53, [1, 0, 2] : vector<8x4x8xf32> -> vector<4x8x8xf32>
    "tpu.trace_start"() <{level = 10 : i32, message = "hqd,hkd->hqk"}> : () -> ()
    %cst_47 = arith.constant dense<0.000000e+00> : vector<4x8x8xf32>
    %55 = tpu.matmul %46, %50, %cst_47 {dimension_numbers = #tpu.dot_dimension_numbers<[2], [2], [1], [1], [0, 0, 0, 1, 1, 1], [0], [0]>} : vector<4x8x8xf32>, vector<4x8x8xf32>, vector<4x8x8xf32> -> vector<4x8x8xf32>
    "tpu.trace_stop"() : () -> ()
    %cst_48 = arith.constant dense<0xFF800000> : vector<4x8xf32>
    %56 = vector.multi_reduction <maximumf>, %55, %cst_48 [2] : vector<4x8x8xf32> to vector<4x8xf32>
    %57 = vector.shape_cast %56 : vector<4x8xf32> to vector<4x8x1xf32>
    %58 = vector.broadcast %57 : vector<4x8x1xf32> to vector<4x8x8xf32>
    %59 = arith.subf %55, %58 : vector<4x8x8xf32>
    %60 = math.exp %59 : vector<4x8x8xf32>
    %cst_49 = arith.constant dense<0.000000e+00> : vector<4x8xf32>
    %61 = vector.multi_reduction <add>, %60, %cst_49 [2] : vector<4x8x8xf32> to vector<4x8xf32>
    %62 = vector.shape_cast %61 : vector<4x8xf32> to vector<4x8x1xf32>
    %63 = vector.broadcast %62 : vector<4x8x1xf32> to vector<4x8x8xf32>
    %64 = arith.divf %60, %63 : vector<4x8x8xf32>
    "tpu.trace_start"() <{level = 10 : i32, message = "hqk,hkd->hqd"}> : () -> ()
    %cst_50 = arith.constant dense<0.000000e+00> : vector<4x8x8xf32>
    %65 = tpu.matmul %64, %54, %cst_50 {dimension_numbers = #tpu.dot_dimension_numbers<[2], [1], [1], [2], [0, 0, 0, 1, 1, 2], [0], [0]>} : vector<4x8x8xf32>, vector<4x8x8xf32>, vector<4x8x8xf32> -> vector<4x8x8xf32>
    "tpu.trace_stop"() : () -> ()
    %66 = tpu.transpose %65, [1, 0, 2] : vector<4x8x8xf32> -> vector<8x4x8xf32>
    %67 = vector.shape_cast %66 : vector<8x4x8xf32> to vector<8x32xf32>
    %68 = vector.extract_strided_slice %40 {offsets = [1, 0, 0], sizes = [1, 8, 32], strides = [1, 1, 1]} : vector<2x8x32xf32> to vector<1x8x32xf32>
    %69 = vector.shape_cast %68 : vector<1x8x32xf32> to vector<8x32xf32>
    %70 = vector.shape_cast %69 : vector<8x32xf32> to vector<8x4x8xf32>
    %71 = tpu.transpose %70, [1, 0, 2] : vector<8x4x8xf32> -> vector<4x8x8xf32>
    %72 = vector.extract_strided_slice %41 {offsets = [1, 0, 0], sizes = [1, 8, 32], strides = [1, 1, 1]} : vector<2x8x32xf32> to vector<1x8x32xf32>
    %73 = vector.shape_cast %72 : vector<1x8x32xf32> to vector<8x32xf32>
    %74 = vector.shape_cast %73 : vector<8x32xf32> to vector<8x4x8xf32>
    %75 = tpu.transpose %74, [1, 0, 2] : vector<8x4x8xf32> -> vector<4x8x8xf32>
    %76 = vector.extract_strided_slice %42 {offsets = [1, 0, 0], sizes = [1, 8, 32], strides = [1, 1, 1]} : vector<2x8x32xf32> to vector<1x8x32xf32>
    %77 = vector.shape_cast %76 : vector<1x8x32xf32> to vector<8x32xf32>
    %78 = vector.shape_cast %77 : vector<8x32xf32> to vector<8x4x8xf32>
    %79 = tpu.transpose %78, [1, 0, 2] : vector<8x4x8xf32> -> vector<4x8x8xf32>
    "tpu.trace_start"() <{level = 10 : i32, message = "hqd,hkd->hqk"}> : () -> ()
    %cst_51 = arith.constant dense<0.000000e+00> : vector<4x8x8xf32>
    %80 = tpu.matmul %71, %75, %cst_51 {dimension_numbers = #tpu.dot_dimension_numbers<[2], [2], [1], [1], [0, 0, 0, 1, 1, 1], [0], [0]>} : vector<4x8x8xf32>, vector<4x8x8xf32>, vector<4x8x8xf32> -> vector<4x8x8xf32>
    "tpu.trace_stop"() : () -> ()
    %cst_52 = arith.constant dense<0xFF800000> : vector<4x8xf32>
    %81 = vector.multi_reduction <maximumf>, %80, %cst_52 [2] : vector<4x8x8xf32> to vector<4x8xf32>
    %82 = vector.shape_cast %81 : vector<4x8xf32> to vector<4x8x1xf32>
    %83 = vector.broadcast %82 : vector<4x8x1xf32> to vector<4x8x8xf32>
    %84 = arith.subf %80, %83 : vector<4x8x8xf32>
    %85 = math.exp %84 : vector<4x8x8xf32>
    %cst_53 = arith.constant dense<0.000000e+00> : vector<4x8xf32>
    %86 = vector.multi_reduction <add>, %85, %cst_53 [2] : vector<4x8x8xf32> to vector<4x8xf32>
    %87 = vector.shape_cast %86 : vector<4x8xf32> to vector<4x8x1xf32>
    %88 = vector.broadcast %87 : vector<4x8x1xf32> to vector<4x8x8xf32>
    %89 = arith.divf %85, %88 : vector<4x8x8xf32>
    "tpu.trace_start"() <{level = 10 : i32, message = "hqk,hkd->hqd"}> : () -> ()
    %cst_54 = arith.constant dense<0.000000e+00> : vector<4x8x8xf32>
    %90 = tpu.matmul %89, %79, %cst_54 {dimension_numbers = #tpu.dot_dimension_numbers<[2], [1], [1], [2], [0, 0, 0, 1, 1, 2], [0], [0]>} : vector<4x8x8xf32>, vector<4x8x8xf32>, vector<4x8x8xf32> -> vector<4x8x8xf32>
    "tpu.trace_stop"() : () -> ()
    %91 = tpu.transpose %90, [1, 0, 2] : vector<4x8x8xf32> -> vector<8x4x8xf32>
    %92 = vector.shape_cast %91 : vector<8x4x8xf32> to vector<8x32xf32>
    %93 = tpu.concatenate %67, %92 in 0 : vector<8x32xf32>, vector<8x32xf32> -> vector<16x32xf32>
    %cst_55 = arith.constant dense<0.000000e+00> : vector<16x32xf32>
    %94 = tpu.matmul %93, %11, %cst_55 {dimension_numbers = #tpu.dot_dimension_numbers<[1], [0], [0], [1], [0, 0, 1, 1], [], []>} : vector<16x32xf32>, vector<32x32xf32>, vector<16x32xf32> -> vector<16x32xf32>
    %95 = vector.broadcast %13 : vector<1x32xf32> to vector<16x32xf32>
    %96 = arith.addf %94, %95 : vector<16x32xf32>
    %97 = arith.addf %3, %96 : vector<16x32xf32>
    %c0_56 = arith.constant 0 : index
    %c0_57 = arith.constant 0 : index
    %c0_58 = arith.constant 0 : index
    %98 = vector.load %arg17[%c0_56, %c0_57, %c0_58] : memref<1x1x32xf32, #tpu.memory_space<vmem>>, vector<1x1x32xf32>
    %99 = vector.shape_cast %98 : vector<1x1x32xf32> to vector<1x32xf32>
    %c0_59 = arith.constant 0 : index
    %c0_60 = arith.constant 0 : index
    %c0_61 = arith.constant 0 : index
    %100 = vector.load %arg18[%c0_59, %c0_60, %c0_61] : memref<1x1x32xf32, #tpu.memory_space<vmem>>, vector<1x1x32xf32>
    %101 = vector.shape_cast %100 : vector<1x1x32xf32> to vector<1x32xf32>
    %cst_62 = arith.constant dense<0.000000e+00> : vector<16xf32>
    %102 = vector.multi_reduction <add>, %97, %cst_62 [1] : vector<16x32xf32> to vector<16xf32>
    %103 = vector.shape_cast %102 : vector<16xf32> to vector<16x1xf32>
    %cst_63 = arith.constant 3.200000e+01 : f32
    %104 = vector.broadcast %cst_63 : f32 to vector<16x1xf32>
    %105 = arith.divf %103, %104 : vector<16x1xf32>
    %106 = vector.broadcast %105 : vector<16x1xf32> to vector<16x32xf32>
    %107 = arith.subf %97, %106 : vector<16x32xf32>
    %108 = arith.mulf %107, %107 : vector<16x32xf32>
    %cst_64 = arith.constant dense<0.000000e+00> : vector<16xf32>
    %109 = vector.multi_reduction <add>, %108, %cst_64 [1] : vector<16x32xf32> to vector<16xf32>
    %110 = vector.shape_cast %109 : vector<16xf32> to vector<16x1xf32>
    %cst_65 = arith.constant 3.200000e+01 : f32
    %111 = vector.broadcast %cst_65 : f32 to vector<16x1xf32>
    %112 = arith.divf %110, %111 : vector<16x1xf32>
    %cst_66 = arith.constant 9.99999974E-6 : f32
    %113 = vector.broadcast %cst_66 : f32 to vector<16x1xf32>
    %114 = arith.addf %112, %113 : vector<16x1xf32>
    %115 = math.rsqrt %114 : vector<16x1xf32>
    %116 = vector.broadcast %115 : vector<16x1xf32> to vector<16x32xf32>
    %117 = arith.mulf %107, %116 : vector<16x32xf32>
    %118 = vector.broadcast %99 : vector<1x32xf32> to vector<16x32xf32>
    %119 = arith.mulf %117, %118 : vector<16x32xf32>
    %120 = vector.broadcast %101 : vector<1x32xf32> to vector<16x32xf32>
    %121 = arith.addf %119, %120 : vector<16x32xf32>
    %cst_67 = arith.constant dense<0.000000e+00> : vector<16x32xf32>
    %122 = tpu.matmul %121, %15, %cst_67 {dimension_numbers = #tpu.dot_dimension_numbers<[1], [0], [0], [1], [0, 0, 1, 1], [], []>} : vector<16x32xf32>, vector<32x32xf32>, vector<16x32xf32> -> vector<16x32xf32>
    %123 = vector.broadcast %17 : vector<1x32xf32> to vector<16x32xf32>
    %124 = arith.addf %122, %123 : vector<16x32xf32>
    %cst_68 = arith.constant dense<0.000000e+00> : vector<32x128xf32>
    %125 = tpu.matmul %5, %19, %cst_68 {dimension_numbers = #tpu.dot_dimension_numbers<[1], [0], [0], [1], [0, 0, 1, 1], [], []>} : vector<32x32xf32>, vector<32x128xf32>, vector<32x128xf32> -> vector<32x128xf32>
    %126 = vector.broadcast %21 : vector<1x128xf32> to vector<32x128xf32>
    %127 = arith.addf %125, %126 : vector<32x128xf32>
    %128 = vector.extract_strided_slice %127 {offsets = [0, 0], sizes = [32, 32], strides = [1, 1]} : vector<32x128xf32> to vector<32x32xf32>
    %129 = vector.extract_strided_slice %127 {offsets = [0, 32], sizes = [32, 32], strides = [1, 1]} : vector<32x128xf32> to vector<32x32xf32>
    %130 = vector.shape_cast %124 : vector<16x32xf32> to vector<2x8x32xf32>
    %131 = vector.shape_cast %128 : vector<32x32xf32> to vector<2x16x32xf32>
    %132 = vector.shape_cast %129 : vector<32x32xf32> to vector<2x16x32xf32>
    %133 = vector.extract_strided_slice %130 {offsets = [0, 0, 0], sizes = [1, 8, 32], strides = [1, 1, 1]} : vector<2x8x32xf32> to vector<1x8x32xf32>
    %134 = vector.shape_cast %133 : vector<1x8x32xf32> to vector<8x32xf32>
    %135 = vector.shape_cast %134 : vector<8x32xf32> to vector<8x4x8xf32>
    %136 = tpu.transpose %135, [1, 0, 2] : vector<8x4x8xf32> -> vector<4x8x8xf32>
    %137 = vector.extract_strided_slice %131 {offsets = [0, 0, 0], sizes = [1, 16, 32], strides = [1, 1, 1]} : vector<2x16x32xf32> to vector<1x16x32xf32>
    %138 = vector.shape_cast %137 : vector<1x16x32xf32> to vector<16x32xf32>
    %139 = vector.shape_cast %138 : vector<16x32xf32> to vector<16x4x8xf32>
    %140 = tpu.transpose %139, [1, 0, 2] : vector<16x4x8xf32> -> vector<4x16x8xf32>
    %141 = vector.extract_strided_slice %132 {offsets = [0, 0, 0], sizes = [1, 16, 32], strides = [1, 1, 1]} : vector<2x16x32xf32> to vector<1x16x32xf32>
    %142 = vector.shape_cast %141 : vector<1x16x32xf32> to vector<16x32xf32>
    %143 = vector.shape_cast %142 : vector<16x32xf32> to vector<16x4x8xf32>
    %144 = tpu.transpose %143, [1, 0, 2] : vector<16x4x8xf32> -> vector<4x16x8xf32>
    "tpu.trace_start"() <{level = 10 : i32, message = "hqd,hkd->hqk"}> : () -> ()
    %cst_69 = arith.constant dense<0.000000e+00> : vector<4x8x16xf32>
    %145 = tpu.matmul %136, %140, %cst_69 {dimension_numbers = #tpu.dot_dimension_numbers<[2], [2], [1], [1], [0, 0, 0, 1, 1, 1], [0], [0]>} : vector<4x8x8xf32>, vector<4x16x8xf32>, vector<4x8x16xf32> -> vector<4x8x16xf32>
    "tpu.trace_stop"() : () -> ()
    %cst_70 = arith.constant dense<0xFF800000> : vector<4x8xf32>
    %146 = vector.multi_reduction <maximumf>, %145, %cst_70 [2] : vector<4x8x16xf32> to vector<4x8xf32>
    %147 = vector.shape_cast %146 : vector<4x8xf32> to vector<4x8x1xf32>
    %148 = vector.broadcast %147 : vector<4x8x1xf32> to vector<4x8x16xf32>
    %149 = arith.subf %145, %148 : vector<4x8x16xf32>
    %150 = math.exp %149 : vector<4x8x16xf32>
    %cst_71 = arith.constant dense<0.000000e+00> : vector<4x8xf32>
    %151 = vector.multi_reduction <add>, %150, %cst_71 [2] : vector<4x8x16xf32> to vector<4x8xf32>
    %152 = vector.shape_cast %151 : vector<4x8xf32> to vector<4x8x1xf32>
    %153 = vector.broadcast %152 : vector<4x8x1xf32> to vector<4x8x16xf32>
    %154 = arith.divf %150, %153 : vector<4x8x16xf32>
    "tpu.trace_start"() <{level = 10 : i32, message = "hqk,hkd->hqd"}> : () -> ()
    %cst_72 = arith.constant dense<0.000000e+00> : vector<4x8x8xf32>
    %155 = tpu.matmul %154, %144, %cst_72 {dimension_numbers = #tpu.dot_dimension_numbers<[2], [1], [1], [2], [0, 0, 0, 1, 1, 2], [0], [0]>} : vector<4x8x16xf32>, vector<4x16x8xf32>, vector<4x8x8xf32> -> vector<4x8x8xf32>
    "tpu.trace_stop"() : () -> ()
    %156 = tpu.transpose %155, [1, 0, 2] : vector<4x8x8xf32> -> vector<8x4x8xf32>
    %157 = vector.shape_cast %156 : vector<8x4x8xf32> to vector<8x32xf32>
    %158 = vector.extract_strided_slice %130 {offsets = [1, 0, 0], sizes = [1, 8, 32], strides = [1, 1, 1]} : vector<2x8x32xf32> to vector<1x8x32xf32>
    %159 = vector.shape_cast %158 : vector<1x8x32xf32> to vector<8x32xf32>
    %160 = vector.shape_cast %159 : vector<8x32xf32> to vector<8x4x8xf32>
    %161 = tpu.transpose %160, [1, 0, 2] : vector<8x4x8xf32> -> vector<4x8x8xf32>
    %162 = vector.extract_strided_slice %131 {offsets = [1, 0, 0], sizes = [1, 16, 32], strides = [1, 1, 1]} : vector<2x16x32xf32> to vector<1x16x32xf32>
    %163 = vector.shape_cast %162 : vector<1x16x32xf32> to vector<16x32xf32>
    %164 = vector.shape_cast %163 : vector<16x32xf32> to vector<16x4x8xf32>
    %165 = tpu.transpose %164, [1, 0, 2] : vector<16x4x8xf32> -> vector<4x16x8xf32>
    %166 = vector.extract_strided_slice %132 {offsets = [1, 0, 0], sizes = [1, 16, 32], strides = [1, 1, 1]} : vector<2x16x32xf32> to vector<1x16x32xf32>
    %167 = vector.shape_cast %166 : vector<1x16x32xf32> to vector<16x32xf32>
    %168 = vector.shape_cast %167 : vector<16x32xf32> to vector<16x4x8xf32>
    %169 = tpu.transpose %168, [1, 0, 2] : vector<16x4x8xf32> -> vector<4x16x8xf32>
    "tpu.trace_start"() <{level = 10 : i32, message = "hqd,hkd->hqk"}> : () -> ()
    %cst_73 = arith.constant dense<0.000000e+00> : vector<4x8x16xf32>
    %170 = tpu.matmul %161, %165, %cst_73 {dimension_numbers = #tpu.dot_dimension_numbers<[2], [2], [1], [1], [0, 0, 0, 1, 1, 1], [0], [0]>} : vector<4x8x8xf32>, vector<4x16x8xf32>, vector<4x8x16xf32> -> vector<4x8x16xf32>
    "tpu.trace_stop"() : () -> ()
    %cst_74 = arith.constant dense<0xFF800000> : vector<4x8xf32>
    %171 = vector.multi_reduction <maximumf>, %170, %cst_74 [2] : vector<4x8x16xf32> to vector<4x8xf32>
    %172 = vector.shape_cast %171 : vector<4x8xf32> to vector<4x8x1xf32>
    %173 = vector.broadcast %172 : vector<4x8x1xf32> to vector<4x8x16xf32>
    %174 = arith.subf %170, %173 : vector<4x8x16xf32>
    %175 = math.exp %174 : vector<4x8x16xf32>
    %cst_75 = arith.constant dense<0.000000e+00> : vector<4x8xf32>
    %176 = vector.multi_reduction <add>, %175, %cst_75 [2] : vector<4x8x16xf32> to vector<4x8xf32>
    %177 = vector.shape_cast %176 : vector<4x8xf32> to vector<4x8x1xf32>
    %178 = vector.broadcast %177 : vector<4x8x1xf32> to vector<4x8x16xf32>
    %179 = arith.divf %175, %178 : vector<4x8x16xf32>
    "tpu.trace_start"() <{level = 10 : i32, message = "hqk,hkd->hqd"}> : () -> ()
    %cst_76 = arith.constant dense<0.000000e+00> : vector<4x8x8xf32>
    %180 = tpu.matmul %179, %169, %cst_76 {dimension_numbers = #tpu.dot_dimension_numbers<[2], [1], [1], [2], [0, 0, 0, 1, 1, 2], [0], [0]>} : vector<4x8x16xf32>, vector<4x16x8xf32>, vector<4x8x8xf32> -> vector<4x8x8xf32>
    "tpu.trace_stop"() : () -> ()
    %181 = tpu.transpose %180, [1, 0, 2] : vector<4x8x8xf32> -> vector<8x4x8xf32>
    %182 = vector.shape_cast %181 : vector<8x4x8xf32> to vector<8x32xf32>
    %183 = tpu.concatenate %157, %182 in 0 : vector<8x32xf32>, vector<8x32xf32> -> vector<16x32xf32>
    %cst_77 = arith.constant dense<0.000000e+00> : vector<16x32xf32>
    %184 = tpu.matmul %183, %23, %cst_77 {dimension_numbers = #tpu.dot_dimension_numbers<[1], [0], [0], [1], [0, 0, 1, 1], [], []>} : vector<16x32xf32>, vector<32x32xf32>, vector<16x32xf32> -> vector<16x32xf32>
    %185 = vector.broadcast %25 : vector<1x32xf32> to vector<16x32xf32>
    %186 = arith.addf %184, %185 : vector<16x32xf32>
    %187 = arith.addf %121, %186 : vector<16x32xf32>
    %c0_78 = arith.constant 0 : index
    %c0_79 = arith.constant 0 : index
    %c0_80 = arith.constant 0 : index
    %188 = vector.load %arg19[%c0_78, %c0_79, %c0_80] : memref<1x1x32xf32, #tpu.memory_space<vmem>>, vector<1x1x32xf32>
    %189 = vector.shape_cast %188 : vector<1x1x32xf32> to vector<1x32xf32>
    %c0_81 = arith.constant 0 : index
    %c0_82 = arith.constant 0 : index
    %c0_83 = arith.constant 0 : index
    %190 = vector.load %arg20[%c0_81, %c0_82, %c0_83] : memref<1x1x32xf32, #tpu.memory_space<vmem>>, vector<1x1x32xf32>
    %191 = vector.shape_cast %190 : vector<1x1x32xf32> to vector<1x32xf32>
    %cst_84 = arith.constant dense<0.000000e+00> : vector<16xf32>
    %192 = vector.multi_reduction <add>, %187, %cst_84 [1] : vector<16x32xf32> to vector<16xf32>
    %193 = vector.shape_cast %192 : vector<16xf32> to vector<16x1xf32>
    %cst_85 = arith.constant 3.200000e+01 : f32
    %194 = vector.broadcast %cst_85 : f32 to vector<16x1xf32>
    %195 = arith.divf %193, %194 : vector<16x1xf32>
    %196 = vector.broadcast %195 : vector<16x1xf32> to vector<16x32xf32>
    %197 = arith.subf %187, %196 : vector<16x32xf32>
    %198 = arith.mulf %197, %197 : vector<16x32xf32>
    %cst_86 = arith.constant dense<0.000000e+00> : vector<16xf32>
    %199 = vector.multi_reduction <add>, %198, %cst_86 [1] : vector<16x32xf32> to vector<16xf32>
    %200 = vector.shape_cast %199 : vector<16xf32> to vector<16x1xf32>
    %cst_87 = arith.constant 3.200000e+01 : f32
    %201 = vector.broadcast %cst_87 : f32 to vector<16x1xf32>
    %202 = arith.divf %200, %201 : vector<16x1xf32>
    %cst_88 = arith.constant 9.99999974E-6 : f32
    %203 = vector.broadcast %cst_88 : f32 to vector<16x1xf32>
    %204 = arith.addf %202, %203 : vector<16x1xf32>
    %205 = math.rsqrt %204 : vector<16x1xf32>
    %206 = vector.broadcast %205 : vector<16x1xf32> to vector<16x32xf32>
    %207 = arith.mulf %197, %206 : vector<16x32xf32>
    %208 = vector.broadcast %189 : vector<1x32xf32> to vector<16x32xf32>
    %209 = arith.mulf %207, %208 : vector<16x32xf32>
    %210 = vector.broadcast %191 : vector<1x32xf32> to vector<16x32xf32>
    %211 = arith.addf %209, %210 : vector<16x32xf32>
    %cst_89 = arith.constant dense<0.000000e+00> : vector<16x128xf32>
    %212 = tpu.matmul %211, %27, %cst_89 {dimension_numbers = #tpu.dot_dimension_numbers<[1], [0], [0], [1], [0, 0, 1, 1], [], []>} : vector<16x32xf32>, vector<32x128xf32>, vector<16x128xf32> -> vector<16x128xf32>
    %213 = vector.broadcast %29 : vector<1x128xf32> to vector<16x128xf32>
    %214 = arith.addf %212, %213 : vector<16x128xf32>
    %cst_90 = arith.constant 0.000000e+00 : f32
    %215 = vector.broadcast %cst_90 : f32 to vector<16x128xf32>
    %216 = arith.maximumf %214, %215 : vector<16x128xf32>
    %cst_91 = arith.constant dense<0.000000e+00> : vector<16x32xf32>
    %217 = tpu.matmul %216, %31, %cst_91 {dimension_numbers = #tpu.dot_dimension_numbers<[1], [0], [0], [1], [0, 0, 1, 1], [], []>} : vector<16x128xf32>, vector<128x32xf32>, vector<16x32xf32> -> vector<16x32xf32>
    %218 = vector.broadcast %33 : vector<1x32xf32> to vector<16x32xf32>
    %219 = arith.addf %217, %218 : vector<16x32xf32>
    %220 = arith.addf %211, %219 : vector<16x32xf32>
    %c0_92 = arith.constant 0 : index
    %c0_93 = arith.constant 0 : index
    %c0_94 = arith.constant 0 : index
    %221 = vector.load %arg21[%c0_92, %c0_93, %c0_94] : memref<1x1x32xf32, #tpu.memory_space<vmem>>, vector<1x1x32xf32>
    %222 = vector.shape_cast %221 : vector<1x1x32xf32> to vector<1x32xf32>
    %c0_95 = arith.constant 0 : index
    %c0_96 = arith.constant 0 : index
    %c0_97 = arith.constant 0 : index
    %223 = vector.load %arg22[%c0_95, %c0_96, %c0_97] : memref<1x1x32xf32, #tpu.memory_space<vmem>>, vector<1x1x32xf32>
    %224 = vector.shape_cast %223 : vector<1x1x32xf32> to vector<1x32xf32>
    %cst_98 = arith.constant dense<0.000000e+00> : vector<16xf32>
    %225 = vector.multi_reduction <add>, %220, %cst_98 [1] : vector<16x32xf32> to vector<16xf32>
    %226 = vector.shape_cast %225 : vector<16xf32> to vector<16x1xf32>
    %cst_99 = arith.constant 3.200000e+01 : f32
    %227 = vector.broadcast %cst_99 : f32 to vector<16x1xf32>
    %228 = arith.divf %226, %227 : vector<16x1xf32>
    %229 = vector.broadcast %228 : vector<16x1xf32> to vector<16x32xf32>
    %230 = arith.subf %220, %229 : vector<16x32xf32>
    %231 = arith.mulf %230, %230 : vector<16x32xf32>
    %cst_100 = arith.constant dense<0.000000e+00> : vector<16xf32>
    %232 = vector.multi_reduction <add>, %231, %cst_100 [1] : vector<16x32xf32> to vector<16xf32>
    %233 = vector.shape_cast %232 : vector<16xf32> to vector<16x1xf32>
    %cst_101 = arith.constant 3.200000e+01 : f32
    %234 = vector.broadcast %cst_101 : f32 to vector<16x1xf32>
    %235 = arith.divf %233, %234 : vector<16x1xf32>
    %cst_102 = arith.constant 9.99999974E-6 : f32
    %236 = vector.broadcast %cst_102 : f32 to vector<16x1xf32>
    %237 = arith.addf %235, %236 : vector<16x1xf32>
    %238 = math.rsqrt %237 : vector<16x1xf32>
    %239 = vector.broadcast %238 : vector<16x1xf32> to vector<16x32xf32>
    %240 = arith.mulf %230, %239 : vector<16x32xf32>
    %241 = vector.broadcast %222 : vector<1x32xf32> to vector<16x32xf32>
    %242 = arith.mulf %240, %241 : vector<16x32xf32>
    %243 = vector.broadcast %224 : vector<1x32xf32> to vector<16x32xf32>
    %244 = arith.addf %242, %243 : vector<16x32xf32>
    %c0_103 = arith.constant 0 : index
    %c0_104 = arith.constant 0 : index
    %245 = vector.load %arg24[%c0_103, %c0_104] : memref<16x32xf32, #tpu.memory_space<vmem>>, vector<16x32xf32>
    tpu.vector_store %arg24[%c0_103, %c0_104], %244 {strides = array<i32>} : memref<16x32xf32, #tpu.memory_space<vmem>>, vector<16x32xf32>,
    %c1_i32 = arith.constant 1 : i32
    %246 = arith.cmpi eq, %arg0, %c1_i32 : i32
    %247 = arith.extui %246 : i1 to i32
    %c0_i32_105 = arith.constant 0 : i32
    %248 = arith.cmpi ne, %247, %c0_i32_105 : i32
    scf.if %248 {
      %249 = vector.shape_cast %244 : vector<16x32xf32> to vector<2x8x32xf32>
      %c0_106 = arith.constant 0 : index
      %c0_107 = arith.constant 0 : index
      %c0_108 = arith.constant 0 : index
      %250 = vector.load %arg23[%c0_106, %c0_107, %c0_108] : memref<2x8x32xf32, #tpu.memory_space<vmem>>, vector<2x8x32xf32>
      tpu.vector_store %arg23[%c0_106, %c0_107, %c0_108], %249 {strides = array<i32>} : memref<2x8x32xf32, #tpu.memory_space<vmem>>, vector<2x8x32xf32>,
    } else {
    }
    return
  }
  func.func @transform_0(%arg0: i32) -> (i32, i32, i32) {
    %c0_i32 = arith.constant 0 : i32
    %c0_i32_0 = arith.constant 0 : i32
    %c0_i32_1 = arith.constant 0 : i32
    %c0_i32_2 = arith.constant 0 : i32
    return %c0_i32, %c0_i32_0, %c0_i32_1 : i32, i32, i32
  }
  func.func @transform_1(%arg0: i32) -> (i32, i32, i32) {
    %c0_i32 = arith.constant 0 : i32
    %c0_i32_0 = arith.constant 0 : i32
    %c0_i32_1 = arith.constant 0 : i32
    %c0_i32_2 = arith.constant 0 : i32
    return %c0_i32, %c0_i32_0, %c0_i32_1 : i32, i32, i32
  }
  func.func @transform_2(%arg0: i32) -> (i32, i32, i32) {
    %c0_i32 = arith.constant 0 : i32
    %c0_i32_0 = arith.constant 0 : i32
    %c0_i32_1 = arith.constant 0 : i32
    return %arg0, %c0_i32, %c0_i32_0 : i32, i32, i32
  }
  func.func @transform_3(%arg0: i32) -> (i32, i32, i32) {
    %c0_i32 = arith.constant 0 : i32
    %c0_i32_0 = arith.constant 0 : i32
    %c0_i32_1 = arith.constant 0 : i32
    return %arg0, %c0_i32, %c0_i32_0 : i32, i32, i32
  }
  func.func @transform_4(%arg0: i32) -> (i32, i32, i32) {
    %c0_i32 = arith.constant 0 : i32
    %c0_i32_0 = arith.constant 0 : i32
    %c0_i32_1 = arith.constant 0 : i32
    return %arg0, %c0_i32, %c0_i32_0 : i32, i32, i32
  }
  func.func @transform_5(%arg0: i32) -> (i32, i32, i32) {
    %c0_i32 = arith.constant 0 : i32
    %c0_i32_0 = arith.constant 0 : i32
    %c0_i32_1 = arith.constant 0 : i32
    return %arg0, %c0_i32, %c0_i32_0 : i32, i32, i32
  }
  func.func @transform_6(%arg0: i32) -> (i32, i32, i32) {
    %c0_i32 = arith.constant 0 : i32
    %c0_i32_0 = arith.constant 0 : i32
    %c0_i32_1 = arith.constant 0 : i32
    return %arg0, %c0_i32, %c0_i32_0 : i32, i32, i32
  }
  func.func @transform_7(%arg0: i32) -> (i32, i32, i32) {
    %c0_i32 = arith.constant 0 : i32
    %c0_i32_0 = arith.constant 0 : i32
    %c0_i32_1 = arith.constant 0 : i32
    return %arg0, %c0_i32, %c0_i32_0 : i32, i32, i32
  }
  func.func @transform_8(%arg0: i32) -> (i32, i32, i32) {
    %c0_i32 = arith.constant 0 : i32
    %c0_i32_0 = arith.constant 0 : i32
    %c0_i32_1 = arith.constant 0 : i32
    return %arg0, %c0_i32, %c0_i32_0 : i32, i32, i32
  }
  func.func @transform_9(%arg0: i32) -> (i32, i32, i32) {
    %c0_i32 = arith.constant 0 : i32
    %c0_i32_0 = arith.constant 0 : i32
    %c0_i32_1 = arith.constant 0 : i32
    return %arg0, %c0_i32, %c0_i32_0 : i32, i32, i32
  }
  func.func @transform_10(%arg0: i32) -> (i32, i32, i32) {
    %c0_i32 = arith.constant 0 : i32
    %c0_i32_0 = arith.constant 0 : i32
    %c0_i32_1 = arith.constant 0 : i32
    return %arg0, %c0_i32, %c0_i32_0 : i32, i32, i32
  }
  func.func @transform_11(%arg0: i32) -> (i32, i32, i32) {
    %c0_i32 = arith.constant 0 : i32
    %c0_i32_0 = arith.constant 0 : i32
    %c0_i32_1 = arith.constant 0 : i32
    return %arg0, %c0_i32, %c0_i32_0 : i32, i32, i32
  }
  func.func @transform_12(%arg0: i32) -> (i32, i32, i32) {
    %c0_i32 = arith.constant 0 : i32
    %c0_i32_0 = arith.constant 0 : i32
    %c0_i32_1 = arith.constant 0 : i32
    return %arg0, %c0_i32, %c0_i32_0 : i32, i32, i32
  }
  func.func @transform_13(%arg0: i32) -> (i32, i32, i32) {
    %c0_i32 = arith.constant 0 : i32
    %c0_i32_0 = arith.constant 0 : i32
    %c0_i32_1 = arith.constant 0 : i32
    return %arg0, %c0_i32, %c0_i32_0 : i32, i32, i32
  }
  func.func @transform_14(%arg0: i32) -> (i32, i32, i32) {
    %c0_i32 = arith.constant 0 : i32
    %c0_i32_0 = arith.constant 0 : i32
    %c0_i32_1 = arith.constant 0 : i32
    return %arg0, %c0_i32, %c0_i32_0 : i32, i32, i32
  }
  func.func @transform_15(%arg0: i32) -> (i32, i32, i32) {
    %c0_i32 = arith.constant 0 : i32
    %c0_i32_0 = arith.constant 0 : i32
    %c0_i32_1 = arith.constant 0 : i32
    return %arg0, %c0_i32, %c0_i32_0 : i32, i32, i32
  }
  func.func @transform_16(%arg0: i32) -> (i32, i32, i32) {
    %c0_i32 = arith.constant 0 : i32
    %c0_i32_0 = arith.constant 0 : i32
    %c0_i32_1 = arith.constant 0 : i32
    return %arg0, %c0_i32, %c0_i32_0 : i32, i32, i32
  }
  func.func @transform_17(%arg0: i32) -> (i32, i32, i32) {
    %c0_i32 = arith.constant 0 : i32
    %c0_i32_0 = arith.constant 0 : i32
    %c0_i32_1 = arith.constant 0 : i32
    return %arg0, %c0_i32, %c0_i32_0 : i32, i32, i32
  }
  func.func @transform_18(%arg0: i32) -> (i32, i32, i32) {
    %c0_i32 = arith.constant 0 : i32
    %c0_i32_0 = arith.constant 0 : i32
    %c0_i32_1 = arith.constant 0 : i32
    return %arg0, %c0_i32, %c0_i32_0 : i32, i32, i32
  }
  func.func @transform_19(%arg0: i32) -> (i32, i32, i32) {
    %c0_i32 = arith.constant 0 : i32
    %c0_i32_0 = arith.constant 0 : i32
    %c0_i32_1 = arith.constant 0 : i32
    return %arg0, %c0_i32, %c0_i32_0 : i32, i32, i32
  }
  func.func @transform_20(%arg0: i32) -> (i32, i32, i32) {
    %c0_i32 = arith.constant 0 : i32
    %c0_i32_0 = arith.constant 0 : i32
    %c0_i32_1 = arith.constant 0 : i32
    return %arg0, %c0_i32, %c0_i32_0 : i32, i32, i32
  }
  func.func @transform_21(%arg0: i32) -> (i32, i32, i32) {
    %c0_i32 = arith.constant 0 : i32
    %c0_i32_0 = arith.constant 0 : i32
    %c0_i32_1 = arith.constant 0 : i32
    return %arg0, %c0_i32, %c0_i32_0 : i32, i32, i32
  }
  func.func @transform_22(%arg0: i32) -> (i32, i32, i32) {
    %c0_i32 = arith.constant 0 : i32
    %c0_i32_0 = arith.constant 0 : i32
    %c0_i32_1 = arith.constant 0 : i32
    %c0_i32_2 = arith.constant 0 : i32
    return %c0_i32, %c0_i32_0, %c0_i32_1 : i32, i32, i32
  }
}

</mosaic_0001>

<llo_original>
// kernel: decoder_forward.1
$region0: #{decoder_forward.1}
  #allocation0 [shape = 'u32[]', space=smem, size = 0x4, offset = 0x4, fixed_abs, tag = 'smem constant byte address 0x4 - core index']
  #allocation1 [shape = 'u32[72,128]{1,0:T(1,128)}', space=vmem, size = 0x9000, scoped, tag = 'internal scratch']
  #allocation2 [shape = 'f32[16,32]{1,0:T(8,128)}', space=vmem, size = 0x2000, scoped, tag = 'scratch operand']
  %s0 = inlined_call_operand.hbm [shape: f32[2,8,32], index: 0, kind: input, shape index: {}]
  %s1 = inlined_call_operand.hbm [shape: f32[2,16,32], index: 1, kind: input, shape index: {}]
  %s2 = inlined_call_operand.vmem [shape: f32[2,32,128], index: 2, kind: input, shape index: {}]
  %s3 = inlined_call_operand.hbm [shape: f32[2,1,128], index: 3, kind: input, shape index: {}]
  %s4 = inlined_call_operand.vmem [shape: f32[2,32,32], index: 4, kind: input, shape index: {}]
  %s5 = inlined_call_operand.vmem [shape: f32[2,1,32], index: 5, kind: input, shape index: {}]
  %s6 = inlined_call_operand.vmem [shape: f32[2,32,32], index: 6, kind: input, shape index: {}]
  %s7 = inlined_call_operand.hbm [shape: f32[2,1,32], index: 7, kind: input, shape index: {}]
  %s8 = inlined_call_operand.vmem [shape: f32[2,32,128], index: 8, kind: input, shape index: {}]
  %s9 = inlined_call_operand.vmem [shape: f32[2,1,128], index: 9, kind: input, shape index: {}]
  %s10 = inlined_call_operand.vmem [shape: f32[2,32,32], index: 10, kind: input, shape index: {}]
  %s11 = inlined_call_operand.vmem [shape: f32[2,1,32], index: 11, kind: input, shape index: {}]
  %s12 = inlined_call_operand.hbm [shape: f32[2,32,128], index: 12, kind: input, shape index: {}]
  %s13 = inlined_call_operand.vmem [shape: f32[2,1,128], index: 13, kind: input, shape index: {}]
  %s14 = inlined_call_operand.vmem [shape: f32[2,128,32], index: 14, kind: input, shape index: {}]
  %s15 = inlined_call_operand.vmem [shape: f32[2,1,32], index: 15, kind: input, shape index: {}]
  %s16 = inlined_call_operand.vmem [shape: f32[2,1,32], index: 16, kind: input, shape index: {}]
  %s17 = inlined_call_operand.vmem [shape: f32[2,1,32], index: 17, kind: input, shape index: {}]
  %s18 = inlined_call_operand.hbm [shape: f32[2,1,32], index: 18, kind: input, shape index: {}]
  %s19 = inlined_call_operand.hbm [shape: f32[2,1,32], index: 19, kind: input, shape index: {}]
  %s20 = inlined_call_operand.vmem [shape: f32[2,1,32], index: 20, kind: input, shape index: {}]
  %s21 = inlined_call_operand.vmem [shape: f32[2,1,32], index: 21, kind: input, shape index: {}]
  %s22 = inlined_call_operand.hbm [shape: f32[2,8,32], index: 22, kind: output, shape index: {}]
  %s23 = sld [smem:[#allocation0]]
  $region157: #{decoder_forward.1} parent=0
    _
  %s25 = ssub.s32 1, %s23
  %s26 = scalar_select 0, %s25, %s23
  $region1: #{decoder_forward.1} parent=0
    #allocation3 [shape = 'u8[8192]{0}', space=vmem, size = 0x2000, scoped, tag = 'input window, operand 0, single buffered']
    #allocation4 [shape = 's32[2]{0}', space=sflag, size = 0x8, scoped, tag = 'scoped memory for decoder_forward.1']
    #allocation5 [shape = 's32[2]{0}', space=sflag, size = 0x8, scoped, tag = 'scoped memory for decoder_forward.1']
    #allocation6 [shape = 'u8[16384]{0}', space=vmem, size = 0x4000, scoped, tag = 'input window, operand 1, single buffered']
    #allocation7 [shape = 's32[1]{0}', space=sflag, size = 0x4, scoped, tag = 'scoped memory for decoder_forward.1']
    #allocation8 [shape = 'u8[1024]{0}', space=vmem, size = 0x400, scoped, tag = 'input window, operand 3']
    #allocation9 [shape = 'u8[1024]{0}', space=vmem, size = 0x400, scoped, tag = 'input window, operand 7']
    #allocation10 [shape = 'u8[32768]{0}', space=vmem, size = 0x8000, scoped, tag = 'input window, operand 12']
    #allocation11 [shape = 'u8[1024]{0}', space=vmem, size = 0x400, scoped, tag = 'input window, operand 18']
    #allocation12 [shape = 'u8[1024]{0}', space=vmem, size = 0x400, scoped, tag = 'input window, operand 19']
    #allocation13 [shape = 'u8[8192]{0}', space=vmem, size = 0x2000, scoped, tag = 'output window, operand 0, single buffered']
    %27 = vsyncpa [#allocation4], 0
    %28 = vsyncpa [#allocation7], 0
    %29 = vsyncpa [#allocation5], 0
    loop: start=0, step=1, limit=4
    $region2: #{decoder_forward.1} parent=1 // loop_pre_header
      _
    $region3: #{decoder_forward.1} parent=1 // loop_header
      %s31 = sphi 0, %s35
      %p32 = scmp.ge.s32.totalorder %s31, 4
      %s39 = sphi 0, %s39
      %s41 = sphi 0, %s39
      %s42 = sphi 0, %s41
      %s56 = sphi 0, %s42
      %s60 = sphi 0, %s60
      %s62 = sphi 0, %s60
      %s63 = sphi 0, %s62
      %s77 = sphi 0, %s63
      %s83 = sphi 0, %s85
      %s86 = sphi 0, %s83
      %s87 = sphi 0, %s86
      %s103 = sphi 0, %s87
      %s109 = sphi 0, %s111
      %s112 = sphi 0, %s109
      %s113 = sphi 0, %s112
      %s129 = sphi 0, %s113
      %s135 = sphi 0, %s137
      %s138 = sphi 0, %s135
      %s139 = sphi 0, %s138
      %s155 = sphi 0, %s139
      %s161 = sphi 0, %s163
      %s164 = sphi 0, %s161
      %s165 = sphi 0, %s164
      %s181 = sphi 0, %s165
      %s187 = sphi 0, %s189
      %s190 = sphi 0, %s187
      %s191 = sphi 0, %s190
      %s207 = sphi 0, %s191
      %s213 = sphi 0, %s215
      %s216 = sphi 0, %s213
      %s217 = sphi 0, %s216
      %s233 = sphi 0, %s217
      %s239 = sphi 0, %s241
      %s242 = sphi 0, %s239
      %s243 = sphi 0, %s242
      %s259 = sphi 0, %s243
      %s265 = sphi 0, %s267
      %s268 = sphi 0, %s265
      %s269 = sphi 0, %s268
      %s285 = sphi 0, %s269
      %s291 = sphi 0, %s293
      %s294 = sphi 0, %s291
      %s295 = sphi 0, %s294
      %s311 = sphi 0, %s295
      %s317 = sphi 0, %s319
      %s320 = sphi 0, %s317
      %s321 = sphi 0, %s320
      %s337 = sphi 0, %s321
      %s343 = sphi 0, %s345
      %s346 = sphi 0, %s343
      %s347 = sphi 0, %s346
      %s363 = sphi 0, %s347
      %s369 = sphi 0, %s371
      %s372 = sphi 0, %s369
      %s373 = sphi 0, %s372
      %s389 = sphi 0, %s373
      %s395 = sphi 0, %s397
      %s398 = sphi 0, %s395
      %s399 = sphi 0, %s398
      %s415 = sphi 0, %s399
      %s421 = sphi 0, %s423
      %s424 = sphi 0, %s421
      %s425 = sphi 0, %s424
      %s441 = sphi 0, %s425
      %s447 = sphi 0, %s449
      %s450 = sphi 0, %s447
      %s451 = sphi 0, %s450
      %s467 = sphi 0, %s451
      %s473 = sphi 0, %s475
      %s476 = sphi 0, %s473
      %s477 = sphi 0, %s476
      %s493 = sphi 0, %s477
      %s499 = sphi 0, %s501
      %s502 = sphi 0, %s499
      %s503 = sphi 0, %s502
      %s519 = sphi 0, %s503
      %s525 = sphi 0, %s527
      %s528 = sphi 0, %s525
      %s529 = sphi 0, %s528
      %s545 = sphi 0, %s529
      %s551 = sphi 0, %s553
      %s554 = sphi 0, %s551
      %s555 = sphi 0, %s554
      %s571 = sphi 0, %s555
      %s577 = sphi 0, %s579
      %s580 = sphi 0, %s577
      %s581 = sphi 0, %s580
      %s597 = sphi 0, %s581
      %s601 = sphi 0, %s601
      %s603 = sphi 0, %s601
      %s604 = sphi 0, %s603
      %s618 = sphi 0, %s604
    $region4: #{decoder_forward.1} parent=1 // loop_header_branch
      %34 = sbr.rel (%p32) target = $region8
    $region5: #{decoder_forward.1} parent=1 // loop_body
      %s36 = ssub.s32 %s31, 1
      %s37 = ssub.s32 %s31, 2
      %s38 = sadd.s32 %s31, 1
      %s40 = sadd.s32 %s39, 1
      %p43 = scmp.eq.s32.totalorder %s31, 1
      %p44 = scmp.ne.s32.totalorder %s39, %s41
      %p45 = scmp.eq.s32.totalorder %s31, 0
      %p46 = por %p44, %p45
      %p47 = scmp.ne.s32.totalorder %s39, %s41
      %p48 = scmp.eq.s32.totalorder %s36, 1
      %p49 = por %p47, %p48
      %p50 = scmp.ne.s32.totalorder %s41, %s42
      %p51 = scmp.eq.s32.totalorder %s36, 0
      %p52 = por %p50, %p51
      %p53 = scmp.ne.s32.totalorder %s41, %s42
      %p54 = scmp.eq.s32.totalorder %s37, 1
      %p55 = por %p53, %p54
      %p57 = scmp.ne.s32.totalorder %s42, %s56
      %p58 = scmp.eq.s32.totalorder %s37, 0
      %p59 = por %p57, %p58
      %s61 = sadd.s32 %s60, 1
      %p64 = scmp.eq.s32.totalorder %s31, 1
      %p65 = scmp.ne.s32.totalorder %s60, %s62
      %p66 = scmp.eq.s32.totalorder %s31, 0
      %p67 = por %p65, %p66
      %p68 = scmp.ne.s32.totalorder %s60, %s62
      %p69 = scmp.eq.s32.totalorder %s36, 1
      %p70 = por %p68, %p69
      %p71 = scmp.ne.s32.totalorder %s62, %s63
      %p72 = scmp.eq.s32.totalorder %s36, 0
      %p73 = por %p71, %p72
      %p74 = scmp.ne.s32.totalorder %s62, %s63
      %p75 = scmp.eq.s32.totalorder %s37, 1
      %p76 = por %p74, %p75
      %p78 = scmp.ne.s32.totalorder %s63, %s77
      %p79 = scmp.eq.s32.totalorder %s37, 0
      %p80 = por %p78, %p79
      %s81 = ssub.s32 %s31, %s38
      %p82 = scmp.eq.s32.totalorder %s81, 0
      %s84 = sadd.s32 %s83, 1
      %s85 = scalar_select %p82, %s83, %s84
      %p88 = pneg %p82
      %p89 = scmp.eq.s32.totalorder %s31, 1
      %p90 = por %p88, %p89
      %p91 = scmp.ne.s32.totalorder %s83, %s86
      %p92 = scmp.eq.s32.totalorder %s31, 0
      %p93 = por %p91, %p92
      %p94 = scmp.ne.s32.totalorder %s83, %s86
      %p95 = scmp.eq.s32.totalorder %s36, 1
      %p96 = por %p94, %p95
      %p97 = scmp.ne.s32.totalorder %s86, %s87
      %p98 = scmp.eq.s32.totalorder %s36, 0
      %p99 = por %p97, %p98
      %p100 = scmp.ne.s32.totalorder %s86, %s87
      %p101 = scmp.eq.s32.totalorder %s37, 1
      %p102 = por %p100, %p101
      %p104 = scmp.ne.s32.totalorder %s87, %s103
      %p105 = scmp.eq.s32.totalorder %s37, 0
      %p106 = por %p104, %p105
      %s107 = ssub.s32 %s31, %s38
      %p108 = scmp.eq.s32.totalorder %s107, 0
      %s110 = sadd.s32 %s109, 1
      %s111 = scalar_select %p108, %s109, %s110
      %p114 = pneg %p108
      %p115 = scmp.eq.s32.totalorder %s31, 1
      %p116 = por %p114, %p115
      %p117 = scmp.ne.s32.totalorder %s109, %s112
      %p118 = scmp.eq.s32.totalorder %s31, 0
      %p119 = por %p117, %p118
      %p120 = scmp.ne.s32.totalorder %s109, %s112
      %p121 = scmp.eq.s32.totalorder %s36, 1
      %p122 = por %p120, %p121
      %p123 = scmp.ne.s32.totalorder %s112, %s113
      %p124 = scmp.eq.s32.totalorder %s36, 0
      %p125 = por %p123, %p124
      %p126 = scmp.ne.s32.totalorder %s112, %s113
      %p127 = scmp.eq.s32.totalorder %s37, 1
      %p128 = por %p126, %p127
      %p130 = scmp.ne.s32.totalorder %s113, %s129
      %p131 = scmp.eq.s32.totalorder %s37, 0
      %p132 = por %p130, %p131
      %s133 = ssub.s32 %s31, %s38
      %p134 = scmp.eq.s32.totalorder %s133, 0
      %s136 = sadd.s32 %s135, 1
      %s137 = scalar_select %p134, %s135, %s136
      %p140 = pneg %p134
      %p141 = scmp.eq.s32.totalorder %s31, 1
      %p142 = por %p140, %p141
      %p143 = scmp.ne.s32.totalorder %s135, %s138
      %p144 = scmp.eq.s32.totalorder %s31, 0
      %p145 = por %p143, %p144
      %p146 = scmp.ne.s32.totalorder %s135, %s138
      %p147 = scmp.eq.s32.totalorder %s36, 1
      %p148 = por %p146, %p147
      %p149 = scmp.ne.s32.totalorder %s138, %s139
      %p150 = scmp.eq.s32.totalorder %s36, 0
      %p151 = por %p149, %p150
      %p152 = scmp.ne.s32.totalorder %s138, %s139
      %p153 = scmp.eq.s32.totalorder %s37, 1
      %p154 = por %p152, %p153
      %p156 = scmp.ne.s32.totalorder %s139, %s155
      %p157 = scmp.eq.s32.totalorder %s37, 0
      %p158 = por %p156, %p157
      %s159 = ssub.s32 %s31, %s38
      %p160 = scmp.eq.s32.totalorder %s159, 0
      %s162 = sadd.s32 %s161, 1
      %s163 = scalar_select %p160, %s161, %s162
      %p166 = pneg %p160
      %p167 = scmp.eq.s32.totalorder %s31, 1
      %p168 = por %p166, %p167
      %p169 = scmp.ne.s32.totalorder %s161, %s164
      %p170 = scmp.eq.s32.totalorder %s31, 0
      %p171 = por %p169, %p170
      %p172 = scmp.ne.s32.totalorder %s161, %s164
      %p173 = scmp.eq.s32.totalorder %s36, 1
      %p174 = por %p172, %p173
      %p175 = scmp.ne.s32.totalorder %s164, %s165
      %p176 = scmp.eq.s32.totalorder %s36, 0
      %p177 = por %p175, %p176
      %p178 = scmp.ne.s32.totalorder %s164, %s165
      %p179 = scmp.eq.s32.totalorder %s37, 1
      %p180 = por %p178, %p179
      %p182 = scmp.ne.s32.totalorder %s165, %s181
      %p183 = scmp.eq.s32.totalorder %s37, 0
      %p184 = por %p182, %p183
      %s185 = ssub.s32 %s31, %s38
      %p186 = scmp.eq.s32.totalorder %s185, 0
      %s188 = sadd.s32 %s187, 1
      %s189 = scalar_select %p186, %s187, %s188
      %p192 = pneg %p186
      %p193 = scmp.eq.s32.totalorder %s31, 1
      %p194 = por %p192, %p193
      %p195 = scmp.ne.s32.totalorder %s187, %s190
      %p196 = scmp.eq.s32.totalorder %s31, 0
      %p197 = por %p195, %p196
      %p198 = scmp.ne.s32.totalorder %s187, %s190
      %p199 = scmp.eq.s32.totalorder %s36, 1
      %p200 = por %p198, %p199
      %p201 = scmp.ne.s32.totalorder %s190, %s191
      %p202 = scmp.eq.s32.totalorder %s36, 0
      %p203 = por %p201, %p202
      %p204 = scmp.ne.s32.totalorder %s190, %s191
      %p205 = scmp.eq.s32.totalorder %s37, 1
      %p206 = por %p204, %p205
      %p208 = scmp.ne.s32.totalorder %s191, %s207
      %p209 = scmp.eq.s32.totalorder %s37, 0
      %p210 = por %p208, %p209
      %s211 = ssub.s32 %s31, %s38
      %p212 = scmp.eq.s32.totalorder %s211, 0
      %s214 = sadd.s32 %s213, 1
      %s215 = scalar_select %p212, %s213, %s214
      %p218 = pneg %p212
      %p219 = scmp.eq.s32.totalorder %s31, 1
      %p220 = por %p218, %p219
      %p221 = scmp.ne.s32.totalorder %s213, %s216
      %p222 = scmp.eq.s32.totalorder %s31, 0
      %p223 = por %p221, %p222
      %p224 = scmp.ne.s32.totalorder %s213, %s216
      %p225 = scmp.eq.s32.totalorder %s36, 1
      %p226 = por %p224, %p225
      %p227 = scmp.ne.s32.totalorder %s216, %s217
      %p228 = scmp.eq.s32.totalorder %s36, 0
      %p229 = por %p227, %p228
      %p230 = scmp.ne.s32.totalorder %s216, %s217
      %p231 = scmp.eq.s32.totalorder %s37, 1
      %p232 = por %p230, %p231
      %p234 = scmp.ne.s32.totalorder %s217, %s233
      %p235 = scmp.eq.s32.totalorder %s37, 0
      %p236 = por %p234, %p235
      %s237 = ssub.s32 %s31, %s38
      %p238 = scmp.eq.s32.totalorder %s237, 0
      %s240 = sadd.s32 %s239, 1
      %s241 = scalar_select %p238, %s239, %s240
      %p244 = pneg %p238
      %p245 = scmp.eq.s32.totalorder %s31, 1
      %p246 = por %p244, %p245
      %p247 = scmp.ne.s32.totalorder %s239, %s242
      %p248 = scmp.eq.s32.totalorder %s31, 0
      %p249 = por %p247, %p248
      %p250 = scmp.ne.s32.totalorder %s239, %s242
      %p251 = scmp.eq.s32.totalorder %s36, 1
      %p252 = por %p250, %p251
      %p253 = scmp.ne.s32.totalorder %s242, %s243
      %p254 = scmp.eq.s32.totalorder %s36, 0
      %p255 = por %p253, %p254
      %p256 = scmp.ne.s32.totalorder %s242, %s243
      %p257 = scmp.eq.s32.totalorder %s37, 1
      %p258 = por %p256, %p257
      %p260 = scmp.ne.s32.totalorder %s243, %s259
      %p261 = scmp.eq.s32.totalorder %s37, 0
      %p262 = por %p260, %p261
      %s263 = ssub.s32 %s31, %s38
      %p264 = scmp.eq.s32.totalorder %s263, 0
      %s266 = sadd.s32 %s265, 1
      %s267 = scalar_select %p264, %s265, %s266
      %p270 = pneg %p264
      %p271 = scmp.eq.s32.totalorder %s31, 1
      %p272 = por %p270, %p271
      %p273 = scmp.ne.s32.totalorder %s265, %s268
      %p274 = scmp.eq.s32.totalorder %s31, 0
      %p275 = por %p273, %p274
      %p276 = scmp.ne.s32.totalorder %s265, %s268
      %p277 = scmp.eq.s32.totalorder %s36, 1
      %p278 = por %p276, %p277
      %p279 = scmp.ne.s32.totalorder %s268, %s269
      %p280 = scmp.eq.s32.totalorder %s36, 0
      %p281 = por %p279, %p280
      %p282 = scmp.ne.s32.totalorder %s268, %s269
      %p283 = scmp.eq.s32.totalorder %s37, 1
      %p284 = por %p282, %p283
      %p286 = scmp.ne.s32.totalorder %s269, %s285
      %p287 = scmp.eq.s32.totalorder %s37, 0
      %p288 = por %p286, %p287
      %s289 = ssub.s32 %s31, %s38
      %p290 = scmp.eq.s32.totalorder %s289, 0
      %s292 = sadd.s32 %s291, 1
      %s293 = scalar_select %p290, %s291, %s292
      %p296 = pneg %p290
      %p297 = scmp.eq.s32.totalorder %s31, 1
      %p298 = por %p296, %p297
      %p299 = scmp.ne.s32.totalorder %s291, %s294
      %p300 = scmp.eq.s32.totalorder %s31, 0
      %p301 = por %p299, %p300
      %p302 = scmp.ne.s32.totalorder %s291, %s294
      %p303 = scmp.eq.s32.totalorder %s36, 1
      %p304 = por %p302, %p303
      %p305 = scmp.ne.s32.totalorder %s294, %s295
      %p306 = scmp.eq.s32.totalorder %s36, 0
      %p307 = por %p305, %p306
      %p308 = scmp.ne.s32.totalorder %s294, %s295
      %p309 = scmp.eq.s32.totalorder %s37, 1
      %p310 = por %p308, %p309
      %p312 = scmp.ne.s32.totalorder %s295, %s311
      %p313 = scmp.eq.s32.totalorder %s37, 0
      %p314 = por %p312, %p313
      %s315 = ssub.s32 %s31, %s38
      %p316 = scmp.eq.s32.totalorder %s315, 0
      %s318 = sadd.s32 %s317, 1
      %s319 = scalar_select %p316, %s317, %s318
      %p322 = pneg %p316
      %p323 = scmp.eq.s32.totalorder %s31, 1
      %p324 = por %p322, %p323
      %p325 = scmp.ne.s32.totalorder %s317, %s320
      %p326 = scmp.eq.s32.totalorder %s31, 0
      %p327 = por %p325, %p326
      %p328 = scmp.ne.s32.totalorder %s317, %s320
      %p329 = scmp.eq.s32.totalorder %s36, 1
      %p330 = por %p328, %p329
      %p331 = scmp.ne.s32.totalorder %s320, %s321
      %p332 = scmp.eq.s32.totalorder %s36, 0
      %p333 = por %p331, %p332
      %p334 = scmp.ne.s32.totalorder %s320, %s321
      %p335 = scmp.eq.s32.totalorder %s37, 1
      %p336 = por %p334, %p335
      %p338 = scmp.ne.s32.totalorder %s321, %s337
      %p339 = scmp.eq.s32.totalorder %s37, 0
      %p340 = por %p338, %p339
      %s341 = ssub.s32 %s31, %s38
      %p342 = scmp.eq.s32.totalorder %s341, 0
      %s344 = sadd.s32 %s343, 1
      %s345 = scalar_select %p342, %s343, %s344
      %p348 = pneg %p342
      %p349 = scmp.eq.s32.totalorder %s31, 1
      %p350 = por %p348, %p349
      %p351 = scmp.ne.s32.totalorder %s343, %s346
      %p352 = scmp.eq.s32.totalorder %s31, 0
      %p353 = por %p351, %p352
      %p354 = scmp.ne.s32.totalorder %s343, %s346
      %p355 = scmp.eq.s32.totalorder %s36, 1
      %p356 = por %p354, %p355
      %p357 = scmp.ne.s32.totalorder %s346, %s347
      %p358 = scmp.eq.s32.totalorder %s36, 0
      %p359 = por %p357, %p358
      %p360 = scmp.ne.s32.totalorder %s346, %s347
      %p361 = scmp.eq.s32.totalorder %s37, 1
      %p362 = por %p360, %p361
      %p364 = scmp.ne.s32.totalorder %s347, %s363
      %p365 = scmp.eq.s32.totalorder %s37, 0
      %p366 = por %p364, %p365
      %s367 = ssub.s32 %s31, %s38
      %p368 = scmp.eq.s32.totalorder %s367, 0
      %s370 = sadd.s32 %s369, 1
      %s371 = scalar_select %p368, %s369, %s370
      %p374 = pneg %p368
      %p375 = scmp.eq.s32.totalorder %s31, 1
      %p376 = por %p374, %p375
      %p377 = scmp.ne.s32.totalorder %s369, %s372
      %p378 = scmp.eq.s32.totalorder %s31, 0
      %p379 = por %p377, %p378
      %p380 = scmp.ne.s32.totalorder %s369, %s372
      %p381 = scmp.eq.s32.totalorder %s36, 1
      %p382 = por %p380, %p381
      %p383 = scmp.ne.s32.totalorder %s372, %s373
      %p384 = scmp.eq.s32.totalorder %s36, 0
      %p385 = por %p383, %p384
      %p386 = scmp.ne.s32.totalorder %s372, %s373
      %p387 = scmp.eq.s32.totalorder %s37, 1
      %p388 = por %p386, %p387
      %p390 = scmp.ne.s32.totalorder %s373, %s389
      %p391 = scmp.eq.s32.totalorder %s37, 0
      %p392 = por %p390, %p391
      %s393 = ssub.s32 %s31, %s38
      %p394 = scmp.eq.s32.totalorder %s393, 0
      %s396 = sadd.s32 %s395, 1
      %s397 = scalar_select %p394, %s395, %s396
      %p400 = pneg %p394
      %p401 = scmp.eq.s32.totalorder %s31, 1
      %p402 = por %p400, %p401
      %p403 = scmp.ne.s32.totalorder %s395, %s398
      %p404 = scmp.eq.s32.totalorder %s31, 0
      %p405 = por %p403, %p404
      %p406 = scmp.ne.s32.totalorder %s395, %s398
      %p407 = scmp.eq.s32.totalorder %s36, 1
      %p408 = por %p406, %p407
      %p409 = scmp.ne.s32.totalorder %s398, %s399
      %p410 = scmp.eq.s32.totalorder %s36, 0
      %p411 = por %p409, %p410
      %p412 = scmp.ne.s32.totalorder %s398, %s399
      %p413 = scmp.eq.s32.totalorder %s37, 1
      %p414 = por %p412, %p413
      %p416 = scmp.ne.s32.totalorder %s399, %s415
      %p417 = scmp.eq.s32.totalorder %s37, 0
      %p418 = por %p416, %p417
      %s419 = ssub.s32 %s31, %s38
      %p420 = scmp.eq.s32.totalorder %s419, 0
      %s422 = sadd.s32 %s421, 1
      %s423 = scalar_select %p420, %s421, %s422
      %p426 = pneg %p420
      %p427 = scmp.eq.s32.totalorder %s31, 1
      %p428 = por %p426, %p427
      %p429 = scmp.ne.s32.totalorder %s421, %s424
      %p430 = scmp.eq.s32.totalorder %s31, 0
      %p431 = por %p429, %p430
      %p432 = scmp.ne.s32.totalorder %s421, %s424
      %p433 = scmp.eq.s32.totalorder %s36, 1
      %p434 = por %p432, %p433
      %p435 = scmp.ne.s32.totalorder %s424, %s425
      %p436 = scmp.eq.s32.totalorder %s36, 0
      %p437 = por %p435, %p436
      %p438 = scmp.ne.s32.totalorder %s424, %s425
      %p439 = scmp.eq.s32.totalorder %s37, 1
      %p440 = por %p438, %p439
      %p442 = scmp.ne.s32.totalorder %s425, %s441
      %p443 = scmp.eq.s32.totalorder %s37, 0
      %p444 = por %p442, %p443
      %s445 = ssub.s32 %s31, %s38
      %p446 = scmp.eq.s32.totalorder %s445, 0
      %s448 = sadd.s32 %s447, 1
      %s449 = scalar_select %p446, %s447, %s448
      %p452 = pneg %p446
      %p453 = scmp.eq.s32.totalorder %s31, 1
      %p454 = por %p452, %p453
      %p455 = scmp.ne.s32.totalorder %s447, %s450
      %p456 = scmp.eq.s32.totalorder %s31, 0
      %p457 = por %p455, %p456
      %p458 = scmp.ne.s32.totalorder %s447, %s450
      %p459 = scmp.eq.s32.totalorder %s36, 1
      %p460 = por %p458, %p459
      %p461 = scmp.ne.s32.totalorder %s450, %s451
      %p462 = scmp.eq.s32.totalorder %s36, 0
      %p463 = por %p461, %p462
      %p464 = scmp.ne.s32.totalorder %s450, %s451
      %p465 = scmp.eq.s32.totalorder %s37, 1
      %p466 = por %p464, %p465
      %p468 = scmp.ne.s32.totalorder %s451, %s467
      %p469 = scmp.eq.s32.totalorder %s37, 0
      %p470 = por %p468, %p469
      %s471 = ssub.s32 %s31, %s38
      %p472 = scmp.eq.s32.totalorder %s471, 0
      %s474 = sadd.s32 %s473, 1
      %s475 = scalar_select %p472, %s473, %s474
      %p478 = pneg %p472
      %p479 = scmp.eq.s32.totalorder %s31, 1
      %p480 = por %p478, %p479
      %p481 = scmp.ne.s32.totalorder %s473, %s476
      %p482 = scmp.eq.s32.totalorder %s31, 0
      %p483 = por %p481, %p482
      %p484 = scmp.ne.s32.totalorder %s473, %s476
      %p485 = scmp.eq.s32.totalorder %s36, 1
      %p486 = por %p484, %p485
      %p487 = scmp.ne.s32.totalorder %s476, %s477
      %p488 = scmp.eq.s32.totalorder %s36, 0
      %p489 = por %p487, %p488
      %p490 = scmp.ne.s32.totalorder %s476, %s477
      %p491 = scmp.eq.s32.totalorder %s37, 1
      %p492 = por %p490, %p491
      %p494 = scmp.ne.s32.totalorder %s477, %s493
      %p495 = scmp.eq.s32.totalorder %s37, 0
      %p496 = por %p494, %p495
      %s497 = ssub.s32 %s31, %s38
      %p498 = scmp.eq.s32.totalorder %s497, 0
      %s500 = sadd.s32 %s499, 1
      %s501 = scalar_select %p498, %s499, %s500
      %p504 = pneg %p498
      %p505 = scmp.eq.s32.totalorder %s31, 1
      %p506 = por %p504, %p505
      %p507 = scmp.ne.s32.totalorder %s499, %s502
      %p508 = scmp.eq.s32.totalorder %s31, 0
      %p509 = por %p507, %p508
      %p510 = scmp.ne.s32.totalorder %s499, %s502
      %p511 = scmp.eq.s32.totalorder %s36, 1
      %p512 = por %p510, %p511
      %p513 = scmp.ne.s32.totalorder %s502, %s503
      %p514 = scmp.eq.s32.totalorder %s36, 0
      %p515 = por %p513, %p514
      %p516 = scmp.ne.s32.totalorder %s502, %s503
      %p517 = scmp.eq.s32.totalorder %s37, 1
      %p518 = por %p516, %p517
      %p520 = scmp.ne.s32.totalorder %s503, %s519
      %p521 = scmp.eq.s32.totalorder %s37, 0
      %p522 = por %p520, %p521
      %s523 = ssub.s32 %s31, %s38
      %p524 = scmp.eq.s32.totalorder %s523, 0
      %s526 = sadd.s32 %s525, 1
      %s527 = scalar_select %p524, %s525, %s526
      %p530 = pneg %p524
      %p531 = scmp.eq.s32.totalorder %s31, 1
      %p532 = por %p530, %p531
      %p533 = scmp.ne.s32.totalorder %s525, %s528
      %p534 = scmp.eq.s32.totalorder %s31, 0
      %p535 = por %p533, %p534
      %p536 = scmp.ne.s32.totalorder %s525, %s528
      %p537 = scmp.eq.s32.totalorder %s36, 1
      %p538 = por %p536, %p537
      %p539 = scmp.ne.s32.totalorder %s528, %s529
      %p540 = scmp.eq.s32.totalorder %s36, 0
      %p541 = por %p539, %p540
      %p542 = scmp.ne.s32.totalorder %s528, %s529
      %p543 = scmp.eq.s32.totalorder %s37, 1
      %p544 = por %p542, %p543
      %p546 = scmp.ne.s32.totalorder %s529, %s545
      %p547 = scmp.eq.s32.totalorder %s37, 0
      %p548 = por %p546, %p547
      %s549 = ssub.s32 %s31, %s38
      %p550 = scmp.eq.s32.totalorder %s549, 0
      %s552 = sadd.s32 %s551, 1
      %s553 = scalar_select %p550, %s551, %s552
      %p556 = pneg %p550
      %p557 = scmp.eq.s32.totalorder %s31, 1
      %p558 = por %p556, %p557
      %p559 = scmp.ne.s32.totalorder %s551, %s554
      %p560 = scmp.eq.s32.totalorder %s31, 0
      %p561 = por %p559, %p560
      %p562 = scmp.ne.s32.totalorder %s551, %s554
      %p563 = scmp.eq.s32.totalorder %s36, 1
      %p564 = por %p562, %p563
      %p565 = scmp.ne.s32.totalorder %s554, %s555
      %p566 = scmp.eq.s32.totalorder %s36, 0
      %p567 = por %p565, %p566
      %p568 = scmp.ne.s32.totalorder %s554, %s555
      %p569 = scmp.eq.s32.totalorder %s37, 1
      %p570 = por %p568, %p569
      %p572 = scmp.ne.s32.totalorder %s555, %s571
      %p573 = scmp.eq.s32.totalorder %s37, 0
      %p574 = por %p572, %p573
      %s575 = ssub.s32 %s31, %s38
      %p576 = scmp.eq.s32.totalorder %s575, 0
      %s578 = sadd.s32 %s577, 1
      %s579 = scalar_select %p576, %s577, %s578
      %p582 = pneg %p576
      %p583 = scmp.eq.s32.totalorder %s31, 1
      %p584 = por %p582, %p583
      %p585 = scmp.ne.s32.totalorder %s577, %s580
      %p586 = scmp.eq.s32.totalorder %s31, 0
      %p587 = por %p585, %p586
      %p588 = scmp.ne.s32.totalorder %s577, %s580
      %p589 = scmp.eq.s32.totalorder %s36, 1
      %p590 = por %p588, %p589
      %p591 = scmp.ne.s32.totalorder %s580, %s581
      %p592 = scmp.eq.s32.totalorder %s36, 0
      %p593 = por %p591, %p592
      %p594 = scmp.ne.s32.totalorder %s580, %s581
      %p595 = scmp.eq.s32.totalorder %s37, 1
      %p596 = por %p594, %p595
      %p598 = scmp.ne.s32.totalorder %s581, %s597
      %p599 = scmp.eq.s32.totalorder %s37, 0
      %p600 = por %p598, %p599
      %s602 = sadd.s32 %s601, 1
      %p605 = scmp.eq.s32.totalorder %s31, 1
      %p606 = scmp.ne.s32.totalorder %s601, %s603
      %p607 = scmp.eq.s32.totalorder %s31, 0
      %p608 = por %p606, %p607
      %p609 = scmp.ne.s32.totalorder %s601, %s603
      %p610 = scmp.eq.s32.totalorder %s36, 1
      %p611 = por %p609, %p610
      %p612 = scmp.ne.s32.totalorder %s603, %s604
      %p613 = scmp.eq.s32.totalorder %s36, 0
      %p614 = por %p612, %p613
      %p615 = scmp.ne.s32.totalorder %s603, %s604
      %p616 = scmp.eq.s32.totalorder %s37, 1
      %p617 = por %p615, %p616
      %p619 = scmp.ne.s32.totalorder %s604, %s618
      %p620 = scmp.eq.s32.totalorder %s37, 0
      %p621 = por %p619, %p620
      %p622 = scmp.le.s32.totalorder 1, %s31
      %p623 = scmp.lt.s32.totalorder %s31, 3
      %p624 = pnand %p622, %p623
      %p625 = pneg %p624
      // Predicated region
      $region9: #{decoder_forward.1} parent=5 // pred_check
        _
      $region10: #{decoder_forward.1} parent=5 // pred_check_branch
        %627 = sbr.rel (%p624) target = $region12
      $region11: #{decoder_forward.1} parent=5 // pred_region
        %s628 = ssub.s32 %s31, 1
        // Predicated region
        $region13: #{decoder_forward.1} parent=11 // pred_check
          %p629 = pneg %p52
        $region14: #{decoder_forward.1} parent=11 // pred_check_branch
          %631 = sbr.rel (%p629) target = $region16
        $region15: #{decoder_forward.1} parent=11 // pred_region
          %633 = vsyncadd [#allocation4], 0
          %s634 = sshll.u32 %s0, 4
          %s635 = int_to_ptr.hbm [resolvable:$true] %s634
          %s636 = sshll.u32 [#allocation3], 4
          %s637 = int_to_ptr.vmem [resolvable:$true] %s636
          %642 = dma.hbm_to_vmem [thread:$0]  %s635, 256, %s637, [#allocation4], 128, 128, 8
        $region16: #{decoder_forward.1} parent=11 // pred_fallthru
          _
        // Predicated region
        $region17: #{decoder_forward.1} parent=11 // pred_check
          %p643 = pneg %p73
        $region18: #{decoder_forward.1} parent=11 // pred_check_branch
          %645 = sbr.rel (%p643) target = $region20
        $region19: #{decoder_forward.1} parent=11 // pred_region
          %647 = vsyncadd [#allocation7], 0
          %s648 = sshll.u32 %s1, 4
          %s649 = int_to_ptr.hbm [resolvable:$true] %s648
          %s650 = sshll.u32 [#allocation6], 4
          %s651 = int_to_ptr.vmem [resolvable:$true] %s650
          %656 = dma.hbm_to_vmem [thread:$0]  %s649, 512, %s651, [#allocation7], 128, 128, 8
        $region20: #{decoder_forward.1} parent=11 // pred_fallthru
          _
      $region12: #{decoder_forward.1} parent=5 // pred_fallthru
        _
      %p657 = scmp.lt.s32.totalorder %s31, 2
      // Predicated region
      $region21: #{decoder_forward.1} parent=5 // pred_check
        %p658 = pneg %p657
      $region22: #{decoder_forward.1} parent=5 // pred_check_branch
        %660 = sbr.rel (%p658) target = $region24
      $region23: #{decoder_forward.1} parent=5 // pred_region
        // Predicated region
        $region25: #{decoder_forward.1} parent=23 // pred_check
          %p661 = pneg %p93
        $region26: #{decoder_forward.1} parent=23 // pred_check_branch
          %663 = sbr.rel (%p661) target = $region28
        $region27: #{decoder_forward.1} parent=23 // pred_region
          %p664 = scmp.lt.s32.totalorder %s31, 1
          %s665 = scalar_select %p664, %s31, 1
          %s666 = smul.addr %s665, 4
          %s667 = smul.addr %s666, 8
          %s668 = scalar_lea.vmem %s2, %s667
        $region28: #{decoder_forward.1} parent=23 // pred_fallthru
          _
        // Predicated region
        $region29: #{decoder_forward.1} parent=23 // pred_check
          %p669 = pneg %p119
        $region30: #{decoder_forward.1} parent=23 // pred_check_branch
          %671 = sbr.rel (%p669) target = $region32
        $region31: #{decoder_forward.1} parent=23 // pred_region
          %s672 = sand.u32 %s31, 1
          %s673 = scalar_lea.sflag [#allocation4], %s672
          %s674 = sand.u32 %s109, 1
          %s675 = scalar_lea.vmem [#allocation8], %s674
          %677 = vsyncadd %s673, 0
          %s678 = scalar_lea.hbm %s3, %s31
          %s680 = sshll.u32 %s678, 4
          %s681 = int_to_ptr.hbm [resolvable:$true] %s680
          %s682 = sshll.u32 %s675, 4
          %s683 = int_to_ptr.vmem [resolvable:$true] %s682
          %685 = dma.hbm_to_vmem [thread:$0]  %s681, 16, %s683, %s673
        $region32: #{decoder_forward.1} parent=23 // pred_fallthru
          _
        // Predicated region
        $region33: #{decoder_forward.1} parent=23 // pred_check
          %p686 = pneg %p145
        $region34: #{decoder_forward.1} parent=23 // pred_check_branch
          %688 = sbr.rel (%p686) target = $region36
        $region35: #{decoder_forward.1} parent=23 // pred_region
          %p689 = scmp.lt.s32.totalorder %s31, 1
          %s690 = scalar_select %p689, %s31, 1
          %s691 = smul.addr %s690, 4
          %s692 = smul.addr %s691, 8
          %s693 = scalar_lea.vmem %s4, %s692
        $region36: #{decoder_forward.1} parent=23 // pred_fallthru
          _
        // Predicated region
        $region37: #{decoder_forward.1} parent=23 // pred_check
          %p694 = pneg %p171
        $region38: #{decoder_forward.1} parent=23 // pred_check_branch
          %696 = sbr.rel (%p694) target = $region40
        $region39: #{decoder_forward.1} parent=23 // pred_region
          %p697 = scmp.lt.s32.totalorder %s31, 1
          %s698 = scalar_select %p697, %s31, 1
          %s699 = scalar_lea.vmem %s5, %s698
        $region40: #{decoder_forward.1} parent=23 // pred_fallthru
          _
        // Predicated region
        $region41: #{decoder_forward.1} parent=23 // pred_check
          %p700 = pneg %p197
        $region42: #{decoder_forward.1} parent=23 // pred_check_branch
          %702 = sbr.rel (%p700) target = $region44
        $region43: #{decoder_forward.1} parent=23 // pred_region
          %p703 = scmp.lt.s32.totalorder %s31, 1
          %s704 = scalar_select %p703, %s31, 1
          %s705 = smul.addr %s704, 4
          %s706 = smul.addr %s705, 8
          %s707 = scalar_lea.vmem %s6, %s706
        $region44: #{decoder_forward.1} parent=23 // pred_fallthru
          _
        // Predicated region
        $region45: #{decoder_forward.1} parent=23 // pred_check
          %p708 = pneg %p223
        $region46: #{decoder_forward.1} parent=23 // pred_check_branch
          %710 = sbr.rel (%p708) target = $region48
        $region47: #{decoder_forward.1} parent=23 // pred_region
          %s711 = sand.u32 %s31, 1
          %s712 = scalar_lea.sflag [#allocation4], %s711
          %s713 = sand.u32 %s213, 1
          %s714 = scalar_lea.vmem [#allocation9], %s713
          %716 = vsyncadd %s712, 0
          %s717 = scalar_lea.hbm %s7, %s31
          %s719 = sshll.u32 %s717, 4
          %s720 = int_to_ptr.hbm [resolvable:$true] %s719
          %s721 = sshll.u32 %s714, 4
          %s722 = int_to_ptr.vmem [resolvable:$true] %s721
          %724 = dma.hbm_to_vmem [thread:$0]  %s720, 16, %s722, %s712
        $region48: #{decoder_forward.1} parent=23 // pred_fallthru
          _
        // Predicated region
        $region49: #{decoder_forward.1} parent=23 // pred_check
          %p725 = pneg %p249
        $region50: #{decoder_forward.1} parent=23 // pred_check_branch
          %727 = sbr.rel (%p725) target = $region52
        $region51: #{decoder_forward.1} parent=23 // pred_region
          %p728 = scmp.lt.s32.totalorder %s31, 1
          %s729 = scalar_select %p728, %s31, 1
          %s730 = smul.addr %s729, 4
          %s731 = smul.addr %s730, 8
          %s732 = scalar_lea.vmem %s8, %s731
        $region52: #{decoder_forward.1} parent=23 // pred_fallthru
          _
        // Predicated region
        $region53: #{decoder_forward.1} parent=23 // pred_check
          %p733 = pneg %p275
        $region54: #{decoder_forward.1} parent=23 // pred_check_branch
          %735 = sbr.rel (%p733) target = $region56
        $region55: #{decoder_forward.1} parent=23 // pred_region
          %p736 = scmp.lt.s32.totalorder %s31, 1
          %s737 = scalar_select %p736, %s31, 1
          %s738 = scalar_lea.vmem %s9, %s737
        $region56: #{decoder_forward.1} parent=23 // pred_fallthru
          _
        // Predicated region
        $region57: #{decoder_forward.1} parent=23 // pred_check
          %p739 = pneg %p301
        $region58: #{decoder_forward.1} parent=23 // pred_check_branch
          %741 = sbr.rel (%p739) target = $region60
        $region59: #{decoder_forward.1} parent=23 // pred_region
          %p742 = scmp.lt.s32.totalorder %s31, 1
          %s743 = scalar_select %p742, %s31, 1
          %s744 = smul.addr %s743, 4
          %s745 = smul.addr %s744, 8
          %s746 = scalar_lea.vmem %s10, %s745
        $region60: #{decoder_forward.1} parent=23 // pred_fallthru
          _
        // Predicated region
        $region61: #{decoder_forward.1} parent=23 // pred_check
          %p747 = pneg %p327
        $region62: #{decoder_forward.1} parent=23 // pred_check_branch
          %749 = sbr.rel (%p747) target = $region64
        $region63: #{decoder_forward.1} parent=23 // pred_region
          %p750 = scmp.lt.s32.totalorder %s31, 1
          %s751 = scalar_select %p750, %s31, 1
          %s752 = scalar_lea.vmem %s11, %s751
        $region64: #{decoder_forward.1} parent=23 // pred_fallthru
          _
        // Predicated region
        $region65: #{decoder_forward.1} parent=23 // pred_check
          %p753 = pneg %p353
        $region66: #{decoder_forward.1} parent=23 // pred_check_branch
          %755 = sbr.rel (%p753) target = $region68
        $region67: #{decoder_forward.1} parent=23 // pred_region
          %s756 = sand.u32 %s31, 1
          %s757 = scalar_lea.sflag [#allocation4], %s756
          %s758 = sand.u32 %s343, 1
          %s759 = smul.addr %s758, 32
          %s760 = scalar_lea.vmem [#allocation10], %s759
          %762 = vsyncadd %s757, 0
          %s763 = smul.addr %s31, 4
          %s764 = smul.addr %s763, 8
          %s765 = scalar_lea.hbm %s12, %s764
          %s766 = sshll.u32 %s765, 4
          %s767 = int_to_ptr.hbm [resolvable:$true] %s766
          %s768 = sshll.u32 %s760, 4
          %s769 = int_to_ptr.vmem [resolvable:$true] %s768
          %774 = dma.hbm_to_vmem [thread:$0]  %s767, 512, %s769, %s757, 128, 128, 8
        $region68: #{decoder_forward.1} parent=23 // pred_fallthru
          _
        // Predicated region
        $region69: #{decoder_forward.1} parent=23 // pred_check
          %p775 = pneg %p379
        $region70: #{decoder_forward.1} parent=23 // pred_check_branch
          %777 = sbr.rel (%p775) target = $region72
        $region71: #{decoder_forward.1} parent=23 // pred_region
          %p778 = scmp.lt.s32.totalorder %s31, 1
          %s779 = scalar_select %p778, %s31, 1
          %s780 = scalar_lea.vmem %s13, %s779
        $region72: #{decoder_forward.1} parent=23 // pred_fallthru
          _
        // Predicated region
        $region73: #{decoder_forward.1} parent=23 // pred_check
          %p781 = pneg %p405
        $region74: #{decoder_forward.1} parent=23 // pred_check_branch
          %783 = sbr.rel (%p781) target = $region76
        $region75: #{decoder_forward.1} parent=23 // pred_region
          %p784 = scmp.lt.s32.totalorder %s31, 1
          %s785 = scalar_select %p784, %s31, 1
          %s786 = smul.addr %s785, 16
          %s787 = smul.addr %s786, 8
          %s788 = scalar_lea.vmem %s14, %s787
        $region76: #{decoder_forward.1} parent=23 // pred_fallthru
          _
        // Predicated region
        $region77: #{decoder_forward.1} parent=23 // pred_check
          %p789 = pneg %p431
        $region78: #{decoder_forward.1} parent=23 // pred_check_branch
          %791 = sbr.rel (%p789) target = $region80
        $region79: #{decoder_forward.1} parent=23 // pred_region
          %p792 = scmp.lt.s32.totalorder %s31, 1
          %s793 = scalar_select %p792, %s31, 1
          %s794 = scalar_lea.vmem %s15, %s793
        $region80: #{decoder_forward.1} parent=23 // pred_fallthru
          _
        // Predicated region
        $region81: #{decoder_forward.1} parent=23 // pred_check
          %p795 = pneg %p457
        $region82: #{decoder_forward.1} parent=23 // pred_check_branch
          %797 = sbr.rel (%p795) target = $region84
        $region83: #{decoder_forward.1} parent=23 // pred_region
          %p798 = scmp.lt.s32.totalorder %s31, 1
          %s799 = scalar_select %p798, %s31, 1
          %s800 = scalar_lea.vmem %s16, %s799
        $region84: #{decoder_forward.1} parent=23 // pred_fallthru
          _
        // Predicated region
        $region85: #{decoder_forward.1} parent=23 // pred_check
          %p801 = pneg %p483
        $region86: #{decoder_forward.1} parent=23 // pred_check_branch
          %803 = sbr.rel (%p801) target = $region88
        $region87: #{decoder_forward.1} parent=23 // pred_region
          %p804 = scmp.lt.s32.totalorder %s31, 1
          %s805 = scalar_select %p804, %s31, 1
          %s806 = scalar_lea.vmem %s17, %s805
        $region88: #{decoder_forward.1} parent=23 // pred_fallthru
          _
        // Predicated region
        $region89: #{decoder_forward.1} parent=23 // pred_check
          %p807 = pneg %p509
        $region90: #{decoder_forward.1} parent=23 // pred_check_branch
          %809 = sbr.rel (%p807) target = $region92
        $region91: #{decoder_forward.1} parent=23 // pred_region
          %s810 = sand.u32 %s31, 1
          %s811 = scalar_lea.sflag [#allocation4], %s810
          %s812 = sand.u32 %s499, 1
          %s813 = scalar_lea.vmem [#allocation11], %s812
          %815 = vsyncadd %s811, 0
          %s816 = scalar_lea.hbm %s18, %s31
          %s818 = sshll.u32 %s816, 4
          %s819 = int_to_ptr.hbm [resolvable:$true] %s818
          %s820 = sshll.u32 %s813, 4
          %s821 = int_to_ptr.vmem [resolvable:$true] %s820
          %823 = dma.hbm_to_vmem [thread:$0]  %s819, 16, %s821, %s811
        $region92: #{decoder_forward.1} parent=23 // pred_fallthru
          _
        // Predicated region
        $region93: #{decoder_forward.1} parent=23 // pred_check
          %p824 = pneg %p535
        $region94: #{decoder_forward.1} parent=23 // pred_check_branch
          %826 = sbr.rel (%p824) target = $region96
        $region95: #{decoder_forward.1} parent=23 // pred_region
          %s827 = sand.u32 %s31, 1
          %s828 = scalar_lea.sflag [#allocation4], %s827
          %s829 = sand.u32 %s525, 1
          %s830 = scalar_lea.vmem [#allocation12], %s829
          %832 = vsyncadd %s828, 0
          %s833 = scalar_lea.hbm %s19, %s31
          %s835 = sshll.u32 %s833, 4
          %s836 = int_to_ptr.hbm [resolvable:$true] %s835
          %s837 = sshll.u32 %s830, 4
          %s838 = int_to_ptr.vmem [resolvable:$true] %s837
          %840 = dma.hbm_to_vmem [thread:$0]  %s836, 16, %s838, %s828
        $region96: #{decoder_forward.1} parent=23 // pred_fallthru
          _
        // Predicated region
        $region97: #{decoder_forward.1} parent=23 // pred_check
          %p841 = pneg %p561
        $region98: #{decoder_forward.1} parent=23 // pred_check_branch
          %843 = sbr.rel (%p841) target = $region100
        $region99: #{decoder_forward.1} parent=23 // pred_region
          %p844 = scmp.lt.s32.totalorder %s31, 1
          %s845 = scalar_select %p844, %s31, 1
          %s846 = scalar_lea.vmem %s20, %s845
        $region100: #{decoder_forward.1} parent=23 // pred_fallthru
          _
        // Predicated region
        $region101: #{decoder_forward.1} parent=23 // pred_check
          %p847 = pneg %p587
        $region102: #{decoder_forward.1} parent=23 // pred_check_branch
          %849 = sbr.rel (%p847) target = $region104
        $region103: #{decoder_forward.1} parent=23 // pred_region
          %p850 = scmp.lt.s32.totalorder %s31, 1
          %s851 = scalar_select %p850, %s31, 1
          %s852 = scalar_lea.vmem %s21, %s851
        $region104: #{decoder_forward.1} parent=23 // pred_fallthru
          _
      $region24: #{decoder_forward.1} parent=5 // pred_fallthru
        _
      %p853 = scmp.le.s32.totalorder 1, %s31
      %p854 = scmp.lt.s32.totalorder %s31, 3
      %p855 = pnand %p853, %p854
      %p856 = pneg %p855
      // Predicated region
      $region105: #{decoder_forward.1} parent=5 // pred_check
        _
      $region106: #{decoder_forward.1} parent=5 // pred_check_branch
        %858 = sbr.rel (%p855) target = $region108
      $region107: #{decoder_forward.1} parent=5 // pred_region
        %s859 = ssub.s32 %s31, 1
        // Predicated region
        $region109: #{decoder_forward.1} parent=107 // pred_check
          %p860 = pneg %p52
        $region110: #{decoder_forward.1} parent=107 // pred_check_branch
          %862 = sbr.rel (%p860) target = $region112
        $region111: #{decoder_forward.1} parent=107 // pred_region
          %864 = dma.done [#allocation4], 256
        $region112: #{decoder_forward.1} parent=107 // pred_fallthru
          _
        // Predicated region
        $region113: #{decoder_forward.1} parent=107 // pred_check
          %p865 = pneg %p73
        $region114: #{decoder_forward.1} parent=107 // pred_check_branch
          %867 = sbr.rel (%p865) target = $region116
        $region115: #{decoder_forward.1} parent=107 // pred_region
          %869 = dma.done [#allocation7], 512
        $region116: #{decoder_forward.1} parent=107 // pred_fallthru
          _
        %s870 = sand.u32 %s36, 1
        %s871 = scalar_lea.sflag [#allocation4], %s870
        %s872 = sand.u32 %s112, 1
        %s873 = scalar_lea.vmem [#allocation8], %s872
        // Predicated region
        $region117: #{decoder_forward.1} parent=107 // pred_check
          %p874 = pneg %p125
        $region118: #{decoder_forward.1} parent=107 // pred_check_branch
          %876 = sbr.rel (%p874) target = $region120
        $region119: #{decoder_forward.1} parent=107 // pred_region
          %878 = dma.done %s871, 16
        $region120: #{decoder_forward.1} parent=107 // pred_fallthru
          _
        %s879 = sand.u32 %s36, 1
        %s880 = scalar_lea.sflag [#allocation4], %s879
        %s881 = sand.u32 %s216, 1
        %s882 = scalar_lea.vmem [#allocation9], %s881
        // Predicated region
        $region121: #{decoder_forward.1} parent=107 // pred_check
          %p883 = pneg %p229
        $region122: #{decoder_forward.1} parent=107 // pred_check_branch
          %885 = sbr.rel (%p883) target = $region124
        $region123: #{decoder_forward.1} parent=107 // pred_region
          %887 = dma.done %s880, 16
        $region124: #{decoder_forward.1} parent=107 // pred_fallthru
          _
        %s888 = sand.u32 %s36, 1
        %s889 = scalar_lea.sflag [#allocation4], %s888
        %s890 = sand.u32 %s346, 1
        %s891 = smul.addr %s890, 32
        %s892 = scalar_lea.vmem [#allocation10], %s891
        // Predicated region
        $region125: #{decoder_forward.1} parent=107 // pred_check
          %p893 = pneg %p359
        $region126: #{decoder_forward.1} parent=107 // pred_check_branch
          %895 = sbr.rel (%p893) target = $region128
        $region127: #{decoder_forward.1} parent=107 // pred_region
          %897 = dma.done %s889, 512
        $region128: #{decoder_forward.1} parent=107 // pred_fallthru
          _
        %s898 = sand.u32 %s36, 1
        %s899 = scalar_lea.sflag [#allocation4], %s898
        %s900 = sand.u32 %s502, 1
        %s901 = scalar_lea.vmem [#allocation11], %s900
        // Predicated region
        $region129: #{decoder_forward.1} parent=107 // pred_check
          %p902 = pneg %p515
        $region130: #{decoder_forward.1} parent=107 // pred_check_branch
          %904 = sbr.rel (%p902) target = $region132
        $region131: #{decoder_forward.1} parent=107 // pred_region
          %906 = dma.done %s899, 16
        $region132: #{decoder_forward.1} parent=107 // pred_fallthru
          _
        %s907 = sand.u32 %s36, 1
        %s908 = scalar_lea.sflag [#allocation4], %s907
        %s909 = sand.u32 %s528, 1
        %s910 = scalar_lea.vmem [#allocation12], %s909
        // Predicated region
        $region133: #{decoder_forward.1} parent=107 // pred_check
          %p911 = pneg %p541
        $region134: #{decoder_forward.1} parent=107 // pred_check_branch
          %913 = sbr.rel (%p911) target = $region136
        $region135: #{decoder_forward.1} parent=107 // pred_region
          %915 = dma.done %s908, 16
        $region136: #{decoder_forward.1} parent=107 // pred_fallthru
          _
        %p916 = pneg %p52
        %p917 = pneg %p49
        %p918 = pneg %p73
        %p919 = pneg %p70
        %p920 = scmp.lt.s32.totalorder %s36, 1
        %s921 = scalar_select %p920, %s36, 1
        %s922 = smul.addr %s921, 4
        %s923 = smul.addr %s922, 8
        %s924 = scalar_lea.vmem %s2, %s923
        %p925 = pneg %p99
        %p926 = pneg %p96
        %s927 = sand.u32 %s36, 1
        %s928 = scalar_lea.sflag [#allocation4], %s927
        %s929 = sand.u32 %s112, 1
        %s930 = scalar_lea.vmem [#allocation8], %s929
        %p931 = pneg %p125
        %p932 = pneg %p122
        %p933 = scmp.lt.s32.totalorder %s36, 1
        %s934 = scalar_select %p933, %s36, 1
        %s935 = smul.addr %s934, 4
        %s936 = smul.addr %s935, 8
        %s937 = scalar_lea.vmem %s4, %s936
        %p938 = pneg %p151
        %p939 = pneg %p148
        %p940 = scmp.lt.s32.totalorder %s36, 1
        %s941 = scalar_select %p940, %s36, 1
        %s942 = scalar_lea.vmem %s5, %s941
        %p943 = pneg %p177
        %p944 = pneg %p174
        %p945 = scmp.lt.s32.totalorder %s36, 1
        %s946 = scalar_select %p945, %s36, 1
        %s947 = smul.addr %s946, 4
        %s948 = smul.addr %s947, 8
        %s949 = scalar_lea.vmem %s6, %s948
        %p950 = pneg %p203
        %p951 = pneg %p200
        %s952 = sand.u32 %s36, 1
        %s953 = scalar_lea.sflag [#allocation4], %s952
        %s954 = sand.u32 %s216, 1
        %s955 = scalar_lea.vmem [#allocation9], %s954
        %p956 = pneg %p229
        %p957 = pneg %p226
        %p958 = scmp.lt.s32.totalorder %s36, 1
        %s959 = scalar_select %p958, %s36, 1
        %s960 = smul.addr %s959, 4
        %s961 = smul.addr %s960, 8
        %s962 = scalar_lea.vmem %s8, %s961
        %p963 = pneg %p255
        %p964 = pneg %p252
        %p965 = scmp.lt.s32.totalorder %s36, 1
        %s966 = scalar_select %p965, %s36, 1
        %s967 = scalar_lea.vmem %s9, %s966
        %p968 = pneg %p281
        %p969 = pneg %p278
        %p970 = scmp.lt.s32.totalorder %s36, 1
        %s971 = scalar_select %p970, %s36, 1
        %s972 = smul.addr %s971, 4
        %s973 = smul.addr %s972, 8
        %s974 = scalar_lea.vmem %s10, %s973
        %p975 = pneg %p307
        %p976 = pneg %p304
        %p977 = scmp.lt.s32.totalorder %s36, 1
        %s978 = scalar_select %p977, %s36, 1
        %s979 = scalar_lea.vmem %s11, %s978
        %p980 = pneg %p333
        %p981 = pneg %p330
        %s982 = sand.u32 %s36, 1
        %s983 = scalar_lea.sflag [#allocation4], %s982
        %s984 = sand.u32 %s346, 1
        %s985 = smul.addr %s984, 32
        %s986 = scalar_lea.vmem [#allocation10], %s985
        %p987 = pneg %p359
        %p988 = pneg %p356
        %p989 = scmp.lt.s32.totalorder %s36, 1
        %s990 = scalar_select %p989, %s36, 1
        %s991 = scalar_lea.vmem %s13, %s990
        %p992 = pneg %p385
        %p993 = pneg %p382
        %p994 = scmp.lt.s32.totalorder %s36, 1
        %s995 = scalar_select %p994, %s36, 1
        %s996 = smul.addr %s995, 16
        %s997 = smul.addr %s996, 8
        %s998 = scalar_lea.vmem %s14, %s997
        %p999 = pneg %p411
        %p1000 = pneg %p408
        %p1001 = scmp.lt.s32.totalorder %s36, 1
        %s1002 = scalar_select %p1001, %s36, 1
        %s1003 = scalar_lea.vmem %s15, %s1002
        %p1004 = pneg %p437
        %p1005 = pneg %p434
        %p1006 = scmp.lt.s32.totalorder %s36, 1
        %s1007 = scalar_select %p1006, %s36, 1
        %s1008 = scalar_lea.vmem %s16, %s1007
        %p1009 = pneg %p463
        %p1010 = pneg %p460
        %p1011 = scmp.lt.s32.totalorder %s36, 1
        %s1012 = scalar_select %p1011, %s36, 1
        %s1013 = scalar_lea.vmem %s17, %s1012
        %p1014 = pneg %p489
        %p1015 = pneg %p486
        %s1016 = sand.u32 %s36, 1
        %s1017 = scalar_lea.sflag [#allocation4], %s1016
        %s1018 = sand.u32 %s502, 1
        %s1019 = scalar_lea.vmem [#allocation11], %s1018
        %p1020 = pneg %p515
        %p1021 = pneg %p512
        %s1022 = sand.u32 %s36, 1
        %s1023 = scalar_lea.sflag [#allocation4], %s1022
        %s1024 = sand.u32 %s528, 1
        %s1025 = scalar_lea.vmem [#allocation12], %s1024
        %p1026 = pneg %p541
        %p1027 = pneg %p538
        %p1028 = scmp.lt.s32.totalorder %s36, 1
        %s1029 = scalar_select %p1028, %s36, 1
        %s1030 = scalar_lea.vmem %s20, %s1029
        %p1031 = pneg %p567
        %p1032 = pneg %p564
        %p1033 = scmp.lt.s32.totalorder %s36, 1
        %s1034 = scalar_select %p1033, %s36, 1
        %s1035 = scalar_lea.vmem %s21, %s1034
        %p1036 = pneg %p593
        %p1037 = pneg %p590
        %p1038 = pneg %p614
        %p1039 = pneg %p611
        %p1040 = scmp.lt.s32.totalorder %s36, 1
        %s1041 = scalar_select %p1040, %s36, 1
        %s1042 = smul.addr %s1041, 4
        %s1043 = smul.addr %s1042, 8
        %s1044 = scalar_lea.vmem %s2, %s1043
        %p1045 = scmp.lt.s32.totalorder %s36, 1
        %s1046 = scalar_select %p1045, %s36, 1
        %s1047 = smul.addr %s1046, 4
        %s1048 = smul.addr %s1047, 8
        %s1049 = scalar_lea.vmem %s4, %s1048
        %p1050 = scmp.lt.s32.totalorder %s36, 1
        %s1051 = scalar_select %p1050, %s36, 1
        %s1052 = scalar_lea.vmem %s5, %s1051
        %p1053 = scmp.lt.s32.totalorder %s36, 1
        %s1054 = scalar_select %p1053, %s36, 1
        %s1055 = smul.addr %s1054, 4
        %s1056 = smul.addr %s1055, 8
        %s1057 = scalar_lea.vmem %s6, %s1056
        %p1058 = scmp.lt.s32.totalorder %s36, 1
        %s1059 = scalar_select %p1058, %s36, 1
        %s1060 = smul.addr %s1059, 4
        %s1061 = smul.addr %s1060, 8
        %s1062 = scalar_lea.vmem %s8, %s1061
        %p1063 = scmp.lt.s32.totalorder %s36, 1
        %s1064 = scalar_select %p1063, %s36, 1
        %s1065 = scalar_lea.vmem %s9, %s1064
        %p1066 = scmp.lt.s32.totalorder %s36, 1
        %s1067 = scalar_select %p1066, %s36, 1
        %s1068 = smul.addr %s1067, 4
        %s1069 = smul.addr %s1068, 8
        %s1070 = scalar_lea.vmem %s10, %s1069
        %p1071 = scmp.lt.s32.totalorder %s36, 1
        %s1072 = scalar_select %p1071, %s36, 1
        %s1073 = scalar_lea.vmem %s11, %s1072
        %p1074 = scmp.lt.s32.totalorder %s36, 1
        %s1075 = scalar_select %p1074, %s36, 1
        %s1076 = scalar_lea.vmem %s13, %s1075
        %p1077 = scmp.lt.s32.totalorder %s36, 1
        %s1078 = scalar_select %p1077, %s36, 1
        %s1079 = smul.addr %s1078, 16
        %s1080 = smul.addr %s1079, 8
        %s1081 = scalar_lea.vmem %s14, %s1080
        %p1082 = scmp.lt.s32.totalorder %s36, 1
        %s1083 = scalar_select %p1082, %s36, 1
        %s1084 = scalar_lea.vmem %s15, %s1083
        %p1085 = scmp.lt.s32.totalorder %s36, 1
        %s1086 = scalar_select %p1085, %s36, 1
        %s1087 = scalar_lea.vmem %s16, %s1086
        %p1088 = scmp.lt.s32.totalorder %s36, 1
        %s1089 = scalar_select %p1088, %s36, 1
        %s1090 = scalar_lea.vmem %s17, %s1089
        %p1091 = scmp.lt.s32.totalorder %s36, 1
        %s1092 = scalar_select %p1091, %s36, 1
        %s1093 = scalar_lea.vmem %s20, %s1092
        %p1094 = scmp.lt.s32.totalorder %s36, 1
        %s1095 = scalar_select %p1094, %s36, 1
        %s1096 = scalar_lea.vmem %s21, %s1095
        %p1097 = scmp.eq.s32.totalorder %s36, 0
        // Predicated region
        $region137: #{decoder_forward.1} parent=107 // pred_check
          %p1098 = pneg %p1097
        $region138: #{decoder_forward.1} parent=107 // pred_check_branch
          %1100 = sbr.rel (%p1098) target = $region140
        $region139: #{decoder_forward.1} parent=107 // pred_region
          %v1101 = vld [vmem:[#allocation3] sm:$0xff]
          %v1102 = vld [vmem:[#allocation3 + $0x8] sm:$0xff]
          %vm1103 = vcmask 261120
          %1104 = vst.msk [vmem:[#allocation2] sm:$0xff] %vm1103, %v1101
          %1105 = vst.msk [vmem:[#allocation2 + $0x8] sm:$0xff] %vm1103, %v1102
        $region140: #{decoder_forward.1} parent=107 // pred_fallthru
          _
        %v1106 = vld [vmem:[#allocation2] sm:$0xff]
        %v1107 = vld [vmem:[#allocation2 + $0x8] sm:$0xff]
        %v1108 = vld [vmem:[#allocation6] sm:$0xff]
        %v1109 = vld [vmem:[#allocation6 + $0x8] sm:$0xff]
        %v1110 = vld [vmem:[#allocation6 + $0x10] sm:$0xff]
        %v1111 = vld [vmem:[#allocation6 + $0x18] sm:$0xff]
        %v1112 = vld [vmem:[%s1044] sm:$0xff]
        %v1113 = vld [vmem:[%s1044 + $0x8] sm:$0xff]
        %v1114 = vld [vmem:[%s1044 + $0x10] sm:$0xff]
        %v1115 = vld [vmem:[%s1044 + $0x18] sm:$0xff]
        %v1116 = vld [vmem:[%s873] sm:$0x1]
        %v1117 = vld [vmem:[%s1049] sm:$0xff]
        %v1118 = vld [vmem:[%s1049 + $0x8] sm:$0xff]
        %v1119 = vld [vmem:[%s1049 + $0x10] sm:$0xff]
        %v1120 = vld [vmem:[%s1049 + $0x18] sm:$0xff]
        %v1121 = vld [vmem:[%s1052] sm:$0x1]
        %v1122 = vld [vmem:[%s1057] sm:$0xff]
        %v1123 = vld [vmem:[%s1057 + $0x8] sm:$0xff]
        %v1124 = vld [vmem:[%s1057 + $0x10] sm:$0xff]
        %v1125 = vld [vmem:[%s1057 + $0x18] sm:$0xff]
        %v1126 = vld [vmem:[%s882] sm:$0x1]
        %v1127 = vld [vmem:[%s1062] sm:$0xff]
        %v1128 = vld [vmem:[%s1062 + $0x8] sm:$0xff]
        %v1129 = vld [vmem:[%s1062 + $0x10] sm:$0xff]
        %v1130 = vld [vmem:[%s1062 + $0x18] sm:$0xff]
        %v1131 = vld [vmem:[%s1065] sm:$0x1]
        %v1132 = vld [vmem:[%s1070] sm:$0xff]
        %v1133 = vld [vmem:[%s1070 + $0x8] sm:$0xff]
        %v1134 = vld [vmem:[%s1070 + $0x10] sm:$0xff]
        %v1135 = vld [vmem:[%s1070 + $0x18] sm:$0xff]
        %v1136 = vld [vmem:[%s1073] sm:$0x1]
        %v1137 = vld [vmem:[%s892] sm:$0xff]
        %v1138 = vld [vmem:[%s892 + $0x8] sm:$0xff]
        %v1139 = vld [vmem:[%s892 + $0x10] sm:$0xff]
        %v1140 = vld [vmem:[%s892 + $0x18] sm:$0xff]
        %v1141 = vld [vmem:[%s1076] sm:$0x1]
        %v1142 = vld [vmem:[%s1081] sm:$0xff]
        %v1143 = vld [vmem:[%s1081 + $0x8] sm:$0xff]
        %v1144 = vld [vmem:[%s1081 + $0x10] sm:$0xff]
        %v1145 = vld [vmem:[%s1081 + $0x18] sm:$0xff]
        %v1146 = vld [vmem:[%s1081 + $0x20] sm:$0xff]
        %v1147 = vld [vmem:[%s1081 + $0x28] sm:$0xff]
        %v1148 = vld [vmem:[%s1081 + $0x30] sm:$0xff]
        %v1149 = vld [vmem:[%s1081 + $0x38] sm:$0xff]
        %v1150 = vld [vmem:[%s1081 + $0x40] sm:$0xff]
        %v1151 = vld [vmem:[%s1081 + $0x48] sm:$0xff]
        %v1152 = vld [vmem:[%s1081 + $0x50] sm:$0xff]
        %v1153 = vld [vmem:[%s1081 + $0x58] sm:$0xff]
        %v1154 = vld [vmem:[%s1081 + $0x60] sm:$0xff]
        %v1155 = vld [vmem:[%s1081 + $0x68] sm:$0xff]
        %v1156 = vld [vmem:[%s1081 + $0x70] sm:$0xff]
        %v1157 = vld [vmem:[%s1081 + $0x78] sm:$0xff]
        %v1158 = vld [vmem:[%s1084] sm:$0x1]
        %v1160 = vperm.slane %v1116, 0
        %vm1162 = vcmask 261120
        %v1164 = vsel %vm1162, %v1106, 0
        %v1167 = vsel %vm1162, %v1107, 0
        %1169 = vmatpush.msra.mxu0 0.0
        %1170 = vmatpush.msra.mxu0 0.0
        %1171 = vmatpush.msra.mxu0 0.0
        %1172 = vmatpush.msra.mxu0 0.0
        %1173 = vmatpush.msra.mxu0 0.0
        %1174 = vmatpush.msra.mxu0 0.0
        %1175 = vmatpush.msra.mxu0 0.0
        %1176 = vmatpush.msra.mxu0 0.0
        %1177 = vmatpush.msra.mxu0 0.0
        %1178 = vmatpush.msra.mxu0 0.0
        %1179 = vmatpush.msra.mxu0 0.0
        %1180 = vmatpush.msra.mxu0 0.0
        %1181 = vmatpush.msra.mxu0 %v1115
        %1182 = vmatpush.msra.mxu0 %v1114
        %1183 = vmatpush.msra.mxu0 %v1113
        %1184 = vmatpush.msra.mxu0 %v1112
        %1185 = vmatmul.f32.gmra.mxu0 %v1164
        %v1186 = vpop.f32.mrf.mxu0
        %v1187 = vadd.f32 %v1160, %v1186
        %1188 = vmatmul.f32.gmra.mxu0 %v1167
        %v1189 = vpop.f32.mrf.mxu0
        %v1190 = vadd.f32 %v1160, %v1189
        %1191 = vdwg.mxu0
        %1193 = vrot.lane.b32.xlu0 %v1187, 120
        %v1194 = vpop.permute.xlu0 %1193
        %1196 = vrot.lane.b32.xlu0 %v1187, 112
        %v1197 = vpop.permute.xlu0 %1196
        %1199 = vrot.lane.b32.xlu0 %v1187, 104
        %v1200 = vpop.permute.xlu0 %1199
        %v1202 = vrot.slane %v1197, 4
        %vm1203 = vcmask 1047556
        %v1204 = vsel %vm1203, %v1202, %v1187
        %v1205 = vrot.slane %v1187, 4
        %v1206 = vsel %vm1203, %v1197, %v1205
        %v1208 = vunpack.c.l.s4 1983009808
        %v1209 = vunpack.c.0.s8 %v1208
        %v1210 = vperm.slane %v1204, %v1209
        %v1212 = vunpack.c.l.s4 1983009808
        %v1213 = vunpack.c.0.s8 %v1212
        %v1214 = vperm.slane %v1206, %v1213
        %v1215 = vrot.slane %v1200, 4
        %v1216 = vsel %vm1203, %v1215, %v1194
        %v1217 = vrot.slane %v1194, 4
        %v1218 = vsel %vm1203, %v1200, %v1217
        %v1220 = vunpack.c.l.s4 1983009808
        %v1221 = vunpack.c.0.s8 %v1220
        %v1222 = vperm.slane %v1216, %v1221
        %v1224 = vunpack.c.l.s4 1983009808
        %v1225 = vunpack.c.0.s8 %v1224
        %v1226 = vperm.slane %v1218, %v1225
        %v1227 = vrot.slane %v1222, 4
        %v1228 = vsel %vm1203, %v1227, %v1210
        %v1229 = vrot.slane %v1210, 4
        %v1230 = vsel %vm1203, %v1222, %v1229
        %v1232 = vunpack.c.l.s4 1934713408
        %v1233 = vunpack.c.0.s8 %v1232
        %v1234 = vperm.slane %v1228, %v1233
        %v1236 = vunpack.c.l.s4 1934713408
        %v1237 = vunpack.c.0.s8 %v1236
        %v1238 = vperm.slane %v1230, %v1237
        %v1239 = vrot.slane %v1226, 4
        %v1240 = vsel %vm1203, %v1239, %v1214
        %v1241 = vrot.slane %v1214, 4
        %v1242 = vsel %vm1203, %v1226, %v1241
        %v1244 = vunpack.c.l.s4 1934713408
        %v1245 = vunpack.c.0.s8 %v1244
        %v1246 = vperm.slane %v1240, %v1245
        %v1248 = vunpack.c.l.s4 1934713408
        %v1249 = vunpack.c.0.s8 %v1248
        %v1250 = vperm.slane %v1242, %v1249
        %v1251 = vrot.slane %v1234, 4
        %v1252 = vsel %vm1203, 0.0, %v1251
        %v1253 = vrot.slane %v1238, 4
        %v1254 = vsel %vm1203, 0.0, %v1253
        %v1255 = vrot.slane %v1246, 4
        %v1256 = vsel %vm1203, 0.0, %v1255
        %v1257 = vrot.slane %v1250, 4
        %v1258 = vsel %vm1203, 0.0, %v1257
        %v1259 = vsel %vm1203, %v1253, %v1234
        %v1261 = vunpack.c.l.s4 1983009808
        %v1262 = vunpack.c.0.s8 %v1261
        %v1263 = vperm.slane %v1259, %v1262
        %v1264 = vrot.slane %v1254, 4
        %v1265 = vsel %vm1203, %v1264, %v1252
        %v1267 = vunpack.c.l.s4 1983009808
        %v1268 = vunpack.c.0.s8 %v1267
        %v1269 = vperm.slane %v1265, %v1268
        %v1270 = vsel %vm1203, %v1257, %v1246
        %v1272 = vunpack.c.l.s4 1983009808
        %v1273 = vunpack.c.0.s8 %v1272
        %v1274 = vperm.slane %v1270, %v1273
        %v1275 = vrot.slane %v1258, 4
        %v1276 = vsel %vm1203, %v1275, %v1256
        %v1278 = vunpack.c.l.s4 1983009808
        %v1279 = vunpack.c.0.s8 %v1278
        %v1280 = vperm.slane %v1276, %v1279
        %v1281 = vrot.slane %v1269, 4
        %v1282 = vsel %vm1203, %v1281, %v1263
        %v1283 = vrot.slane %v1263, 4
        %v1284 = vsel %vm1203, %v1269, %v1283
        %v1286 = vunpack.c.l.s4 1934713408
        %v1287 = vunpack.c.0.s8 %v1286
        %v1288 = vperm.slane %v1282, %v1287
        %v1290 = vunpack.c.l.s4 1934713408
        %v1291 = vunpack.c.0.s8 %v1290
        %v1292 = vperm.slane %v1284, %v1291
        %v1293 = vrot.slane %v1280, 4
        %v1294 = vsel %vm1203, %v1293, %v1274
        %v1295 = vrot.slane %v1274, 4
        %v1296 = vsel %vm1203, %v1280, %v1295
        %v1298 = vunpack.c.l.s4 1934713408
        %v1299 = vunpack.c.0.s8 %v1298
        %v1300 = vperm.slane %v1294, %v1299
        %v1302 = vunpack.c.l.s4 1934713408
        %v1303 = vunpack.c.0.s8 %v1302
        %v1304 = vperm.slane %v1296, %v1303
        %v1305 = vrot.slane %v1300, 4
        %v1306 = vsel %vm1203, %v1305, %v1288
        %v1307 = vrot.slane %v1288, 4
        %v1308 = vsel %vm1203, %v1300, %v1307
        %v1309 = vrot.slane %v1304, 4
        %v1310 = vsel %vm1203, %v1309, %v1292
        %v1311 = vrot.slane %v1292, 4
        %v1312 = vsel %vm1203, %v1304, %v1311
        %1313 = vrot.lane.b32.xlu0 %v1187, 96
        %v1314 = vpop.permute.xlu0 %1313
        %1315 = vrot.lane.b32.xlu0 %v1194, 96
        %v1316 = vpop.permute.xlu0 %1315
        %1317 = vrot.lane.b32.xlu0 %v1197, 96
        %v1318 = vpop.permute.xlu0 %1317
        %1319 = vrot.lane.b32.xlu0 %v1200, 96
        %v1320 = vpop.permute.xlu0 %1319
        %v1325 = vrot.slane %v1318, 4
        %v1326 = vsel %vm1203, %v1325, %v1314
        %v1327 = vrot.slane %v1314, 4
        %v1328 = vsel %vm1203, %v1318, %v1327
        %v1330 = vunpack.c.l.s4 1983009808
        %v1331 = vunpack.c.0.s8 %v1330
        %v1332 = vperm.slane %v1326, %v1331
        %v1334 = vunpack.c.l.s4 1983009808
        %v1335 = vunpack.c.0.s8 %v1334
        %v1336 = vperm.slane %v1328, %v1335
        %v1337 = vrot.slane %v1320, 4
        %v1338 = vsel %vm1203, %v1337, %v1316
        %v1339 = vrot.slane %v1316, 4
        %v1340 = vsel %vm1203, %v1320, %v1339
        %v1342 = vunpack.c.l.s4 1983009808
        %v1343 = vunpack.c.0.s8 %v1342
        %v1344 = vperm.slane %v1338, %v1343
        %v1346 = vunpack.c.l.s4 1983009808
        %v1347 = vunpack.c.0.s8 %v1346
        %v1348 = vperm.slane %v1340, %v1347
        %v1349 = vrot.slane %v1344, 4
        %v1350 = vsel %vm1203, %v1349, %v1332
        %v1351 = vrot.slane %v1332, 4
        %v1352 = vsel %vm1203, %v1344, %v1351
        %v1354 = vunpack.c.l.s4 1934713408
        %v1355 = vunpack.c.0.s8 %v1354
        %v1356 = vperm.slane %v1350, %v1355
        %v1358 = vunpack.c.l.s4 1934713408
        %v1359 = vunpack.c.0.s8 %v1358
        %v1360 = vperm.slane %v1352, %v1359
        %v1361 = vrot.slane %v1348, 4
        %v1362 = vsel %vm1203, %v1361, %v1336
        %v1363 = vrot.slane %v1336, 4
        %v1364 = vsel %vm1203, %v1348, %v1363
        %v1366 = vunpack.c.l.s4 1934713408
        %v1367 = vunpack.c.0.s8 %v1366
        %v1368 = vperm.slane %v1362, %v1367
        %v1370 = vunpack.c.l.s4 1934713408
        %v1371 = vunpack.c.0.s8 %v1370
        %v1372 = vperm.slane %v1364, %v1371
        %v1373 = vrot.slane %v1356, 4
        %v1374 = vsel %vm1203, 0.0, %v1373
        %v1375 = vrot.slane %v1360, 4
        %v1376 = vsel %vm1203, 0.0, %v1375
        %v1377 = vrot.slane %v1368, 4
        %v1378 = vsel %vm1203, 0.0, %v1377
        %v1379 = vrot.slane %v1372, 4
        %v1380 = vsel %vm1203, 0.0, %v1379
        %v1381 = vsel %vm1203, %v1375, %v1356
        %v1383 = vunpack.c.l.s4 1983009808
        %v1384 = vunpack.c.0.s8 %v1383
        %v1385 = vperm.slane %v1381, %v1384
        %v1386 = vrot.slane %v1376, 4
        %v1387 = vsel %vm1203, %v1386, %v1374
        %v1389 = vunpack.c.l.s4 1983009808
        %v1390 = vunpack.c.0.s8 %v1389
        %v1391 = vperm.slane %v1387, %v1390
        %v1392 = vsel %vm1203, %v1379, %v1368
        %v1394 = vunpack.c.l.s4 1983009808
        %v1395 = vunpack.c.0.s8 %v1394
        %v1396 = vperm.slane %v1392, %v1395
        %v1397 = vrot.slane %v1380, 4
        %v1398 = vsel %vm1203, %v1397, %v1378
        %v1400 = vunpack.c.l.s4 1983009808
        %v1401 = vunpack.c.0.s8 %v1400
        %v1402 = vperm.slane %v1398, %v1401
        %v1403 = vrot.slane %v1391, 4
        %v1404 = vsel %vm1203, %v1403, %v1385
        %v1405 = vrot.slane %v1385, 4
        %v1406 = vsel %vm1203, %v1391, %v1405
        %v1408 = vunpack.c.l.s4 1934713408
        %v1409 = vunpack.c.0.s8 %v1408
        %v1410 = vperm.slane %v1404, %v1409
        %v1412 = vunpack.c.l.s4 1934713408
        %v1413 = vunpack.c.0.s8 %v1412
        %v1414 = vperm.slane %v1406, %v1413
        %v1415 = vrot.slane %v1402, 4
        %v1416 = vsel %vm1203, %v1415, %v1396
        %v1417 = vrot.slane %v1396, 4
        %v1418 = vsel %vm1203, %v1402, %v1417
        %v1420 = vunpack.c.l.s4 1934713408
        %v1421 = vunpack.c.0.s8 %v1420
        %v1422 = vperm.slane %v1416, %v1421
        %v1424 = vunpack.c.l.s4 1934713408
        %v1425 = vunpack.c.0.s8 %v1424
        %v1426 = vperm.slane %v1418, %v1425
        %v1427 = vrot.slane %v1422, 4
        %v1428 = vsel %vm1203, %v1427, %v1410
        %v1429 = vrot.slane %v1410, 4
        %v1430 = vsel %vm1203, %v1422, %v1429
        %v1431 = vrot.slane %v1426, 4
        %v1432 = vsel %vm1203, %v1431, %v1414
        %v1433 = vrot.slane %v1414, 4
        %v1434 = vsel %vm1203, %v1426, %v1433
        %1435 = vrot.lane.b32.xlu0 %v1187, 64
        %v1436 = vpop.permute.xlu0 %1435
        %1437 = vrot.lane.b32.xlu0 %v1194, 64
        %v1438 = vpop.permute.xlu0 %1437
        %1439 = vrot.lane.b32.xlu0 %v1197, 64
        %v1440 = vpop.permute.xlu0 %1439
        %1441 = vrot.lane.b32.xlu0 %v1200, 64
        %v1442 = vpop.permute.xlu0 %1441
        %v1447 = vrot.slane %v1440, 4
        %v1448 = vsel %vm1203, %v1447, %v1436
        %v1449 = vrot.slane %v1436, 4
        %v1450 = vsel %vm1203, %v1440, %v1449
        %v1452 = vunpack.c.l.s4 1983009808
        %v1453 = vunpack.c.0.s8 %v1452
        %v1454 = vperm.slane %v1448, %v1453
        %v1456 = vunpack.c.l.s4 1983009808
        %v1457 = vunpack.c.0.s8 %v1456
        %v1458 = vperm.slane %v1450, %v1457
        %v1459 = vrot.slane %v1442, 4
        %v1460 = vsel %vm1203, %v1459, %v1438
        %v1461 = vrot.slane %v1438, 4
        %v1462 = vsel %vm1203, %v1442, %v1461
        %v1464 = vunpack.c.l.s4 1983009808
        %v1465 = vunpack.c.0.s8 %v1464
        %v1466 = vperm.slane %v1460, %v1465
        %v1468 = vunpack.c.l.s4 1983009808
        %v1469 = vunpack.c.0.s8 %v1468
        %v1470 = vperm.slane %v1462, %v1469
        %v1471 = vrot.slane %v1466, 4
        %v1472 = vsel %vm1203, %v1471, %v1454
        %v1473 = vrot.slane %v1454, 4
        %v1474 = vsel %vm1203, %v1466, %v1473
        %v1476 = vunpack.c.l.s4 1934713408
        %v1477 = vunpack.c.0.s8 %v1476
        %v1478 = vperm.slane %v1472, %v1477
        %v1480 = vunpack.c.l.s4 1934713408
        %v1481 = vunpack.c.0.s8 %v1480
        %v1482 = vperm.slane %v1474, %v1481
        %v1483 = vrot.slane %v1470, 4
        %v1484 = vsel %vm1203, %v1483, %v1458
        %v1485 = vrot.slane %v1458, 4
        %v1486 = vsel %vm1203, %v1470, %v1485
        %v1488 = vunpack.c.l.s4 1934713408
        %v1489 = vunpack.c.0.s8 %v1488
        %v1490 = vperm.slane %v1484, %v1489
        %v1492 = vunpack.c.l.s4 1934713408
        %v1493 = vunpack.c.0.s8 %v1492
        %v1494 = vperm.slane %v1486, %v1493
        %v1495 = vrot.slane %v1478, 4
        %v1496 = vsel %vm1203, 0.0, %v1495
        %v1497 = vrot.slane %v1482, 4
        %v1498 = vsel %vm1203, 0.0, %v1497
        %v1499 = vrot.slane %v1490, 4
        %v1500 = vsel %vm1203, 0.0, %v1499
        %v1501 = vrot.slane %v1494, 4
        %v1502 = vsel %vm1203, 0.0, %v1501
        %v1503 = vsel %vm1203, %v1497, %v1478
        %v1505 = vunpack.c.l.s4 1983009808
        %v1506 = vunpack.c.0.s8 %v1505
        %v1507 = vperm.slane %v1503, %v1506
        %v1508 = vrot.slane %v1498, 4
        %v1509 = vsel %vm1203, %v1508, %v1496
        %v1511 = vunpack.c.l.s4 1983009808
        %v1512 = vunpack.c.0.s8 %v1511
        %v1513 = vperm.slane %v1509, %v1512
        %v1514 = vsel %vm1203, %v1501, %v1490
        %v1516 = vunpack.c.l.s4 1983009808
        %v1517 = vunpack.c.0.s8 %v1516
        %v1518 = vperm.slane %v1514, %v1517
        %v1519 = vrot.slane %v1502, 4
        %v1520 = vsel %vm1203, %v1519, %v1500
        %v1522 = vunpack.c.l.s4 1983009808
        %v1523 = vunpack.c.0.s8 %v1522
        %v1524 = vperm.slane %v1520, %v1523
        %v1525 = vrot.slane %v1513, 4
        %v1526 = vsel %vm1203, %v1525, %v1507
        %v1527 = vrot.slane %v1507, 4
        %v1528 = vsel %vm1203, %v1513, %v1527
        %v1530 = vunpack.c.l.s4 1934713408
        %v1531 = vunpack.c.0.s8 %v1530
        %v1532 = vperm.slane %v1526, %v1531
        %v1534 = vunpack.c.l.s4 1934713408
        %v1535 = vunpack.c.0.s8 %v1534
        %v1536 = vperm.slane %v1528, %v1535
        %v1537 = vrot.slane %v1524, 4
        %v1538 = vsel %vm1203, %v1537, %v1518
        %v1539 = vrot.slane %v1518, 4
        %v1540 = vsel %vm1203, %v1524, %v1539
        %v1542 = vunpack.c.l.s4 1934713408
        %v1543 = vunpack.c.0.s8 %v1542
        %v1544 = vperm.slane %v1538, %v1543
        %v1546 = vunpack.c.l.s4 1934713408
        %v1547 = vunpack.c.0.s8 %v1546
        %v1548 = vperm.slane %v1540, %v1547
        %v1549 = vrot.slane %v1544, 4
        %v1550 = vsel %vm1203, %v1549, %v1532
        %v1551 = vrot.slane %v1532, 4
        %v1552 = vsel %vm1203, %v1544, %v1551
        %v1553 = vrot.slane %v1548, 4
        %v1554 = vsel %vm1203, %v1553, %v1536
        %v1555 = vrot.slane %v1536, 4
        %v1556 = vsel %vm1203, %v1548, %v1555
        %vm1557 = vcmask 64512
        %v1559 = vsel %vm1557, %v1306, 0
        %v1562 = vsel %vm1557, %v1428, 0
        %1564 = vmatpush.xpose.msra.mxu0 0.0
        %1565 = vmatpush.xpose.msra.mxu0 0.0
        %1566 = vmatpush.xpose.msra.mxu0 0.0
        %1567 = vmatpush.xpose.msra.mxu0 0.0
        %1568 = vmatpush.xpose.msra.mxu0 0.0
        %1569 = vmatpush.xpose.msra.mxu0 0.0
        %1570 = vmatpush.xpose.msra.mxu0 0.0
        %1571 = vmatpush.xpose.msra.mxu0 0.0
        %1572 = vmatpush.xpose.msra.mxu0 0.0
        %1573 = vmatpush.xpose.msra.mxu0 0.0
        %1574 = vmatpush.xpose.msra.mxu0 0.0
        %1575 = vmatpush.xpose.msra.mxu0 0.0
        %1576 = vmatpush.xpose.msra.mxu0 0.0
        %1577 = vmatpush.xpose.msra.mxu0 0.0
        %1578 = vmatpush.xpose.msra.mxu0 0.0
        %1579 = vmatpush.xpose.msra.mxu0 %v1562
        %1580 = vmatmul.f32.gmra.mxu0 %v1559
        %v1581 = vpop.f32.mrf.mxu0
        %v1582 = vadd.f32 0.0, %v1581
        %1583 = vdwg.mxu0
        %v1585 = vsel %vm1557, %v1308, 0
        %v1588 = vsel %vm1557, %v1430, 0
        %1590 = vmatpush.xpose.msra.mxu0 0.0
        %1591 = vmatpush.xpose.msra.mxu0 0.0
        %1592 = vmatpush.xpose.msra.mxu0 0.0
        %1593 = vmatpush.xpose.msra.mxu0 0.0
        %1594 = vmatpush.xpose.msra.mxu0 0.0
        %1595 = vmatpush.xpose.msra.mxu0 0.0
        %1596 = vmatpush.xpose.msra.mxu0 0.0
        %1597 = vmatpush.xpose.msra.mxu0 0.0
        %1598 = vmatpush.xpose.msra.mxu0 0.0
        %1599 = vmatpush.xpose.msra.mxu0 0.0
        %1600 = vmatpush.xpose.msra.mxu0 0.0
        %1601 = vmatpush.xpose.msra.mxu0 0.0
        %1602 = vmatpush.xpose.msra.mxu0 0.0
        %1603 = vmatpush.xpose.msra.mxu0 0.0
        %1604 = vmatpush.xpose.msra.mxu0 0.0
        %1605 = vmatpush.xpose.msra.mxu0 %v1588
        %1606 = vmatmul.f32.gmra.mxu0 %v1585
        %v1607 = vpop.f32.mrf.mxu0
        %v1608 = vadd.f32 0.0, %v1607
        %1609 = vdwg.mxu0
        %v1611 = vsel %vm1557, %v1310, 0
        %v1614 = vsel %vm1557, %v1432, 0
        %1616 = vmatpush.xpose.msra.mxu0 0.0
        %1617 = vmatpush.xpose.msra.mxu0 0.0
        %1618 = vmatpush.xpose.msra.mxu0 0.0
        %1619 = vmatpush.xpose.msra.mxu0 0.0
        %1620 = vmatpush.xpose.msra.mxu0 0.0
        %1621 = vmatpush.xpose.msra.mxu0 0.0
        %1622 = vmatpush.xpose.msra.mxu0 0.0
        %1623 = vmatpush.xpose.msra.mxu0 0.0
        %1624 = vmatpush.xpose.msra.mxu0 0.0
        %1625 = vmatpush.xpose.msra.mxu0 0.0
        %1626 = vmatpush.xpose.msra.mxu0 0.0
        %1627 = vmatpush.xpose.msra.mxu0 0.0
        %1628 = vmatpush.xpose.msra.mxu0 0.0
        %1629 = vmatpush.xpose.msra.mxu0 0.0
        %1630 = vmatpush.xpose.msra.mxu0 0.0
        %1631 = vmatpush.xpose.msra.mxu0 %v1614
        %1632 = vmatmul.f32.gmra.mxu0 %v1611
        %v1633 = vpop.f32.mrf.mxu0
        %v1634 = vadd.f32 0.0, %v1633
        %1635 = vdwg.mxu0
        %v1637 = vsel %vm1557, %v1312, 0
        %v1640 = vsel %vm1557, %v1434, 0
        %1642 = vmatpush.xpose.msra.mxu0 0.0
        %1643 = vmatpush.xpose.msra.mxu0 0.0
        %1644 = vmatpush.xpose.msra.mxu0 0.0
        %1645 = vmatpush.xpose.msra.mxu0 0.0
        %1646 = vmatpush.xpose.msra.mxu0 0.0
        %1647 = vmatpush.xpose.msra.mxu0 0.0
        %1648 = vmatpush.xpose.msra.mxu0 0.0
        %1649 = vmatpush.xpose.msra.mxu0 0.0
        %1650 = vmatpush.xpose.msra.mxu0 0.0
        %1651 = vmatpush.xpose.msra.mxu0 0.0
        %1652 = vmatpush.xpose.msra.mxu0 0.0
        %1653 = vmatpush.xpose.msra.mxu0 0.0
        %1654 = vmatpush.xpose.msra.mxu0 0.0
        %1655 = vmatpush.xpose.msra.mxu0 0.0
        %1656 = vmatpush.xpose.msra.mxu0 0.0
        %1657 = vmatpush.xpose.msra.mxu0 %v1640
        %1658 = vmatmul.f32.gmra.mxu0 %v1637
        %v1659 = vpop.f32.mrf.mxu0
        %v1660 = vadd.f32 0.0, %v1659
        %1661 = vdwg.mxu0
        %v1662 = vsel %vm1557, %v1582, -inf
        %1663 = vmax.xlane.f32.xlu0 %v1662
        %v1664 = vpop.xlane.xlu0 %1663
        %v1665 = vsel %vm1557, %v1608, -inf
        %1666 = vmax.xlane.f32.xlu0 %v1665
        %v1667 = vpop.xlane.xlu0 %1666
        %v1668 = vsel %vm1557, %v1634, -inf
        %1669 = vmax.xlane.f32.xlu0 %v1668
        %v1670 = vpop.xlane.xlu0 %1669
        %v1671 = vsel %vm1557, %v1660, -inf
        %1672 = vmax.xlane.f32.xlu0 %v1671
        %v1673 = vpop.xlane.xlu0 %1672
        %v1674 = vsub.f32 %v1582, %v1664
        %v1675 = vsub.f32 %v1608, %v1667
        %v1676 = vsub.f32 %v1634, %v1670
        %v1677 = vsub.f32 %v1660, %v1673
        %v1678 = vmul.f32 %v1674, 1.442695
        %v1679 = vpow.pop %v1678
        %v1680 = vmul.f32 %v1675, 1.442695
        %v1681 = vpow.pop %v1680
        %v1682 = vmul.f32 %v1676, 1.442695
        %v1683 = vpow.pop %v1682
        %v1684 = vmul.f32 %v1677, 1.442695
        %v1685 = vpow.pop %v1684
        %v1686 = vsel %vm1557, %v1679, 0.0
        %1687 = vadd.xlane.f32.xlu0 %v1686
        %v1688 = vpop.xlane.xlu0 %1687
        %v1689 = vsel %vm1557, %v1681, 0.0
        %1690 = vadd.xlane.f32.xlu0 %v1689
        %v1691 = vpop.xlane.xlu0 %1690
        %v1692 = vsel %vm1557, %v1683, 0.0
        %1693 = vadd.xlane.f32.xlu0 %v1692
        %v1694 = vpop.xlane.xlu0 %1693
        %v1695 = vsel %vm1557, %v1685, 0.0
        %1696 = vadd.xlane.f32.xlu0 %v1695
        %v1697 = vpop.xlane.xlu0 %1696
        %v1698 = vrcp.pop %v1688
        %v1699 = vmul.f32 %v1688, %v1698
        %v1700 = vsub.f32 1.0, %v1699
        %v1701 = vmul.f32 %v1698, %v1700
        %v1702 = vadd.f32 %v1698, %v1701
        %vm1703 = vweird.f32 %v1688
        %vm1704 = vweird.f32 %v1698
        %vm1705 = vmor %vm1703, %vm1704
        %v1706 = vsel %vm1705, %v1698, %v1702
        %v1707 = vand.u32 2147483647, %v1688
        %vm1708 = vcmp.eq.f32.partialorder %v1707, 8.507059e+37
        %v1709 = vand.u32 %v1688, 2147483648
        %v1710 = vor.u32 1.1754944e-38, %v1709
        %v1711 = vsel %vm1708, %v1710, %v1706
        %v1712 = vmul.f32 %v1679, %v1711
        %v1713 = vrcp.pop %v1691
        %v1714 = vmul.f32 %v1691, %v1713
        %v1715 = vsub.f32 1.0, %v1714
        %v1716 = vmul.f32 %v1713, %v1715
        %v1717 = vadd.f32 %v1713, %v1716
        %vm1718 = vweird.f32 %v1691
        %vm1719 = vweird.f32 %v1713
        %vm1720 = vmor %vm1718, %vm1719
        %v1721 = vsel %vm1720, %v1713, %v1717
        %v1722 = vand.u32 2147483647, %v1691
        %vm1723 = vcmp.eq.f32.partialorder %v1722, 8.507059e+37
        %v1724 = vand.u32 %v1691, 2147483648
        %v1725 = vor.u32 1.1754944e-38, %v1724
        %v1726 = vsel %vm1723, %v1725, %v1721
        %v1727 = vmul.f32 %v1681, %v1726
        %v1728 = vrcp.pop %v1694
        %v1729 = vmul.f32 %v1694, %v1728
        %v1730 = vsub.f32 1.0, %v1729
        %v1731 = vmul.f32 %v1728, %v1730
        %v1732 = vadd.f32 %v1728, %v1731
        %vm1733 = vweird.f32 %v1694
        %vm1734 = vweird.f32 %v1728
        %vm1735 = vmor %vm1733, %vm1734
        %v1736 = vsel %vm1735, %v1728, %v1732
        %v1737 = vand.u32 2147483647, %v1694
        %vm1738 = vcmp.eq.f32.partialorder %v1737, 8.507059e+37
        %v1739 = vand.u32 %v1694, 2147483648
        %v1740 = vor.u32 1.1754944e-38, %v1739
        %v1741 = vsel %vm1738, %v1740, %v1736
        %v1742 = vmul.f32 %v1683, %v1741
        %v1743 = vrcp.pop %v1697
        %v1744 = vmul.f32 %v1697, %v1743
        %v1745 = vsub.f32 1.0, %v1744
        %v1746 = vmul.f32 %v1743, %v1745
        %v1747 = vadd.f32 %v1743, %v1746
        %vm1748 = vweird.f32 %v1697
        %vm1749 = vweird.f32 %v1743
        %vm1750 = vmor %vm1748, %vm1749
        %v1751 = vsel %vm1750, %v1743, %v1747
        %v1752 = vand.u32 2147483647, %v1697
        %vm1753 = vcmp.eq.f32.partialorder %v1752, 8.507059e+37
        %v1754 = vand.u32 %v1697, 2147483648
        %v1755 = vor.u32 1.1754944e-38, %v1754
        %v1756 = vsel %vm1753, %v1755, %v1751
        %v1757 = vmul.f32 %v1685, %v1756
        %v1759 = vsel %vm1557, %v1712, 0
        %1761 = vmatpush.msra.mxu0 0.0
        %1762 = vmatpush.msra.mxu0 0.0
        %1763 = vmatpush.msra.mxu0 0.0
        %1764 = vmatpush.msra.mxu0 0.0
        %1765 = vmatpush.msra.mxu0 0.0
        %1766 = vmatpush.msra.mxu0 0.0
        %1767 = vmatpush.msra.mxu0 0.0
        %1768 = vmatpush.msra.mxu0 0.0
        %1769 = vmatpush.msra.mxu0 0.0
        %1770 = vmatpush.msra.mxu0 0.0
        %1771 = vmatpush.msra.mxu0 0.0
        %1772 = vmatpush.msra.mxu0 0.0
        %1773 = vmatpush.msra.mxu0 0.0
        %1774 = vmatpush.msra.mxu0 0.0
        %1775 = vmatpush.msra.mxu0 0.0
        %1776 = vmatpush.msra.mxu0 %v1550
        %1777 = vmatmul.f32.gmra.mxu0 %v1759
        %v1778 = vpop.f32.mrf.mxu0
        %v1779 = vadd.f32 0.0, %v1778
        %1780 = vdwg.mxu0
        %v1782 = vsel %vm1557, %v1727, 0
        %1784 = vmatpush.msra.mxu0 0.0
        %1785 = vmatpush.msra.mxu0 0.0
        %1786 = vmatpush.msra.mxu0 0.0
        %1787 = vmatpush.msra.mxu0 0.0
        %1788 = vmatpush.msra.mxu0 0.0
        %1789 = vmatpush.msra.mxu0 0.0
        %1790 = vmatpush.msra.mxu0 0.0
        %1791 = vmatpush.msra.mxu0 0.0
        %1792 = vmatpush.msra.mxu0 0.0
        %1793 = vmatpush.msra.mxu0 0.0
        %1794 = vmatpush.msra.mxu0 0.0
        %1795 = vmatpush.msra.mxu0 0.0
        %1796 = vmatpush.msra.mxu0 0.0
        %1797 = vmatpush.msra.mxu0 0.0
        %1798 = vmatpush.msra.mxu0 0.0
        %1799 = vmatpush.msra.mxu0 %v1552
        %1800 = vmatmul.f32.gmra.mxu0 %v1782
        %v1801 = vpop.f32.mrf.mxu0
        %v1802 = vadd.f32 0.0, %v1801
        %1803 = vdwg.mxu0
        %v1805 = vsel %vm1557, %v1742, 0
        %1807 = vmatpush.msra.mxu0 0.0
        %1808 = vmatpush.msra.mxu0 0.0
        %1809 = vmatpush.msra.mxu0 0.0
        %1810 = vmatpush.msra.mxu0 0.0
        %1811 = vmatpush.msra.mxu0 0.0
        %1812 = vmatpush.msra.mxu0 0.0
        %1813 = vmatpush.msra.mxu0 0.0
        %1814 = vmatpush.msra.mxu0 0.0
        %1815 = vmatpush.msra.mxu0 0.0
        %1816 = vmatpush.msra.mxu0 0.0
        %1817 = vmatpush.msra.mxu0 0.0
        %1818 = vmatpush.msra.mxu0 0.0
        %1819 = vmatpush.msra.mxu0 0.0
        %1820 = vmatpush.msra.mxu0 0.0
        %1821 = vmatpush.msra.mxu0 0.0
        %1822 = vmatpush.msra.mxu0 %v1554
        %1823 = vmatmul.f32.gmra.mxu0 %v1805
        %v1824 = vpop.f32.mrf.mxu0
        %v1825 = vadd.f32 0.0, %v1824
        %1826 = vdwg.mxu0
        %v1828 = vsel %vm1557, %v1757, 0
        %1830 = vmatpush.msra.mxu0 0.0
        %1831 = vmatpush.msra.mxu0 0.0
        %1832 = vmatpush.msra.mxu0 0.0
        %1833 = vmatpush.msra.mxu0 0.0
        %1834 = vmatpush.msra.mxu0 0.0
        %1835 = vmatpush.msra.mxu0 0.0
        %1836 = vmatpush.msra.mxu0 0.0
        %1837 = vmatpush.msra.mxu0 0.0
        %1838 = vmatpush.msra.mxu0 0.0
        %1839 = vmatpush.msra.mxu0 0.0
        %1840 = vmatpush.msra.mxu0 0.0
        %1841 = vmatpush.msra.mxu0 0.0
        %1842 = vmatpush.msra.mxu0 0.0
        %1843 = vmatpush.msra.mxu0 0.0
        %1844 = vmatpush.msra.mxu0 0.0
        %1845 = vmatpush.msra.mxu0 %v1556
        %1846 = vmatmul.f32.gmra.mxu0 %v1828
        %v1847 = vpop.f32.mrf.mxu0
        %v1848 = vadd.f32 0.0, %v1847
        %1849 = vdwg.mxu0
        %v1850 = vrot.slane %v1825, 4
        %v1851 = vsel %vm1203, %v1850, %v1779
        %v1852 = vrot.slane %v1779, 4
        %v1853 = vsel %vm1203, %v1825, %v1852
        %v1855 = vunpack.c.l.s4 1983009808
        %v1856 = vunpack.c.0.s8 %v1855
        %v1857 = vperm.slane %v1851, %v1856
        %v1859 = vunpack.c.l.s4 1983009808
        %v1860 = vunpack.c.0.s8 %v1859
        %v1861 = vperm.slane %v1853, %v1860
        %v1862 = vrot.slane %v1848, 4
        %v1863 = vsel %vm1203, %v1862, %v1802
        %v1864 = vrot.slane %v1802, 4
        %v1865 = vsel %vm1203, %v1848, %v1864
        %v1867 = vunpack.c.l.s4 1983009808
        %v1868 = vunpack.c.0.s8 %v1867
        %v1869 = vperm.slane %v1863, %v1868
        %v1871 = vunpack.c.l.s4 1983009808
        %v1872 = vunpack.c.0.s8 %v1871
        %v1873 = vperm.slane %v1865, %v1872
        %v1874 = vrot.slane %v1869, 4
        %v1875 = vsel %vm1203, %v1874, %v1857
        %v1876 = vrot.slane %v1857, 4
        %v1877 = vsel %vm1203, %v1869, %v1876
        %v1879 = vunpack.c.l.s4 1934713408
        %v1880 = vunpack.c.0.s8 %v1879
        %v1881 = vperm.slane %v1875, %v1880
        %v1883 = vunpack.c.l.s4 1934713408
        %v1884 = vunpack.c.0.s8 %v1883
        %v1885 = vperm.slane %v1877, %v1884
        %v1886 = vrot.slane %v1873, 4
        %v1887 = vsel %vm1203, %v1886, %v1861
        %v1888 = vrot.slane %v1861, 4
        %v1889 = vsel %vm1203, %v1873, %v1888
        %v1891 = vunpack.c.l.s4 1934713408
        %v1892 = vunpack.c.0.s8 %v1891
        %v1893 = vperm.slane %v1887, %v1892
        %v1895 = vunpack.c.l.s4 1934713408
        %v1896 = vunpack.c.0.s8 %v1895
        %v1897 = vperm.slane %v1889, %v1896
        %v1898 = vrot.slane %v1881, 4
        %v1899 = vsel %vm1203, 0.0, %v1898
        %v1900 = vrot.slane %v1885, 4
        %v1901 = vsel %vm1203, 0.0, %v1900
        %v1902 = vrot.slane %v1893, 4
        %v1903 = vsel %vm1203, 0.0, %v1902
        %v1904 = vrot.slane %v1897, 4
        %v1905 = vsel %vm1203, 0.0, %v1904
        %v1906 = vsel %vm1203, %v1900, %v1881
        %v1908 = vunpack.c.l.s4 1983009808
        %v1909 = vunpack.c.0.s8 %v1908
        %v1910 = vperm.slane %v1906, %v1909
        %v1911 = vrot.slane %v1901, 4
        %v1912 = vsel %vm1203, %v1911, %v1899
        %v1914 = vunpack.c.l.s4 1983009808
        %v1915 = vunpack.c.0.s8 %v1914
        %v1916 = vperm.slane %v1912, %v1915
        %v1917 = vsel %vm1203, %v1904, %v1893
        %v1919 = vunpack.c.l.s4 1983009808
        %v1920 = vunpack.c.0.s8 %v1919
        %v1921 = vperm.slane %v1917, %v1920
        %v1922 = vrot.slane %v1905, 4
        %v1923 = vsel %vm1203, %v1922, %v1903
        %v1925 = vunpack.c.l.s4 1983009808
        %v1926 = vunpack.c.0.s8 %v1925
        %v1927 = vperm.slane %v1923, %v1926
        %v1928 = vrot.slane %v1916, 4
        %v1929 = vsel %vm1203, %v1928, %v1910
        %v1930 = vrot.slane %v1910, 4
        %v1931 = vsel %vm1203, %v1916, %v1930
        %v1933 = vunpack.c.l.s4 1934713408
        %v1934 = vunpack.c.0.s8 %v1933
        %v1935 = vperm.slane %v1929, %v1934
        %v1937 = vunpack.c.l.s4 1934713408
        %v1938 = vunpack.c.0.s8 %v1937
        %v1939 = vperm.slane %v1931, %v1938
        %v1940 = vrot.slane %v1927, 4
        %v1941 = vsel %vm1203, %v1940, %v1921
        %v1942 = vrot.slane %v1921, 4
        %v1943 = vsel %vm1203, %v1927, %v1942
        %v1945 = vunpack.c.l.s4 1934713408
        %v1946 = vunpack.c.0.s8 %v1945
        %v1947 = vperm.slane %v1941, %v1946
        %v1949 = vunpack.c.l.s4 1934713408
        %v1950 = vunpack.c.0.s8 %v1949
        %v1951 = vperm.slane %v1943, %v1950
        %v1952 = vrot.slane %v1947, 4
        %v1953 = vsel %vm1203, %v1952, %v1935
        %v1954 = vrot.slane %v1935, 4
        %v1955 = vsel %vm1203, %v1947, %v1954
        %v1956 = vrot.slane %v1951, 4
        %v1957 = vsel %vm1203, %v1956, %v1939
        %v1958 = vrot.slane %v1939, 4
        %v1959 = vsel %vm1203, %v1951, %v1958
        %1961 = vrot.lane.b32.xlu0 %v1955, 8
        %v1962 = vpop.permute.xlu0 %1961
        %1965 = vrot.lane.b32.xlu0 %v1957, 16
        %v1966 = vpop.permute.xlu0 %1965
        %1969 = vrot.lane.b32.xlu0 %v1959, 24
        %v1970 = vpop.permute.xlu0 %1969
        %v1972 = vsel %vm1557, %v1953, %v1962
        %vm1973 = vcmask 130048
        %v1974 = vsel %vm1973, %v1972, %v1966
        %vm1975 = vcmask 195584
        %v1976 = vsel %vm1975, %v1974, %v1970
        %1978 = vrot.lane.b32.xlu0 %v1190, 120
        %v1979 = vpop.permute.xlu0 %1978
        %1981 = vrot.lane.b32.xlu0 %v1190, 112
        %v1982 = vpop.permute.xlu0 %1981
        %1984 = vrot.lane.b32.xlu0 %v1190, 104
        %v1985 = vpop.permute.xlu0 %1984
        %v1987 = vrot.slane %v1982, 4
        %v1988 = vsel %vm1203, %v1987, %v1190
        %v1989 = vrot.slane %v1190, 4
        %v1990 = vsel %vm1203, %v1982, %v1989
        %v1992 = vunpack.c.l.s4 1983009808
        %v1993 = vunpack.c.0.s8 %v1992
        %v1994 = vperm.slane %v1988, %v1993
        %v1996 = vunpack.c.l.s4 1983009808
        %v1997 = vunpack.c.0.s8 %v1996
        %v1998 = vperm.slane %v1990, %v1997
        %v1999 = vrot.slane %v1985, 4
        %v2000 = vsel %vm1203, %v1999, %v1979
        %v2001 = vrot.slane %v1979, 4
        %v2002 = vsel %vm1203, %v1985, %v2001
        %v2004 = vunpack.c.l.s4 1983009808
        %v2005 = vunpack.c.0.s8 %v2004
        %v2006 = vperm.slane %v2000, %v2005
        %v2008 = vunpack.c.l.s4 1983009808
        %v2009 = vunpack.c.0.s8 %v2008
        %v2010 = vperm.slane %v2002, %v2009
        %v2011 = vrot.slane %v2006, 4
        %v2012 = vsel %vm1203, %v2011, %v1994
        %v2013 = vrot.slane %v1994, 4
        %v2014 = vsel %vm1203, %v2006, %v2013
        %v2016 = vunpack.c.l.s4 1934713408
        %v2017 = vunpack.c.0.s8 %v2016
        %v2018 = vperm.slane %v2012, %v2017
        %v2020 = vunpack.c.l.s4 1934713408
        %v2021 = vunpack.c.0.s8 %v2020
        %v2022 = vperm.slane %v2014, %v2021
        %v2023 = vrot.slane %v2010, 4
        %v2024 = vsel %vm1203, %v2023, %v1998
        %v2025 = vrot.slane %v1998, 4
        %v2026 = vsel %vm1203, %v2010, %v2025
        %v2028 = vunpack.c.l.s4 1934713408
        %v2029 = vunpack.c.0.s8 %v2028
        %v2030 = vperm.slane %v2024, %v2029
        %v2032 = vunpack.c.l.s4 1934713408
        %v2033 = vunpack.c.0.s8 %v2032
        %v2034 = vperm.slane %v2026, %v2033
        %v2035 = vrot.slane %v2018, 4
        %v2036 = vsel %vm1203, 0.0, %v2035
        %v2037 = vrot.slane %v2022, 4
        %v2038 = vsel %vm1203, 0.0, %v2037
        %v2039 = vrot.slane %v2030, 4
        %v2040 = vsel %vm1203, 0.0, %v2039
        %v2041 = vrot.slane %v2034, 4
        %v2042 = vsel %vm1203, 0.0, %v2041
        %v2043 = vsel %vm1203, %v2037, %v2018
        %v2045 = vunpack.c.l.s4 1983009808
        %v2046 = vunpack.c.0.s8 %v2045
        %v2047 = vperm.slane %v2043, %v2046
        %v2048 = vrot.slane %v2038, 4
        %v2049 = vsel %vm1203, %v2048, %v2036
        %v2051 = vunpack.c.l.s4 1983009808
        %v2052 = vunpack.c.0.s8 %v2051
        %v2053 = vperm.slane %v2049, %v2052
        %v2054 = vsel %vm1203, %v2041, %v2030
        %v2056 = vunpack.c.l.s4 1983009808
        %v2057 = vunpack.c.0.s8 %v2056
        %v2058 = vperm.slane %v2054, %v2057
        %v2059 = vrot.slane %v2042, 4
        %v2060 = vsel %vm1203, %v2059, %v2040
        %v2062 = vunpack.c.l.s4 1983009808
        %v2063 = vunpack.c.0.s8 %v2062
        %v2064 = vperm.slane %v2060, %v2063
        %v2065 = vrot.slane %v2053, 4
        %v2066 = vsel %vm1203, %v2065, %v2047
        %v2067 = vrot.slane %v2047, 4
        %v2068 = vsel %vm1203, %v2053, %v2067
        %v2070 = vunpack.c.l.s4 1934713408
        %v2071 = vunpack.c.0.s8 %v2070
        %v2072 = vperm.slane %v2066, %v2071
        %v2074 = vunpack.c.l.s4 1934713408
        %v2075 = vunpack.c.0.s8 %v2074
        %v2076 = vperm.slane %v2068, %v2075
        %v2077 = vrot.slane %v2064, 4
        %v2078 = vsel %vm1203, %v2077, %v2058
        %v2079 = vrot.slane %v2058, 4
        %v2080 = vsel %vm1203, %v2064, %v2079
        %v2082 = vunpack.c.l.s4 1934713408
        %v2083 = vunpack.c.0.s8 %v2082
        %v2084 = vperm.slane %v2078, %v2083
        %v2086 = vunpack.c.l.s4 1934713408
        %v2087 = vunpack.c.0.s8 %v2086
        %v2088 = vperm.slane %v2080, %v2087
        %v2089 = vrot.slane %v2084, 4
        %v2090 = vsel %vm1203, %v2089, %v2072
        %v2091 = vrot.slane %v2072, 4
        %v2092 = vsel %vm1203, %v2084, %v2091
        %v2093 = vrot.slane %v2088, 4
        %v2094 = vsel %vm1203, %v2093, %v2076
        %v2095 = vrot.slane %v2076, 4
        %v2096 = vsel %vm1203, %v2088, %v2095
        %2097 = vrot.lane.b32.xlu0 %v1190, 96
        %v2098 = vpop.permute.xlu0 %2097
        %2099 = vrot.lane.b32.xlu0 %v1979, 96
        %v2100 = vpop.permute.xlu0 %2099
        %2101 = vrot.lane.b32.xlu0 %v1982, 96
        %v2102 = vpop.permute.xlu0 %2101
        %2103 = vrot.lane.b32.xlu0 %v1985, 96
        %v2104 = vpop.permute.xlu0 %2103
        %v2109 = vrot.slane %v2102, 4
        %v2110 = vsel %vm1203, %v2109, %v2098
        %v2111 = vrot.slane %v2098, 4
        %v2112 = vsel %vm1203, %v2102, %v2111
        %v2114 = vunpack.c.l.s4 1983009808
        %v2115 = vunpack.c.0.s8 %v2114
        %v2116 = vperm.slane %v2110, %v2115
        %v2118 = vunpack.c.l.s4 1983009808
        %v2119 = vunpack.c.0.s8 %v2118
        %v2120 = vperm.slane %v2112, %v2119
        %v2121 = vrot.slane %v2104, 4
        %v2122 = vsel %vm1203, %v2121, %v2100
        %v2123 = vrot.slane %v2100, 4
        %v2124 = vsel %vm1203, %v2104, %v2123
        %v2126 = vunpack.c.l.s4 1983009808
        %v2127 = vunpack.c.0.s8 %v2126
        %v2128 = vperm.slane %v2122, %v2127
        %v2130 = vunpack.c.l.s4 1983009808
        %v2131 = vunpack.c.0.s8 %v2130
        %v2132 = vperm.slane %v2124, %v2131
        %v2133 = vrot.slane %v2128, 4
        %v2134 = vsel %vm1203, %v2133, %v2116
        %v2135 = vrot.slane %v2116, 4
        %v2136 = vsel %vm1203, %v2128, %v2135
        %v2138 = vunpack.c.l.s4 1934713408
        %v2139 = vunpack.c.0.s8 %v2138
        %v2140 = vperm.slane %v2134, %v2139
        %v2142 = vunpack.c.l.s4 1934713408
        %v2143 = vunpack.c.0.s8 %v2142
        %v2144 = vperm.slane %v2136, %v2143
        %v2145 = vrot.slane %v2132, 4
        %v2146 = vsel %vm1203, %v2145, %v2120
        %v2147 = vrot.slane %v2120, 4
        %v2148 = vsel %vm1203, %v2132, %v2147
        %v2150 = vunpack.c.l.s4 1934713408
        %v2151 = vunpack.c.0.s8 %v2150
        %v2152 = vperm.slane %v2146, %v2151
        %v2154 = vunpack.c.l.s4 1934713408
        %v2155 = vunpack.c.0.s8 %v2154
        %v2156 = vperm.slane %v2148, %v2155
        %v2157 = vrot.slane %v2140, 4
        %v2158 = vsel %vm1203, 0.0, %v2157
        %v2159 = vrot.slane %v2144, 4
        %v2160 = vsel %vm1203, 0.0, %v2159
        %v2161 = vrot.slane %v2152, 4
        %v2162 = vsel %vm1203, 0.0, %v2161
        %v2163 = vrot.slane %v2156, 4
        %v2164 = vsel %vm1203, 0.0, %v2163
        %v2165 = vsel %vm1203, %v2159, %v2140
        %v2167 = vunpack.c.l.s4 1983009808
        %v2168 = vunpack.c.0.s8 %v2167
        %v2169 = vperm.slane %v2165, %v2168
        %v2170 = vrot.slane %v2160, 4
        %v2171 = vsel %vm1203, %v2170, %v2158
        %v2173 = vunpack.c.l.s4 1983009808
        %v2174 = vunpack.c.0.s8 %v2173
        %v2175 = vperm.slane %v2171, %v2174
        %v2176 = vsel %vm1203, %v2163, %v2152
        %v2178 = vunpack.c.l.s4 1983009808
        %v2179 = vunpack.c.0.s8 %v2178
        %v2180 = vperm.slane %v2176, %v2179
        %v2181 = vrot.slane %v2164, 4
        %v2182 = vsel %vm1203, %v2181, %v2162
        %v2184 = vunpack.c.l.s4 1983009808
        %v2185 = vunpack.c.0.s8 %v2184
        %v2186 = vperm.slane %v2182, %v2185
        %v2187 = vrot.slane %v2175, 4
        %v2188 = vsel %vm1203, %v2187, %v2169
        %v2189 = vrot.slane %v2169, 4
        %v2190 = vsel %vm1203, %v2175, %v2189
        %v2192 = vunpack.c.l.s4 1934713408
        %v2193 = vunpack.c.0.s8 %v2192
        %v2194 = vperm.slane %v2188, %v2193
        %v2196 = vunpack.c.l.s4 1934713408
        %v2197 = vunpack.c.0.s8 %v2196
        %v2198 = vperm.slane %v2190, %v2197
        %v2199 = vrot.slane %v2186, 4
        %v2200 = vsel %vm1203, %v2199, %v2180
        %v2201 = vrot.slane %v2180, 4
        %v2202 = vsel %vm1203, %v2186, %v2201
        %v2204 = vunpack.c.l.s4 1934713408
        %v2205 = vunpack.c.0.s8 %v2204
        %v2206 = vperm.slane %v2200, %v2205
        %v2208 = vunpack.c.l.s4 1934713408
        %v2209 = vunpack.c.0.s8 %v2208
        %v2210 = vperm.slane %v2202, %v2209
        %v2211 = vrot.slane %v2206, 4
        %v2212 = vsel %vm1203, %v2211, %v2194
        %v2213 = vrot.slane %v2194, 4
        %v2214 = vsel %vm1203, %v2206, %v2213
        %v2215 = vrot.slane %v2210, 4
        %v2216 = vsel %vm1203, %v2215, %v2198
        %v2217 = vrot.slane %v2198, 4
        %v2218 = vsel %vm1203, %v2210, %v2217
        %2219 = vrot.lane.b32.xlu0 %v1190, 64
        %v2220 = vpop.permute.xlu0 %2219
        %2221 = vrot.lane.b32.xlu0 %v1979, 64
        %v2222 = vpop.permute.xlu0 %2221
        %2223 = vrot.lane.b32.xlu0 %v1982, 64
        %v2224 = vpop.permute.xlu0 %2223
        %2225 = vrot.lane.b32.xlu0 %v1985, 64
        %v2226 = vpop.permute.xlu0 %2225
        %v2231 = vrot.slane %v2224, 4
        %v2232 = vsel %vm1203, %v2231, %v2220
        %v2233 = vrot.slane %v2220, 4
        %v2234 = vsel %vm1203, %v2224, %v2233
        %v2236 = vunpack.c.l.s4 1983009808
        %v2237 = vunpack.c.0.s8 %v2236
        %v2238 = vperm.slane %v2232, %v2237
        %v2240 = vunpack.c.l.s4 1983009808
        %v2241 = vunpack.c.0.s8 %v2240
        %v2242 = vperm.slane %v2234, %v2241
        %v2243 = vrot.slane %v2226, 4
        %v2244 = vsel %vm1203, %v2243, %v2222
        %v2245 = vrot.slane %v2222, 4
        %v2246 = vsel %vm1203, %v2226, %v2245
        %v2248 = vunpack.c.l.s4 1983009808
        %v2249 = vunpack.c.0.s8 %v2248
        %v2250 = vperm.slane %v2244, %v2249
        %v2252 = vunpack.c.l.s4 1983009808
        %v2253 = vunpack.c.0.s8 %v2252
        %v2254 = vperm.slane %v2246, %v2253
        %v2255 = vrot.slane %v2250, 4
        %v2256 = vsel %vm1203, %v2255, %v2238
        %v2257 = vrot.slane %v2238, 4
        %v2258 = vsel %vm1203, %v2250, %v2257
        %v2260 = vunpack.c.l.s4 1934713408
        %v2261 = vunpack.c.0.s8 %v2260
        %v2262 = vperm.slane %v2256, %v2261
        %v2264 = vunpack.c.l.s4 1934713408
        %v2265 = vunpack.c.0.s8 %v2264
        %v2266 = vperm.slane %v2258, %v2265
        %v2267 = vrot.slane %v2254, 4
        %v2268 = vsel %vm1203, %v2267, %v2242
        %v2269 = vrot.slane %v2242, 4
        %v2270 = vsel %vm1203, %v2254, %v2269
        %v2272 = vunpack.c.l.s4 1934713408
        %v2273 = vunpack.c.0.s8 %v2272
        %v2274 = vperm.slane %v2268, %v2273
        %v2276 = vunpack.c.l.s4 1934713408
        %v2277 = vunpack.c.0.s8 %v2276
        %v2278 = vperm.slane %v2270, %v2277
        %v2279 = vrot.slane %v2262, 4
        %v2280 = vsel %vm1203, 0.0, %v2279
        %v2281 = vrot.slane %v2266, 4
        %v2282 = vsel %vm1203, 0.0, %v2281
        %v2283 = vrot.slane %v2274, 4
        %v2284 = vsel %vm1203, 0.0, %v2283
        %v2285 = vrot.slane %v2278, 4
        %v2286 = vsel %vm1203, 0.0, %v2285
        %v2287 = vsel %vm1203, %v2281, %v2262
        %v2289 = vunpack.c.l.s4 1983009808
        %v2290 = vunpack.c.0.s8 %v2289
        %v2291 = vperm.slane %v2287, %v2290
        %v2292 = vrot.slane %v2282, 4
        %v2293 = vsel %vm1203, %v2292, %v2280
        %v2295 = vunpack.c.l.s4 1983009808
        %v2296 = vunpack.c.0.s8 %v2295
        %v2297 = vperm.slane %v2293, %v2296
        %v2298 = vsel %vm1203, %v2285, %v2274
        %v2300 = vunpack.c.l.s4 1983009808
        %v2301 = vunpack.c.0.s8 %v2300
        %v2302 = vperm.slane %v2298, %v2301
        %v2303 = vrot.slane %v2286, 4
        %v2304 = vsel %vm1203, %v2303, %v2284
        %v2306 = vunpack.c.l.s4 1983009808
        %v2307 = vunpack.c.0.s8 %v2306
        %v2308 = vperm.slane %v2304, %v2307
        %v2309 = vrot.slane %v2297, 4
        %v2310 = vsel %vm1203, %v2309, %v2291
        %v2311 = vrot.slane %v2291, 4
        %v2312 = vsel %vm1203, %v2297, %v2311
        %v2314 = vunpack.c.l.s4 1934713408
        %v2315 = vunpack.c.0.s8 %v2314
        %v2316 = vperm.slane %v2310, %v2315
        %v2318 = vunpack.c.l.s4 1934713408
        %v2319 = vunpack.c.0.s8 %v2318
        %v2320 = vperm.slane %v2312, %v2319
        %v2321 = vrot.slane %v2308, 4
        %v2322 = vsel %vm1203, %v2321, %v2302
        %v2323 = vrot.slane %v2302, 4
        %v2324 = vsel %vm1203, %v2308, %v2323
        %v2326 = vunpack.c.l.s4 1934713408
        %v2327 = vunpack.c.0.s8 %v2326
        %v2328 = vperm.slane %v2322, %v2327
        %v2330 = vunpack.c.l.s4 1934713408
        %v2331 = vunpack.c.0.s8 %v2330
        %v2332 = vperm.slane %v2324, %v2331
        %v2333 = vrot.slane %v2328, 4
        %v2334 = vsel %vm1203, %v2333, %v2316
        %v2335 = vrot.slane %v2316, 4
        %v2336 = vsel %vm1203, %v2328, %v2335
        %v2337 = vrot.slane %v2332, 4
        %v2338 = vsel %vm1203, %v2337, %v2320
        %v2339 = vrot.slane %v2320, 4
        %v2340 = vsel %vm1203, %v2332, %v2339
        %v2342 = vsel %vm1557, %v2090, 0
        %v2345 = vsel %vm1557, %v2212, 0
        %2347 = vmatpush.xpose.msra.mxu0 0.0
        %2348 = vmatpush.xpose.msra.mxu0 0.0
        %2349 = vmatpush.xpose.msra.mxu0 0.0
        %2350 = vmatpush.xpose.msra.mxu0 0.0
        %2351 = vmatpush.xpose.msra.mxu0 0.0
        %2352 = vmatpush.xpose.msra.mxu0 0.0
        %2353 = vmatpush.xpose.msra.mxu0 0.0
        %2354 = vmatpush.xpose.msra.mxu0 0.0
        %2355 = vmatpush.xpose.msra.mxu0 0.0
        %2356 = vmatpush.xpose.msra.mxu0 0.0
        %2357 = vmatpush.xpose.msra.mxu0 0.0
        %2358 = vmatpush.xpose.msra.mxu0 0.0
        %2359 = vmatpush.xpose.msra.mxu0 0.0
        %2360 = vmatpush.xpose.msra.mxu0 0.0
        %2361 = vmatpush.xpose.msra.mxu0 0.0
        %2362 = vmatpush.xpose.msra.mxu0 %v2345
        %2363 = vmatmul.f32.gmra.mxu0 %v2342
        %v2364 = vpop.f32.mrf.mxu0
        %v2365 = vadd.f32 0.0, %v2364
        %2366 = vdwg.mxu0
        %v2368 = vsel %vm1557, %v2092, 0
        %v2371 = vsel %vm1557, %v2214, 0
        %2373 = vmatpush.xpose.msra.mxu0 0.0
        %2374 = vmatpush.xpose.msra.mxu0 0.0
        %2375 = vmatpush.xpose.msra.mxu0 0.0
        %2376 = vmatpush.xpose.msra.mxu0 0.0
        %2377 = vmatpush.xpose.msra.mxu0 0.0
        %2378 = vmatpush.xpose.msra.mxu0 0.0
        %2379 = vmatpush.xpose.msra.mxu0 0.0
        %2380 = vmatpush.xpose.msra.mxu0 0.0
        %2381 = vmatpush.xpose.msra.mxu0 0.0
        %2382 = vmatpush.xpose.msra.mxu0 0.0
        %2383 = vmatpush.xpose.msra.mxu0 0.0
        %2384 = vmatpush.xpose.msra.mxu0 0.0
        %2385 = vmatpush.xpose.msra.mxu0 0.0
        %2386 = vmatpush.xpose.msra.mxu0 0.0
        %2387 = vmatpush.xpose.msra.mxu0 0.0
        %2388 = vmatpush.xpose.msra.mxu0 %v2371
        %2389 = vmatmul.f32.gmra.mxu0 %v2368
        %v2390 = vpop.f32.mrf.mxu0
        %v2391 = vadd.f32 0.0, %v2390
        %2392 = vdwg.mxu0
        %v2394 = vsel %vm1557, %v2094, 0
        %v2397 = vsel %vm1557, %v2216, 0
        %2399 = vmatpush.xpose.msra.mxu0 0.0
        %2400 = vmatpush.xpose.msra.mxu0 0.0
        %2401 = vmatpush.xpose.msra.mxu0 0.0
        %2402 = vmatpush.xpose.msra.mxu0 0.0
        %2403 = vmatpush.xpose.msra.mxu0 0.0
        %2404 = vmatpush.xpose.msra.mxu0 0.0
        %2405 = vmatpush.xpose.msra.mxu0 0.0
        %2406 = vmatpush.xpose.msra.mxu0 0.0
        %2407 = vmatpush.xpose.msra.mxu0 0.0
        %2408 = vmatpush.xpose.msra.mxu0 0.0
        %2409 = vmatpush.xpose.msra.mxu0 0.0
        %2410 = vmatpush.xpose.msra.mxu0 0.0
        %2411 = vmatpush.xpose.msra.mxu0 0.0
        %2412 = vmatpush.xpose.msra.mxu0 0.0
        %2413 = vmatpush.xpose.msra.mxu0 0.0
        %2414 = vmatpush.xpose.msra.mxu0 %v2397
        %2415 = vmatmul.f32.gmra.mxu0 %v2394
        %v2416 = vpop.f32.mrf.mxu0
        %v2417 = vadd.f32 0.0, %v2416
        %2418 = vdwg.mxu0
        %v2420 = vsel %vm1557, %v2096, 0
        %v2423 = vsel %vm1557, %v2218, 0
        %2425 = vmatpush.xpose.msra.mxu0 0.0
        %2426 = vmatpush.xpose.msra.mxu0 0.0
        %2427 = vmatpush.xpose.msra.mxu0 0.0
        %2428 = vmatpush.xpose.msra.mxu0 0.0
        %2429 = vmatpush.xpose.msra.mxu0 0.0
        %2430 = vmatpush.xpose.msra.mxu0 0.0
        %2431 = vmatpush.xpose.msra.mxu0 0.0
        %2432 = vmatpush.xpose.msra.mxu0 0.0
        %2433 = vmatpush.xpose.msra.mxu0 0.0
        %2434 = vmatpush.xpose.msra.mxu0 0.0
        %2435 = vmatpush.xpose.msra.mxu0 0.0
        %2436 = vmatpush.xpose.msra.mxu0 0.0
        %2437 = vmatpush.xpose.msra.mxu0 0.0
        %2438 = vmatpush.xpose.msra.mxu0 0.0
        %2439 = vmatpush.xpose.msra.mxu0 0.0
        %2440 = vmatpush.xpose.msra.mxu0 %v2423
        %2441 = vmatmul.f32.gmra.mxu0 %v2420
        %v2442 = vpop.f32.mrf.mxu0
        %v2443 = vadd.f32 0.0, %v2442
        %2444 = vdwg.mxu0
        %v2445 = vsel %vm1557, %v2365, -inf
        %2446 = vmax.xlane.f32.xlu0 %v2445
        %v2447 = vpop.xlane.xlu0 %2446
        %v2448 = vsel %vm1557, %v2391, -inf
        %2449 = vmax.xlane.f32.xlu0 %v2448
        %v2450 = vpop.xlane.xlu0 %2449
        %v2451 = vsel %vm1557, %v2417, -inf
        %2452 = vmax.xlane.f32.xlu0 %v2451
        %v2453 = vpop.xlane.xlu0 %2452
        %v2454 = vsel %vm1557, %v2443, -inf
        %2455 = vmax.xlane.f32.xlu0 %v2454
        %v2456 = vpop.xlane.xlu0 %2455
        %v2457 = vsub.f32 %v2365, %v2447
        %v2458 = vsub.f32 %v2391, %v2450
        %v2459 = vsub.f32 %v2417, %v2453
        %v2460 = vsub.f32 %v2443, %v2456
        %v2461 = vmul.f32 %v2457, 1.442695
        %v2462 = vpow.pop %v2461
        %v2463 = vmul.f32 %v2458, 1.442695
        %v2464 = vpow.pop %v2463
        %v2465 = vmul.f32 %v2459, 1.442695
        %v2466 = vpow.pop %v2465
        %v2467 = vmul.f32 %v2460, 1.442695
        %v2468 = vpow.pop %v2467
        %v2469 = vsel %vm1557, %v2462, 0.0
        %2470 = vadd.xlane.f32.xlu0 %v2469
        %v2471 = vpop.xlane.xlu0 %2470
        %v2472 = vsel %vm1557, %v2464, 0.0
        %2473 = vadd.xlane.f32.xlu0 %v2472
        %v2474 = vpop.xlane.xlu0 %2473
        %v2475 = vsel %vm1557, %v2466, 0.0
        %2476 = vadd.xlane.f32.xlu0 %v2475
        %v2477 = vpop.xlane.xlu0 %2476
        %v2478 = vsel %vm1557, %v2468, 0.0
        %2479 = vadd.xlane.f32.xlu0 %v2478
        %v2480 = vpop.xlane.xlu0 %2479
        %v2481 = vrcp.pop %v2471
        %v2482 = vmul.f32 %v2471, %v2481
        %v2483 = vsub.f32 1.0, %v2482
        %v2484 = vmul.f32 %v2481, %v2483
        %v2485 = vadd.f32 %v2481, %v2484
        %vm2486 = vweird.f32 %v2471
        %vm2487 = vweird.f32 %v2481
        %vm2488 = vmor %vm2486, %vm2487
        %v2489 = vsel %vm2488, %v2481, %v2485
        %v2490 = vand.u32 2147483647, %v2471
        %vm2491 = vcmp.eq.f32.partialorder %v2490, 8.507059e+37
        %v2492 = vand.u32 %v2471, 2147483648
        %v2493 = vor.u32 1.1754944e-38, %v2492
        %v2494 = vsel %vm2491, %v2493, %v2489
        %v2495 = vmul.f32 %v2462, %v2494
        %v2496 = vrcp.pop %v2474
        %v2497 = vmul.f32 %v2474, %v2496
        %v2498 = vsub.f32 1.0, %v2497
        %v2499 = vmul.f32 %v2496, %v2498
        %v2500 = vadd.f32 %v2496, %v2499
        %vm2501 = vweird.f32 %v2474
        %vm2502 = vweird.f32 %v2496
        %vm2503 = vmor %vm2501, %vm2502
        %v2504 = vsel %vm2503, %v2496, %v2500
        %v2505 = vand.u32 2147483647, %v2474
        %vm2506 = vcmp.eq.f32.partialorder %v2505, 8.507059e+37
        %v2507 = vand.u32 %v2474, 2147483648
        %v2508 = vor.u32 1.1754944e-38, %v2507
        %v2509 = vsel %vm2506, %v2508, %v2504
        %v2510 = vmul.f32 %v2464, %v2509
        %v2511 = vrcp.pop %v2477
        %v2512 = vmul.f32 %v2477, %v2511
        %v2513 = vsub.f32 1.0, %v2512
        %v2514 = vmul.f32 %v2511, %v2513
        %v2515 = vadd.f32 %v2511, %v2514
        %vm2516 = vweird.f32 %v2477
        %vm2517 = vweird.f32 %v2511
        %vm2518 = vmor %vm2516, %vm2517
        %v2519 = vsel %vm2518, %v2511, %v2515
        %v2520 = vand.u32 2147483647, %v2477
        %vm2521 = vcmp.eq.f32.partialorder %v2520, 8.507059e+37
        %v2522 = vand.u32 %v2477, 2147483648
        %v2523 = vor.u32 1.1754944e-38, %v2522
        %v2524 = vsel %vm2521, %v2523, %v2519
        %v2525 = vmul.f32 %v2466, %v2524
        %v2526 = vrcp.pop %v2480
        %v2527 = vmul.f32 %v2480, %v2526
        %v2528 = vsub.f32 1.0, %v2527
        %v2529 = vmul.f32 %v2526, %v2528
        %v2530 = vadd.f32 %v2526, %v2529
        %vm2531 = vweird.f32 %v2480
        %vm2532 = vweird.f32 %v2526
        %vm2533 = vmor %vm2531, %vm2532
        %v2534 = vsel %vm2533, %v2526, %v2530
        %v2535 = vand.u32 2147483647, %v2480
        %vm2536 = vcmp.eq.f32.partialorder %v2535, 8.507059e+37
        %v2537 = vand.u32 %v2480, 2147483648
        %v2538 = vor.u32 1.1754944e-38, %v2537
        %v2539 = vsel %vm2536, %v2538, %v2534
        %v2540 = vmul.f32 %v2468, %v2539
        %v2542 = vsel %vm1557, %v2495, 0
        %2544 = vmatpush.msra.mxu0 0.0
        %2545 = vmatpush.msra.mxu0 0.0
        %2546 = vmatpush.msra.mxu0 0.0
        %2547 = vmatpush.msra.mxu0 0.0
        %2548 = vmatpush.msra.mxu0 0.0
        %2549 = vmatpush.msra.mxu0 0.0
        %2550 = vmatpush.msra.mxu0 0.0
        %2551 = vmatpush.msra.mxu0 0.0
        %2552 = vmatpush.msra.mxu0 0.0
        %2553 = vmatpush.msra.mxu0 0.0
        %2554 = vmatpush.msra.mxu0 0.0
        %2555 = vmatpush.msra.mxu0 0.0
        %2556 = vmatpush.msra.mxu0 0.0
        %2557 = vmatpush.msra.mxu0 0.0
        %2558 = vmatpush.msra.mxu0 0.0
        %2559 = vmatpush.msra.mxu0 %v2334
        %2560 = vmatmul.f32.gmra.mxu0 %v2542
        %v2561 = vpop.f32.mrf.mxu0
        %v2562 = vadd.f32 0.0, %v2561
        %2563 = vdwg.mxu0
        %v2565 = vsel %vm1557, %v2510, 0
        %2567 = vmatpush.msra.mxu0 0.0
        %2568 = vmatpush.msra.mxu0 0.0
        %2569 = vmatpush.msra.mxu0 0.0
        %2570 = vmatpush.msra.mxu0 0.0
        %2571 = vmatpush.msra.mxu0 0.0
        %2572 = vmatpush.msra.mxu0 0.0
        %2573 = vmatpush.msra.mxu0 0.0
        %2574 = vmatpush.msra.mxu0 0.0
        %2575 = vmatpush.msra.mxu0 0.0
        %2576 = vmatpush.msra.mxu0 0.0
        %2577 = vmatpush.msra.mxu0 0.0
        %2578 = vmatpush.msra.mxu0 0.0
        %2579 = vmatpush.msra.mxu0 0.0
        %2580 = vmatpush.msra.mxu0 0.0
        %2581 = vmatpush.msra.mxu0 0.0
        %2582 = vmatpush.msra.mxu0 %v2336
        %2583 = vmatmul.f32.gmra.mxu0 %v2565
        %v2584 = vpop.f32.mrf.mxu0
        %v2585 = vadd.f32 0.0, %v2584
        %2586 = vdwg.mxu0
        %v2588 = vsel %vm1557, %v2525, 0
        %2590 = vmatpush.msra.mxu0 0.0
        %2591 = vmatpush.msra.mxu0 0.0
        %2592 = vmatpush.msra.mxu0 0.0
        %2593 = vmatpush.msra.mxu0 0.0
        %2594 = vmatpush.msra.mxu0 0.0
        %2595 = vmatpush.msra.mxu0 0.0
        %2596 = vmatpush.msra.mxu0 0.0
        %2597 = vmatpush.msra.mxu0 0.0
        %2598 = vmatpush.msra.mxu0 0.0
        %2599 = vmatpush.msra.mxu0 0.0
        %2600 = vmatpush.msra.mxu0 0.0
        %2601 = vmatpush.msra.mxu0 0.0
        %2602 = vmatpush.msra.mxu0 0.0
        %2603 = vmatpush.msra.mxu0 0.0
        %2604 = vmatpush.msra.mxu0 0.0
        %2605 = vmatpush.msra.mxu0 %v2338
        %2606 = vmatmul.f32.gmra.mxu0 %v2588
        %v2607 = vpop.f32.mrf.mxu0
        %v2608 = vadd.f32 0.0, %v2607
        %2609 = vdwg.mxu0
        %v2611 = vsel %vm1557, %v2540, 0
        %2613 = vmatpush.msra.mxu0 0.0
        %2614 = vmatpush.msra.mxu0 0.0
        %2615 = vmatpush.msra.mxu0 0.0
        %2616 = vmatpush.msra.mxu0 0.0
        %2617 = vmatpush.msra.mxu0 0.0
        %2618 = vmatpush.msra.mxu0 0.0
        %2619 = vmatpush.msra.mxu0 0.0
        %2620 = vmatpush.msra.mxu0 0.0
        %2621 = vmatpush.msra.mxu0 0.0
        %2622 = vmatpush.msra.mxu0 0.0
        %2623 = vmatpush.msra.mxu0 0.0
        %2624 = vmatpush.msra.mxu0 0.0
        %2625 = vmatpush.msra.mxu0 0.0
        %2626 = vmatpush.msra.mxu0 0.0
        %2627 = vmatpush.msra.mxu0 0.0
        %2628 = vmatpush.msra.mxu0 %v2340
        %2629 = vmatmul.f32.gmra.mxu0 %v2611
        %v2630 = vpop.f32.mrf.mxu0
        %v2631 = vadd.f32 0.0, %v2630
        %2632 = vdwg.mxu0
        %v2633 = vrot.slane %v2608, 4
        %v2634 = vsel %vm1203, %v2633, %v2562
        %v2635 = vrot.slane %v2562, 4
        %v2636 = vsel %vm1203, %v2608, %v2635
        %v2638 = vunpack.c.l.s4 1983009808
        %v2639 = vunpack.c.0.s8 %v2638
        %v2640 = vperm.slane %v2634, %v2639
        %v2642 = vunpack.c.l.s4 1983009808
        %v2643 = vunpack.c.0.s8 %v2642
        %v2644 = vperm.slane %v2636, %v2643
        %v2645 = vrot.slane %v2631, 4
        %v2646 = vsel %vm1203, %v2645, %v2585
        %v2647 = vrot.slane %v2585, 4
        %v2648 = vsel %vm1203, %v2631, %v2647
        %v2650 = vunpack.c.l.s4 1983009808
        %v2651 = vunpack.c.0.s8 %v2650
        %v2652 = vperm.slane %v2646, %v2651
        %v2654 = vunpack.c.l.s4 1983009808
        %v2655 = vunpack.c.0.s8 %v2654
        %v2656 = vperm.slane %v2648, %v2655
        %v2657 = vrot.slane %v2652, 4
        %v2658 = vsel %vm1203, %v2657, %v2640
        %v2659 = vrot.slane %v2640, 4
        %v2660 = vsel %vm1203, %v2652, %v2659
        %v2662 = vunpack.c.l.s4 1934713408
        %v2663 = vunpack.c.0.s8 %v2662
        %v2664 = vperm.slane %v2658, %v2663
        %v2666 = vunpack.c.l.s4 1934713408
        %v2667 = vunpack.c.0.s8 %v2666
        %v2668 = vperm.slane %v2660, %v2667
        %v2669 = vrot.slane %v2656, 4
        %v2670 = vsel %vm1203, %v2669, %v2644
        %v2671 = vrot.slane %v2644, 4
        %v2672 = vsel %vm1203, %v2656, %v2671
        %v2674 = vunpack.c.l.s4 1934713408
        %v2675 = vunpack.c.0.s8 %v2674
        %v2676 = vperm.slane %v2670, %v2675
        %v2678 = vunpack.c.l.s4 1934713408
        %v2679 = vunpack.c.0.s8 %v2678
        %v2680 = vperm.slane %v2672, %v2679
        %v2681 = vrot.slane %v2664, 4
        %v2682 = vsel %vm1203, 0.0, %v2681
        %v2683 = vrot.slane %v2668, 4
        %v2684 = vsel %vm1203, 0.0, %v2683
        %v2685 = vrot.slane %v2676, 4
        %v2686 = vsel %vm1203, 0.0, %v2685
        %v2687 = vrot.slane %v2680, 4
        %v2688 = vsel %vm1203, 0.0, %v2687
        %v2689 = vsel %vm1203, %v2683, %v2664
        %v2691 = vunpack.c.l.s4 1983009808
        %v2692 = vunpack.c.0.s8 %v2691
        %v2693 = vperm.slane %v2689, %v2692
        %v2694 = vrot.slane %v2684, 4
        %v2695 = vsel %vm1203, %v2694, %v2682
        %v2697 = vunpack.c.l.s4 1983009808
        %v2698 = vunpack.c.0.s8 %v2697
        %v2699 = vperm.slane %v2695, %v2698
        %v2700 = vsel %vm1203, %v2687, %v2676
        %v2702 = vunpack.c.l.s4 1983009808
        %v2703 = vunpack.c.0.s8 %v2702
        %v2704 = vperm.slane %v2700, %v2703
        %v2705 = vrot.slane %v2688, 4
        %v2706 = vsel %vm1203, %v2705, %v2686
        %v2708 = vunpack.c.l.s4 1983009808
        %v2709 = vunpack.c.0.s8 %v2708
        %v2710 = vperm.slane %v2706, %v2709
        %v2711 = vrot.slane %v2699, 4
        %v2712 = vsel %vm1203, %v2711, %v2693
        %v2713 = vrot.slane %v2693, 4
        %v2714 = vsel %vm1203, %v2699, %v2713
        %v2716 = vunpack.c.l.s4 1934713408
        %v2717 = vunpack.c.0.s8 %v2716
        %v2718 = vperm.slane %v2712, %v2717
        %v2720 = vunpack.c.l.s4 1934713408
        %v2721 = vunpack.c.0.s8 %v2720
        %v2722 = vperm.slane %v2714, %v2721
        %v2723 = vrot.slane %v2710, 4
        %v2724 = vsel %vm1203, %v2723, %v2704
        %v2725 = vrot.slane %v2704, 4
        %v2726 = vsel %vm1203, %v2710, %v2725
        %v2728 = vunpack.c.l.s4 1934713408
        %v2729 = vunpack.c.0.s8 %v2728
        %v2730 = vperm.slane %v2724, %v2729
        %v2732 = vunpack.c.l.s4 1934713408
        %v2733 = vunpack.c.0.s8 %v2732
        %v2734 = vperm.slane %v2726, %v2733
        %v2735 = vrot.slane %v2730, 4
        %v2736 = vsel %vm1203, %v2735, %v2718
        %v2737 = vrot.slane %v2718, 4
        %v2738 = vsel %vm1203, %v2730, %v2737
        %v2739 = vrot.slane %v2734, 4
        %v2740 = vsel %vm1203, %v2739, %v2722
        %v2741 = vrot.slane %v2722, 4
        %v2742 = vsel %vm1203, %v2734, %v2741
        %2744 = vrot.lane.b32.xlu0 %v2738, 8
        %v2745 = vpop.permute.xlu0 %2744
        %2748 = vrot.lane.b32.xlu0 %v2740, 16
        %v2749 = vpop.permute.xlu0 %2748
        %2752 = vrot.lane.b32.xlu0 %v2742, 24
        %v2753 = vpop.permute.xlu0 %2752
        %v2755 = vsel %vm1557, %v2736, %v2745
        %v2756 = vsel %vm1973, %v2755, %v2749
        %v2757 = vsel %vm1975, %v2756, %v2753
        %v2759 = vperm.slane %v1121, 0
        %v2762 = vsel %vm1162, %v1976, 0
        %v2765 = vsel %vm1162, %v2757, 0
        %2767 = vmatpush.msra.mxu0 0.0
        %2768 = vmatpush.msra.mxu0 0.0
        %2769 = vmatpush.msra.mxu0 0.0
        %2770 = vmatpush.msra.mxu0 0.0
        %2771 = vmatpush.msra.mxu0 0.0
        %2772 = vmatpush.msra.mxu0 0.0
        %2773 = vmatpush.msra.mxu0 0.0
        %2774 = vmatpush.msra.mxu0 0.0
        %2775 = vmatpush.msra.mxu0 0.0
        %2776 = vmatpush.msra.mxu0 0.0
        %2777 = vmatpush.msra.mxu0 0.0
        %2778 = vmatpush.msra.mxu0 0.0
        %2779 = vmatpush.msra.mxu0 %v1120
        %2780 = vmatpush.msra.mxu0 %v1119
        %2781 = vmatpush.msra.mxu0 %v1118
        %2782 = vmatpush.msra.mxu0 %v1117
        %2783 = vmatmul.f32.gmra.mxu0 %v2762
        %v2784 = vpop.f32.mrf.mxu0
        %v2785 = vadd.f32 %v2759, %v2784
        %2786 = vmatmul.f32.gmra.mxu0 %v2765
        %v2787 = vpop.f32.mrf.mxu0
        %v2788 = vadd.f32 %v2759, %v2787
        %2789 = vdwg.mxu0
        %v2790 = vadd.f32 %v1106, %v2785
        %v2791 = vadd.f32 %v1107, %v2788
        %v2792 = vld [vmem:[%s1087] sm:$0x1]
        %v2793 = vld [vmem:[%s1090] sm:$0x1]
        %v2794 = vsel %vm1162, %v2790, 0.0
        %2795 = vadd.xlane.f32.xlu0 %v2794
        %v2796 = vpop.xlane.xlu0 %2795
        %v2797 = vsel %vm1162, %v2791, 0.0
        %2798 = vadd.xlane.f32.xlu0 %v2797
        %v2799 = vpop.xlane.xlu0 %2798
        %v2800 = vrcp.pop 32.0
        %v2801 = vmul.f32 32.0, %v2800
        %v2802 = vsub.f32 1.0, %v2801
        %v2803 = vmul.f32 %v2800, %v2802
        %v2804 = vadd.f32 %v2800, %v2803
        %vm2805 = vweird.f32 %v2800
        %v2806 = vsel %vm2805, %v2800, %v2804
        %v2807 = vmul.f32 %v2796, %v2806
        %v2808 = vmul.f32 %v2799, %v2806
        %v2809 = vsub.f32 %v2790, %v2807
        %v2810 = vsub.f32 %v2791, %v2808
        %v2811 = vmul.f32 %v2809, %v2809
        %v2812 = vmul.f32 %v2810, %v2810
        %v2813 = vsel %vm1162, %v2811, 0.0
        %2814 = vadd.xlane.f32.xlu0 %v2813
        %v2815 = vpop.xlane.xlu0 %2814
        %v2816 = vsel %vm1162, %v2812, 0.0
        %2817 = vadd.xlane.f32.xlu0 %v2816
        %v2818 = vpop.xlane.xlu0 %2817
        %v2819 = vmul.f32 %v2815, %v2806
        %v2820 = vmul.f32 %v2818, %v2806
        %v2821 = vadd.f32 %v2819, 1e-05
        %v2822 = vadd.f32 %v2820, 1e-05
        %v2823 = vrsqrt.pop %v2821
        %v2824 = vmul.f32 %v2823, %v2821
        %v2825 = vmul.f32 %v2824, %v2823
        %v2826 = vmul.f32 0.5, %v2825
        %v2827 = vsub.f32 1.5, %v2826
        %v2828 = vmul.f32 %v2823, %v2827
        %vm2829 = vweird.f32 %v2821
        %vm2830 = vweird.f32 %v2823
        %vm2831 = vmor %vm2829, %vm2830
        %v2832 = vsel %vm2831, %v2823, %v2828
        %v2833 = vrsqrt.pop %v2822
        %v2834 = vmul.f32 %v2833, %v2822
        %v2835 = vmul.f32 %v2834, %v2833
        %v2836 = vmul.f32 0.5, %v2835
        %v2837 = vsub.f32 1.5, %v2836
        %v2838 = vmul.f32 %v2833, %v2837
        %vm2839 = vweird.f32 %v2822
        %vm2840 = vweird.f32 %v2833
        %vm2841 = vmor %vm2839, %vm2840
        %v2842 = vsel %vm2841, %v2833, %v2838
        %v2843 = vmul.f32 %v2809, %v2832
        %v2844 = vmul.f32 %v2810, %v2842
        %v2846 = vperm.slane %v2792, 0
        %v2848 = vmul.f32 %v2843, %v2846
        %v2849 = vmul.f32 %v2844, %v2846
        %v2851 = vperm.slane %v2793, 0
        %v2853 = vadd.f32 %v2848, %v2851
        %v2854 = vadd.f32 %v2849, %v2851
        %v2856 = vperm.slane %v1126, 0
        %v2859 = vsel %vm1162, %v2853, 0
        %v2862 = vsel %vm1162, %v2854, 0
        %2864 = vmatpush.msra.mxu0 0.0
        %2865 = vmatpush.msra.mxu0 0.0
        %2866 = vmatpush.msra.mxu0 0.0
        %2867 = vmatpush.msra.mxu0 0.0
        %2868 = vmatpush.msra.mxu0 0.0
        %2869 = vmatpush.msra.mxu0 0.0
        %2870 = vmatpush.msra.mxu0 0.0
        %2871 = vmatpush.msra.mxu0 0.0
        %2872 = vmatpush.msra.mxu0 0.0
        %2873 = vmatpush.msra.mxu0 0.0
        %2874 = vmatpush.msra.mxu0 0.0
        %2875 = vmatpush.msra.mxu0 0.0
        %2876 = vmatpush.msra.mxu0 %v1125
        %2877 = vmatpush.msra.mxu0 %v1124
        %2878 = vmatpush.msra.mxu0 %v1123
        %2879 = vmatpush.msra.mxu0 %v1122
        %2880 = vmatmul.f32.gmra.mxu0 %v2859
        %v2881 = vpop.f32.mrf.mxu0
        %v2882 = vadd.f32 %v2856, %v2881
        %2883 = vmatmul.f32.gmra.mxu0 %v2862
        %v2884 = vpop.f32.mrf.mxu0
        %v2885 = vadd.f32 %v2856, %v2884
        %2886 = vdwg.mxu0
        %v2888 = vperm.slane %v1131, 0
        %v2891 = vsel %vm1162, %v1108, 0
        %v2894 = vsel %vm1162, %v1109, 0
        %v2897 = vsel %vm1162, %v1110, 0
        %v2900 = vsel %vm1162, %v1111, 0
        %2902 = vmatpush.msra.mxu0 0.0
        %2903 = vmatpush.msra.mxu0 0.0
        %2904 = vmatpush.msra.mxu0 0.0
        %2905 = vmatpush.msra.mxu0 0.0
        %2906 = vmatpush.msra.mxu0 0.0
        %2907 = vmatpush.msra.mxu0 0.0
        %2908 = vmatpush.msra.mxu0 0.0
        %2909 = vmatpush.msra.mxu0 0.0
        %2910 = vmatpush.msra.mxu0 0.0
        %2911 = vmatpush.msra.mxu0 0.0
        %2912 = vmatpush.msra.mxu0 0.0
        %2913 = vmatpush.msra.mxu0 0.0
        %2914 = vmatpush.msra.mxu0 %v1130
        %2915 = vmatpush.msra.mxu0 %v1129
        %2916 = vmatpush.msra.mxu0 %v1128
        %2917 = vmatpush.msra.mxu0 %v1127
        %2918 = vmatmul.f32.gmra.mxu0 %v2891
        %v2919 = vpop.f32.mrf.mxu0
        %v2920 = vadd.f32 %v2888, %v2919
        %2921 = vmatmul.f32.gmra.mxu0 %v2894
        %v2922 = vpop.f32.mrf.mxu0
        %v2923 = vadd.f32 %v2888, %v2922
        %2924 = vmatmul.f32.gmra.mxu0 %v2897
        %v2925 = vpop.f32.mrf.mxu0
        %v2926 = vadd.f32 %v2888, %v2925
        %2927 = vmatmul.f32.gmra.mxu0 %v2900
        %v2928 = vpop.f32.mrf.mxu0
        %v2929 = vadd.f32 %v2888, %v2928
        %2930 = vdwg.mxu0
        %2932 = vrot.lane.b32.xlu0 %v2882, 120
        %v2933 = vpop.permute.xlu0 %2932
        %2935 = vrot.lane.b32.xlu0 %v2882, 112
        %v2936 = vpop.permute.xlu0 %2935
        %2938 = vrot.lane.b32.xlu0 %v2882, 104
        %v2939 = vpop.permute.xlu0 %2938
        %v2941 = vrot.slane %v2936, 4
        %v2942 = vsel %vm1203, %v2941, %v2882
        %v2943 = vrot.slane %v2882, 4
        %v2944 = vsel %vm1203, %v2936, %v2943
        %v2946 = vunpack.c.l.s4 1983009808
        %v2947 = vunpack.c.0.s8 %v2946
        %v2948 = vperm.slane %v2942, %v2947
        %v2950 = vunpack.c.l.s4 1983009808
        %v2951 = vunpack.c.0.s8 %v2950
        %v2952 = vperm.slane %v2944, %v2951
        %v2953 = vrot.slane %v2939, 4
        %v2954 = vsel %vm1203, %v2953, %v2933
        %v2955 = vrot.slane %v2933, 4
        %v2956 = vsel %vm1203, %v2939, %v2955
        %v2958 = vunpack.c.l.s4 1983009808
        %v2959 = vunpack.c.0.s8 %v2958
        %v2960 = vperm.slane %v2954, %v2959
        %v2962 = vunpack.c.l.s4 1983009808
        %v2963 = vunpack.c.0.s8 %v2962
        %v2964 = vperm.slane %v2956, %v2963
        %v2965 = vrot.slane %v2960, 4
        %v2966 = vsel %vm1203, %v2965, %v2948
        %v2967 = vrot.slane %v2948, 4
        %v2968 = vsel %vm1203, %v2960, %v2967
        %v2970 = vunpack.c.l.s4 1934713408
        %v2971 = vunpack.c.0.s8 %v2970
        %v2972 = vperm.slane %v2966, %v2971
        %v2974 = vunpack.c.l.s4 1934713408
        %v2975 = vunpack.c.0.s8 %v2974
        %v2976 = vperm.slane %v2968, %v2975
        %v2977 = vrot.slane %v2964, 4
        %v2978 = vsel %vm1203, %v2977, %v2952
        %v2979 = vrot.slane %v2952, 4
        %v2980 = vsel %vm1203, %v2964, %v2979
        %v2982 = vunpack.c.l.s4 1934713408
        %v2983 = vunpack.c.0.s8 %v2982
        %v2984 = vperm.slane %v2978, %v2983
        %v2986 = vunpack.c.l.s4 1934713408
        %v2987 = vunpack.c.0.s8 %v2986
        %v2988 = vperm.slane %v2980, %v2987
        %v2989 = vrot.slane %v2972, 4
        %v2990 = vsel %vm1203, 0.0, %v2989
        %v2991 = vrot.slane %v2976, 4
        %v2992 = vsel %vm1203, 0.0, %v2991
        %v2993 = vrot.slane %v2984, 4
        %v2994 = vsel %vm1203, 0.0, %v2993
        %v2995 = vrot.slane %v2988, 4
        %v2996 = vsel %vm1203, 0.0, %v2995
        %v2997 = vsel %vm1203, %v2991, %v2972
        %v2999 = vunpack.c.l.s4 1983009808
        %v3000 = vunpack.c.0.s8 %v2999
        %v3001 = vperm.slane %v2997, %v3000
        %v3002 = vrot.slane %v2992, 4
        %v3003 = vsel %vm1203, %v3002, %v2990
        %v3005 = vunpack.c.l.s4 1983009808
        %v3006 = vunpack.c.0.s8 %v3005
        %v3007 = vperm.slane %v3003, %v3006
        %v3008 = vsel %vm1203, %v2995, %v2984
        %v3010 = vunpack.c.l.s4 1983009808
        %v3011 = vunpack.c.0.s8 %v3010
        %v3012 = vperm.slane %v3008, %v3011
        %v3013 = vrot.slane %v2996, 4
        %v3014 = vsel %vm1203, %v3013, %v2994
        %v3016 = vunpack.c.l.s4 1983009808
        %v3017 = vunpack.c.0.s8 %v3016
        %v3018 = vperm.slane %v3014, %v3017
        %v3019 = vrot.slane %v3007, 4
        %v3020 = vsel %vm1203, %v3019, %v3001
        %v3021 = vrot.slane %v3001, 4
        %v3022 = vsel %vm1203, %v3007, %v3021
        %v3024 = vunpack.c.l.s4 1934713408
        %v3025 = vunpack.c.0.s8 %v3024
        %v3026 = vperm.slane %v3020, %v3025
        %v3028 = vunpack.c.l.s4 1934713408
        %v3029 = vunpack.c.0.s8 %v3028
        %v3030 = vperm.slane %v3022, %v3029
        %v3031 = vrot.slane %v3018, 4
        %v3032 = vsel %vm1203, %v3031, %v3012
        %v3033 = vrot.slane %v3012, 4
        %v3034 = vsel %vm1203, %v3018, %v3033
        %v3036 = vunpack.c.l.s4 1934713408
        %v3037 = vunpack.c.0.s8 %v3036
        %v3038 = vperm.slane %v3032, %v3037
        %v3040 = vunpack.c.l.s4 1934713408
        %v3041 = vunpack.c.0.s8 %v3040
        %v3042 = vperm.slane %v3034, %v3041
        %v3043 = vrot.slane %v3038, 4
        %v3044 = vsel %vm1203, %v3043, %v3026
        %v3045 = vrot.slane %v3026, 4
        %v3046 = vsel %vm1203, %v3038, %v3045
        %v3047 = vrot.slane %v3042, 4
        %v3048 = vsel %vm1203, %v3047, %v3030
        %v3049 = vrot.slane %v3030, 4
        %v3050 = vsel %vm1203, %v3042, %v3049
        %3053 = vrot.lane.b32.xlu0 %v2920, 120
        %v3054 = vpop.permute.xlu0 %3053
        %3055 = vrot.lane.b32.xlu0 %v2923, 120
        %v3056 = vpop.permute.xlu0 %3055
        %3059 = vrot.lane.b32.xlu0 %v2920, 112
        %v3060 = vpop.permute.xlu0 %3059
        %3061 = vrot.lane.b32.xlu0 %v2923, 112
        %v3062 = vpop.permute.xlu0 %3061
        %3065 = vrot.lane.b32.xlu0 %v2920, 104
        %v3066 = vpop.permute.xlu0 %3065
        %3067 = vrot.lane.b32.xlu0 %v2923, 104
        %v3068 = vpop.permute.xlu0 %3067
        %v3071 = vrot.slane %v3060, 4
        %v3072 = vsel %vm1203, %v3071, %v2920
        %v3073 = vrot.slane %v2920, 4
        %v3074 = vsel %vm1203, %v3060, %v3073
        %v3076 = vunpack.c.l.s4 1983009808
        %v3077 = vunpack.c.0.s8 %v3076
        %v3078 = vperm.slane %v3072, %v3077
        %v3080 = vunpack.c.l.s4 1983009808
        %v3081 = vunpack.c.0.s8 %v3080
        %v3082 = vperm.slane %v3074, %v3081
        %v3083 = vrot.slane %v3066, 4
        %v3084 = vsel %vm1203, %v3083, %v3054
        %v3085 = vrot.slane %v3054, 4
        %v3086 = vsel %vm1203, %v3066, %v3085
        %v3088 = vunpack.c.l.s4 1983009808
        %v3089 = vunpack.c.0.s8 %v3088
        %v3090 = vperm.slane %v3084, %v3089
        %v3092 = vunpack.c.l.s4 1983009808
        %v3093 = vunpack.c.0.s8 %v3092
        %v3094 = vperm.slane %v3086, %v3093
        %v3095 = vrot.slane %v3090, 4
        %v3096 = vsel %vm1203, %v3095, %v3078
        %v3097 = vrot.slane %v3078, 4
        %v3098 = vsel %vm1203, %v3090, %v3097
        %v3100 = vunpack.c.l.s4 1934713408
        %v3101 = vunpack.c.0.s8 %v3100
        %v3102 = vperm.slane %v3096, %v3101
        %v3104 = vunpack.c.l.s4 1934713408
        %v3105 = vunpack.c.0.s8 %v3104
        %v3106 = vperm.slane %v3098, %v3105
        %v3107 = vrot.slane %v3094, 4
        %v3108 = vsel %vm1203, %v3107, %v3082
        %v3109 = vrot.slane %v3082, 4
        %v3110 = vsel %vm1203, %v3094, %v3109
        %v3112 = vunpack.c.l.s4 1934713408
        %v3113 = vunpack.c.0.s8 %v3112
        %v3114 = vperm.slane %v3108, %v3113
        %v3116 = vunpack.c.l.s4 1934713408
        %v3117 = vunpack.c.0.s8 %v3116
        %v3118 = vperm.slane %v3110, %v3117
        %v3119 = vrot.slane %v3102, 4
        %v3120 = vsel %vm1203, 0.0, %v3119
        %v3121 = vrot.slane %v3106, 4
        %v3122 = vsel %vm1203, 0.0, %v3121
        %v3123 = vrot.slane %v3114, 4
        %v3124 = vsel %vm1203, 0.0, %v3123
        %v3125 = vrot.slane %v3118, 4
        %v3126 = vsel %vm1203, 0.0, %v3125
        %v3127 = vrot.slane %v3062, 4
        %v3128 = vsel %vm1203, %v3127, %v2923
        %v3129 = vrot.slane %v2923, 4
        %v3130 = vsel %vm1203, %v3062, %v3129
        %v3132 = vunpack.c.l.s4 1983009808
        %v3133 = vunpack.c.0.s8 %v3132
        %v3134 = vperm.slane %v3128, %v3133
        %v3136 = vunpack.c.l.s4 1983009808
        %v3137 = vunpack.c.0.s8 %v3136
        %v3138 = vperm.slane %v3130, %v3137
        %v3139 = vrot.slane %v3068, 4
        %v3140 = vsel %vm1203, %v3139, %v3056
        %v3141 = vrot.slane %v3056, 4
        %v3142 = vsel %vm1203, %v3068, %v3141
        %v3144 = vunpack.c.l.s4 1983009808
        %v3145 = vunpack.c.0.s8 %v3144
        %v3146 = vperm.slane %v3140, %v3145
        %v3148 = vunpack.c.l.s4 1983009808
        %v3149 = vunpack.c.0.s8 %v3148
        %v3150 = vperm.slane %v3142, %v3149
        %v3151 = vrot.slane %v3146, 4
        %v3152 = vsel %vm1203, %v3151, %v3134
        %v3153 = vrot.slane %v3134, 4
        %v3154 = vsel %vm1203, %v3146, %v3153
        %v3156 = vunpack.c.l.s4 1934713408
        %v3157 = vunpack.c.0.s8 %v3156
        %v3158 = vperm.slane %v3152, %v3157
        %v3160 = vunpack.c.l.s4 1934713408
        %v3161 = vunpack.c.0.s8 %v3160
        %v3162 = vperm.slane %v3154, %v3161
        %v3163 = vrot.slane %v3150, 4
        %v3164 = vsel %vm1203, %v3163, %v3138
        %v3165 = vrot.slane %v3138, 4
        %v3166 = vsel %vm1203, %v3150, %v3165
        %v3168 = vunpack.c.l.s4 1934713408
        %v3169 = vunpack.c.0.s8 %v3168
        %v3170 = vperm.slane %v3164, %v3169
        %v3172 = vunpack.c.l.s4 1934713408
        %v3173 = vunpack.c.0.s8 %v3172
        %v3174 = vperm.slane %v3166, %v3173
        %v3175 = vrot.slane %v3158, 4
        %v3176 = vsel %vm1203, 0.0, %v3175
        %v3177 = vrot.slane %v3162, 4
        %v3178 = vsel %vm1203, 0.0, %v3177
        %v3179 = vrot.slane %v3170, 4
        %v3180 = vsel %vm1203, 0.0, %v3179
        %v3181 = vrot.slane %v3174, 4
        %v3182 = vsel %vm1203, 0.0, %v3181
        %v3183 = vsel %vm1203, %v3121, %v3102
        %v3185 = vunpack.c.l.s4 1983009808
        %v3186 = vunpack.c.0.s8 %v3185
        %v3187 = vperm.slane %v3183, %v3186
        %v3188 = vrot.slane %v3122, 4
        %v3189 = vsel %vm1203, %v3188, %v3120
        %v3191 = vunpack.c.l.s4 1983009808
        %v3192 = vunpack.c.0.s8 %v3191
        %v3193 = vperm.slane %v3189, %v3192
        %v3194 = vsel %vm1203, %v3125, %v3114
        %v3196 = vunpack.c.l.s4 1983009808
        %v3197 = vunpack.c.0.s8 %v3196
        %v3198 = vperm.slane %v3194, %v3197
        %v3199 = vrot.slane %v3126, 4
        %v3200 = vsel %vm1203, %v3199, %v3124
        %v3202 = vunpack.c.l.s4 1983009808
        %v3203 = vunpack.c.0.s8 %v3202
        %v3204 = vperm.slane %v3200, %v3203
        %v3205 = vrot.slane %v3193, 4
        %v3206 = vsel %vm1203, %v3205, %v3187
        %v3207 = vrot.slane %v3187, 4
        %v3208 = vsel %vm1203, %v3193, %v3207
        %v3210 = vunpack.c.l.s4 1934713408
        %v3211 = vunpack.c.0.s8 %v3210
        %v3212 = vperm.slane %v3206, %v3211
        %v3214 = vunpack.c.l.s4 1934713408
        %v3215 = vunpack.c.0.s8 %v3214
        %v3216 = vperm.slane %v3208, %v3215
        %v3217 = vrot.slane %v3204, 4
        %v3218 = vsel %vm1203, %v3217, %v3198
        %v3219 = vrot.slane %v3198, 4
        %v3220 = vsel %vm1203, %v3204, %v3219
        %v3222 = vunpack.c.l.s4 1934713408
        %v3223 = vunpack.c.0.s8 %v3222
        %v3224 = vperm.slane %v3218, %v3223
        %v3226 = vunpack.c.l.s4 1934713408
        %v3227 = vunpack.c.0.s8 %v3226
        %v3228 = vperm.slane %v3220, %v3227
        %v3229 = vrot.slane %v3224, 4
        %v3230 = vsel %vm1203, %v3229, %v3212
        %v3231 = vrot.slane %v3212, 4
        %v3232 = vsel %vm1203, %v3224, %v3231
        %v3233 = vrot.slane %v3228, 4
        %v3234 = vsel %vm1203, %v3233, %v3216
        %v3235 = vrot.slane %v3216, 4
        %v3236 = vsel %vm1203, %v3228, %v3235
        %v3237 = vsel %vm1203, %v3177, %v3158
        %v3239 = vunpack.c.l.s4 1983009808
        %v3240 = vunpack.c.0.s8 %v3239
        %v3241 = vperm.slane %v3237, %v3240
        %v3242 = vrot.slane %v3178, 4
        %v3243 = vsel %vm1203, %v3242, %v3176
        %v3245 = vunpack.c.l.s4 1983009808
        %v3246 = vunpack.c.0.s8 %v3245
        %v3247 = vperm.slane %v3243, %v3246
        %v3248 = vsel %vm1203, %v3181, %v3170
        %v3250 = vunpack.c.l.s4 1983009808
        %v3251 = vunpack.c.0.s8 %v3250
        %v3252 = vperm.slane %v3248, %v3251
        %v3253 = vrot.slane %v3182, 4
        %v3254 = vsel %vm1203, %v3253, %v3180
        %v3256 = vunpack.c.l.s4 1983009808
        %v3257 = vunpack.c.0.s8 %v3256
        %v3258 = vperm.slane %v3254, %v3257
        %v3259 = vrot.slane %v3247, 4
        %v3260 = vsel %vm1203, %v3259, %v3241
        %v3261 = vrot.slane %v3241, 4
        %v3262 = vsel %vm1203, %v3247, %v3261
        %v3264 = vunpack.c.l.s4 1934713408
        %v3265 = vunpack.c.0.s8 %v3264
        %v3266 = vperm.slane %v3260, %v3265
        %v3268 = vunpack.c.l.s4 1934713408
        %v3269 = vunpack.c.0.s8 %v3268
        %v3270 = vperm.slane %v3262, %v3269
        %v3271 = vrot.slane %v3258, 4
        %v3272 = vsel %vm1203, %v3271, %v3252
        %v3273 = vrot.slane %v3252, 4
        %v3274 = vsel %vm1203, %v3258, %v3273
        %v3276 = vunpack.c.l.s4 1934713408
        %v3277 = vunpack.c.0.s8 %v3276
        %v3278 = vperm.slane %v3272, %v3277
        %v3280 = vunpack.c.l.s4 1934713408
        %v3281 = vunpack.c.0.s8 %v3280
        %v3282 = vperm.slane %v3274, %v3281
        %v3283 = vrot.slane %v3278, 4
        %v3284 = vsel %vm1203, %v3283, %v3266
        %v3285 = vrot.slane %v3266, 4
        %v3286 = vsel %vm1203, %v3278, %v3285
        %v3287 = vrot.slane %v3282, 4
        %v3288 = vsel %vm1203, %v3287, %v3270
        %v3289 = vrot.slane %v3270, 4
        %v3290 = vsel %vm1203, %v3282, %v3289
        %3291 = vrot.lane.b32.xlu0 %v2920, 96
        %v3292 = vpop.permute.xlu0 %3291
        %3293 = vrot.lane.b32.xlu0 %v2923, 96
        %v3294 = vpop.permute.xlu0 %3293
        %3295 = vrot.lane.b32.xlu0 %v3054, 96
        %v3296 = vpop.permute.xlu0 %3295
        %3297 = vrot.lane.b32.xlu0 %v3056, 96
        %v3298 = vpop.permute.xlu0 %3297
        %3299 = vrot.lane.b32.xlu0 %v3060, 96
        %v3300 = vpop.permute.xlu0 %3299
        %3301 = vrot.lane.b32.xlu0 %v3062, 96
        %v3302 = vpop.permute.xlu0 %3301
        %3303 = vrot.lane.b32.xlu0 %v3066, 96
        %v3304 = vpop.permute.xlu0 %3303
        %3305 = vrot.lane.b32.xlu0 %v3068, 96
        %v3306 = vpop.permute.xlu0 %3305
        %v3315 = vrot.slane %v3300, 4
        %v3316 = vsel %vm1203, %v3315, %v3292
        %v3317 = vrot.slane %v3292, 4
        %v3318 = vsel %vm1203, %v3300, %v3317
        %v3320 = vunpack.c.l.s4 1983009808
        %v3321 = vunpack.c.0.s8 %v3320
        %v3322 = vperm.slane %v3316, %v3321
        %v3324 = vunpack.c.l.s4 1983009808
        %v3325 = vunpack.c.0.s8 %v3324
        %v3326 = vperm.slane %v3318, %v3325
        %v3327 = vrot.slane %v3304, 4
        %v3328 = vsel %vm1203, %v3327, %v3296
        %v3329 = vrot.slane %v3296, 4
        %v3330 = vsel %vm1203, %v3304, %v3329
        %v3332 = vunpack.c.l.s4 1983009808
        %v3333 = vunpack.c.0.s8 %v3332
        %v3334 = vperm.slane %v3328, %v3333
        %v3336 = vunpack.c.l.s4 1983009808
        %v3337 = vunpack.c.0.s8 %v3336
        %v3338 = vperm.slane %v3330, %v3337
        %v3339 = vrot.slane %v3334, 4
        %v3340 = vsel %vm1203, %v3339, %v3322
        %v3341 = vrot.slane %v3322, 4
        %v3342 = vsel %vm1203, %v3334, %v3341
        %v3344 = vunpack.c.l.s4 1934713408
        %v3345 = vunpack.c.0.s8 %v3344
        %v3346 = vperm.slane %v3340, %v3345
        %v3348 = vunpack.c.l.s4 1934713408
        %v3349 = vunpack.c.0.s8 %v3348
        %v3350 = vperm.slane %v3342, %v3349
        %v3351 = vrot.slane %v3338, 4
        %v3352 = vsel %vm1203, %v3351, %v3326
        %v3353 = vrot.slane %v3326, 4
        %v3354 = vsel %vm1203, %v3338, %v3353
        %v3356 = vunpack.c.l.s4 1934713408
        %v3357 = vunpack.c.0.s8 %v3356
        %v3358 = vperm.slane %v3352, %v3357
        %v3360 = vunpack.c.l.s4 1934713408
        %v3361 = vunpack.c.0.s8 %v3360
        %v3362 = vperm.slane %v3354, %v3361
        %v3363 = vrot.slane %v3346, 4
        %v3364 = vsel %vm1203, 0.0, %v3363
        %v3365 = vrot.slane %v3350, 4
        %v3366 = vsel %vm1203, 0.0, %v3365
        %v3367 = vrot.slane %v3358, 4
        %v3368 = vsel %vm1203, 0.0, %v3367
        %v3369 = vrot.slane %v3362, 4
        %v3370 = vsel %vm1203, 0.0, %v3369
        %v3371 = vrot.slane %v3302, 4
        %v3372 = vsel %vm1203, %v3371, %v3294
        %v3373 = vrot.slane %v3294, 4
        %v3374 = vsel %vm1203, %v3302, %v3373
        %v3376 = vunpack.c.l.s4 1983009808
        %v3377 = vunpack.c.0.s8 %v3376
        %v3378 = vperm.slane %v3372, %v3377
        %v3380 = vunpack.c.l.s4 1983009808
        %v3381 = vunpack.c.0.s8 %v3380
        %v3382 = vperm.slane %v3374, %v3381
        %v3383 = vrot.slane %v3306, 4
        %v3384 = vsel %vm1203, %v3383, %v3298
        %v3385 = vrot.slane %v3298, 4
        %v3386 = vsel %vm1203, %v3306, %v3385
        %v3388 = vunpack.c.l.s4 1983009808
        %v3389 = vunpack.c.0.s8 %v3388
        %v3390 = vperm.slane %v3384, %v3389
        %v3392 = vunpack.c.l.s4 1983009808
        %v3393 = vunpack.c.0.s8 %v3392
        %v3394 = vperm.slane %v3386, %v3393
        %v3395 = vrot.slane %v3390, 4
        %v3396 = vsel %vm1203, %v3395, %v3378
        %v3397 = vrot.slane %v3378, 4
        %v3398 = vsel %vm1203, %v3390, %v3397
        %v3400 = vunpack.c.l.s4 1934713408
        %v3401 = vunpack.c.0.s8 %v3400
        %v3402 = vperm.slane %v3396, %v3401
        %v3404 = vunpack.c.l.s4 1934713408
        %v3405 = vunpack.c.0.s8 %v3404
        %v3406 = vperm.slane %v3398, %v3405
        %v3407 = vrot.slane %v3394, 4
        %v3408 = vsel %vm1203, %v3407, %v3382
        %v3409 = vrot.slane %v3382, 4
        %v3410 = vsel %vm1203, %v3394, %v3409
        %v3412 = vunpack.c.l.s4 1934713408
        %v3413 = vunpack.c.0.s8 %v3412
        %v3414 = vperm.slane %v3408, %v3413
        %v3416 = vunpack.c.l.s4 1934713408
        %v3417 = vunpack.c.0.s8 %v3416
        %v3418 = vperm.slane %v3410, %v3417
        %v3419 = vrot.slane %v3402, 4
        %v3420 = vsel %vm1203, 0.0, %v3419
        %v3421 = vrot.slane %v3406, 4
        %v3422 = vsel %vm1203, 0.0, %v3421
        %v3423 = vrot.slane %v3414, 4
        %v3424 = vsel %vm1203, 0.0, %v3423
        %v3425 = vrot.slane %v3418, 4
        %v3426 = vsel %vm1203, 0.0, %v3425
        %v3427 = vsel %vm1203, %v3365, %v3346
        %v3429 = vunpack.c.l.s4 1983009808
        %v3430 = vunpack.c.0.s8 %v3429
        %v3431 = vperm.slane %v3427, %v3430
        %v3432 = vrot.slane %v3366, 4
        %v3433 = vsel %vm1203, %v3432, %v3364
        %v3435 = vunpack.c.l.s4 1983009808
        %v3436 = vunpack.c.0.s8 %v3435
        %v3437 = vperm.slane %v3433, %v3436
        %v3438 = vsel %vm1203, %v3369, %v3358
        %v3440 = vunpack.c.l.s4 1983009808
        %v3441 = vunpack.c.0.s8 %v3440
        %v3442 = vperm.slane %v3438, %v3441
        %v3443 = vrot.slane %v3370, 4
        %v3444 = vsel %vm1203, %v3443, %v3368
        %v3446 = vunpack.c.l.s4 1983009808
        %v3447 = vunpack.c.0.s8 %v3446
        %v3448 = vperm.slane %v3444, %v3447
        %v3449 = vrot.slane %v3437, 4
        %v3450 = vsel %vm1203, %v3449, %v3431
        %v3451 = vrot.slane %v3431, 4
        %v3452 = vsel %vm1203, %v3437, %v3451
        %v3454 = vunpack.c.l.s4 1934713408
        %v3455 = vunpack.c.0.s8 %v3454
        %v3456 = vperm.slane %v3450, %v3455
        %v3458 = vunpack.c.l.s4 1934713408
        %v3459 = vunpack.c.0.s8 %v3458
        %v3460 = vperm.slane %v3452, %v3459
        %v3461 = vrot.slane %v3448, 4
        %v3462 = vsel %vm1203, %v3461, %v3442
        %v3463 = vrot.slane %v3442, 4
        %v3464 = vsel %vm1203, %v3448, %v3463
        %v3466 = vunpack.c.l.s4 1934713408
        %v3467 = vunpack.c.0.s8 %v3466
        %v3468 = vperm.slane %v3462, %v3467
        %v3470 = vunpack.c.l.s4 1934713408
        %v3471 = vunpack.c.0.s8 %v3470
        %v3472 = vperm.slane %v3464, %v3471
        %v3473 = vrot.slane %v3468, 4
        %v3474 = vsel %vm1203, %v3473, %v3456
        %v3475 = vrot.slane %v3456, 4
        %v3476 = vsel %vm1203, %v3468, %v3475
        %v3477 = vrot.slane %v3472, 4
        %v3478 = vsel %vm1203, %v3477, %v3460
        %v3479 = vrot.slane %v3460, 4
        %v3480 = vsel %vm1203, %v3472, %v3479
        %v3481 = vsel %vm1203, %v3421, %v3402
        %v3483 = vunpack.c.l.s4 1983009808
        %v3484 = vunpack.c.0.s8 %v3483
        %v3485 = vperm.slane %v3481, %v3484
        %v3486 = vrot.slane %v3422, 4
        %v3487 = vsel %vm1203, %v3486, %v3420
        %v3489 = vunpack.c.l.s4 1983009808
        %v3490 = vunpack.c.0.s8 %v3489
        %v3491 = vperm.slane %v3487, %v3490
        %v3492 = vsel %vm1203, %v3425, %v3414
        %v3494 = vunpack.c.l.s4 1983009808
        %v3495 = vunpack.c.0.s8 %v3494
        %v3496 = vperm.slane %v3492, %v3495
        %v3497 = vrot.slane %v3426, 4
        %v3498 = vsel %vm1203, %v3497, %v3424
        %v3500 = vunpack.c.l.s4 1983009808
        %v3501 = vunpack.c.0.s8 %v3500
        %v3502 = vperm.slane %v3498, %v3501
        %v3503 = vrot.slane %v3491, 4
        %v3504 = vsel %vm1203, %v3503, %v3485
        %v3505 = vrot.slane %v3485, 4
        %v3506 = vsel %vm1203, %v3491, %v3505
        %v3508 = vunpack.c.l.s4 1934713408
        %v3509 = vunpack.c.0.s8 %v3508
        %v3510 = vperm.slane %v3504, %v3509
        %v3512 = vunpack.c.l.s4 1934713408
        %v3513 = vunpack.c.0.s8 %v3512
        %v3514 = vperm.slane %v3506, %v3513
        %v3515 = vrot.slane %v3502, 4
        %v3516 = vsel %vm1203, %v3515, %v3496
        %v3517 = vrot.slane %v3496, 4
        %v3518 = vsel %vm1203, %v3502, %v3517
        %v3520 = vunpack.c.l.s4 1934713408
        %v3521 = vunpack.c.0.s8 %v3520
        %v3522 = vperm.slane %v3516, %v3521
        %v3524 = vunpack.c.l.s4 1934713408
        %v3525 = vunpack.c.0.s8 %v3524
        %v3526 = vperm.slane %v3518, %v3525
        %v3527 = vrot.slane %v3522, 4
        %v3528 = vsel %vm1203, %v3527, %v3510
        %v3529 = vrot.slane %v3510, 4
        %v3530 = vsel %vm1203, %v3522, %v3529
        %v3531 = vrot.slane %v3526, 4
        %v3532 = vsel %vm1203, %v3531, %v3514
        %v3533 = vrot.slane %v3514, 4
        %v3534 = vsel %vm1203, %v3526, %v3533
        %v3536 = vsel %vm1557, %v3044, 0
        %v3539 = vsel %vm1557, %v3230, 0
        %v3542 = vsel %vm1557, %v3284, 0
        %3544 = vmatpush.xpose.msra.mxu0 0.0
        %3545 = vmatpush.xpose.msra.mxu0 0.0
        %3546 = vmatpush.xpose.msra.mxu0 0.0
        %3547 = vmatpush.xpose.msra.mxu0 0.0
        %3548 = vmatpush.xpose.msra.mxu0 0.0
        %3549 = vmatpush.xpose.msra.mxu0 0.0
        %3550 = vmatpush.xpose.msra.mxu0 0.0
        %3551 = vmatpush.xpose.msra.mxu0 0.0
        %3552 = vmatpush.xpose.msra.mxu0 0.0
        %3553 = vmatpush.xpose.msra.mxu0 0.0
        %3554 = vmatpush.xpose.msra.mxu0 0.0
        %3555 = vmatpush.xpose.msra.mxu0 0.0
        %3556 = vmatpush.xpose.msra.mxu0 0.0
        %3557 = vmatpush.xpose.msra.mxu0 0.0
        %3558 = vmatpush.xpose.msra.mxu0 %v3542
        %3559 = vmatpush.xpose.msra.mxu0 %v3539
        %3560 = vmatmul.f32.gmra.mxu0 %v3536
        %v3561 = vpop.f32.mrf.mxu0
        %v3562 = vadd.f32 0.0, %v3561
        %3563 = vdwg.mxu0
        %v3565 = vsel %vm1557, %v3046, 0
        %v3568 = vsel %vm1557, %v3232, 0
        %v3571 = vsel %vm1557, %v3286, 0
        %3573 = vmatpush.xpose.msra.mxu0 0.0
        %3574 = vmatpush.xpose.msra.mxu0 0.0
        %3575 = vmatpush.xpose.msra.mxu0 0.0
        %3576 = vmatpush.xpose.msra.mxu0 0.0
        %3577 = vmatpush.xpose.msra.mxu0 0.0
        %3578 = vmatpush.xpose.msra.mxu0 0.0
        %3579 = vmatpush.xpose.msra.mxu0 0.0
        %3580 = vmatpush.xpose.msra.mxu0 0.0
        %3581 = vmatpush.xpose.msra.mxu0 0.0
        %3582 = vmatpush.xpose.msra.mxu0 0.0
        %3583 = vmatpush.xpose.msra.mxu0 0.0
        %3584 = vmatpush.xpose.msra.mxu0 0.0
        %3585 = vmatpush.xpose.msra.mxu0 0.0
        %3586 = vmatpush.xpose.msra.mxu0 0.0
        %3587 = vmatpush.xpose.msra.mxu0 %v3571
        %3588 = vmatpush.xpose.msra.mxu0 %v3568
        %3589 = vmatmul.f32.gmra.mxu0 %v3565
        %v3590 = vpop.f32.mrf.mxu0
        %v3591 = vadd.f32 0.0, %v3590
        %3592 = vdwg.mxu0
        %v3594 = vsel %vm1557, %v3048, 0
        %v3597 = vsel %vm1557, %v3234, 0
        %v3600 = vsel %vm1557, %v3288, 0
        %3602 = vmatpush.xpose.msra.mxu0 0.0
        %3603 = vmatpush.xpose.msra.mxu0 0.0
        %3604 = vmatpush.xpose.msra.mxu0 0.0
        %3605 = vmatpush.xpose.msra.mxu0 0.0
        %3606 = vmatpush.xpose.msra.mxu0 0.0
        %3607 = vmatpush.xpose.msra.mxu0 0.0
        %3608 = vmatpush.xpose.msra.mxu0 0.0
        %3609 = vmatpush.xpose.msra.mxu0 0.0
        %3610 = vmatpush.xpose.msra.mxu0 0.0
        %3611 = vmatpush.xpose.msra.mxu0 0.0
        %3612 = vmatpush.xpose.msra.mxu0 0.0
        %3613 = vmatpush.xpose.msra.mxu0 0.0
        %3614 = vmatpush.xpose.msra.mxu0 0.0
        %3615 = vmatpush.xpose.msra.mxu0 0.0
        %3616 = vmatpush.xpose.msra.mxu0 %v3600
        %3617 = vmatpush.xpose.msra.mxu0 %v3597
        %3618 = vmatmul.f32.gmra.mxu0 %v3594
        %v3619 = vpop.f32.mrf.mxu0
        %v3620 = vadd.f32 0.0, %v3619
        %3621 = vdwg.mxu0
        %v3623 = vsel %vm1557, %v3050, 0
        %v3626 = vsel %vm1557, %v3236, 0
        %v3629 = vsel %vm1557, %v3290, 0
        %3631 = vmatpush.xpose.msra.mxu0 0.0
        %3632 = vmatpush.xpose.msra.mxu0 0.0
        %3633 = vmatpush.xpose.msra.mxu0 0.0
        %3634 = vmatpush.xpose.msra.mxu0 0.0
        %3635 = vmatpush.xpose.msra.mxu0 0.0
        %3636 = vmatpush.xpose.msra.mxu0 0.0
        %3637 = vmatpush.xpose.msra.mxu0 0.0
        %3638 = vmatpush.xpose.msra.mxu0 0.0
        %3639 = vmatpush.xpose.msra.mxu0 0.0
        %3640 = vmatpush.xpose.msra.mxu0 0.0
        %3641 = vmatpush.xpose.msra.mxu0 0.0
        %3642 = vmatpush.xpose.msra.mxu0 0.0
        %3643 = vmatpush.xpose.msra.mxu0 0.0
        %3644 = vmatpush.xpose.msra.mxu0 0.0
        %3645 = vmatpush.xpose.msra.mxu0 %v3629
        %3646 = vmatpush.xpose.msra.mxu0 %v3626
        %3647 = vmatmul.f32.gmra.mxu0 %v3623
        %v3648 = vpop.f32.mrf.mxu0
        %v3649 = vadd.f32 0.0, %v3648
        %3650 = vdwg.mxu0
        %v3651 = vsel %vm1973, %v3562, -inf
        %3652 = vmax.xlane.f32.xlu0 %v3651
        %v3653 = vpop.xlane.xlu0 %3652
        %v3654 = vsel %vm1973, %v3591, -inf
        %3655 = vmax.xlane.f32.xlu0 %v3654
        %v3656 = vpop.xlane.xlu0 %3655
        %v3657 = vsel %vm1973, %v3620, -inf
        %3658 = vmax.xlane.f32.xlu0 %v3657
        %v3659 = vpop.xlane.xlu0 %3658
        %v3660 = vsel %vm1973, %v3649, -inf
        %3661 = vmax.xlane.f32.xlu0 %v3660
        %v3662 = vpop.xlane.xlu0 %3661
        %v3663 = vsub.f32 %v3562, %v3653
        %v3664 = vsub.f32 %v3591, %v3656
        %v3665 = vsub.f32 %v3620, %v3659
        %v3666 = vsub.f32 %v3649, %v3662
        %v3667 = vmul.f32 %v3663, 1.442695
        %v3668 = vpow.pop %v3667
        %v3669 = vmul.f32 %v3664, 1.442695
        %v3670 = vpow.pop %v3669
        %v3671 = vmul.f32 %v3665, 1.442695
        %v3672 = vpow.pop %v3671
        %v3673 = vmul.f32 %v3666, 1.442695
        %v3674 = vpow.pop %v3673
        %v3675 = vsel %vm1973, %v3668, 0.0
        %3676 = vadd.xlane.f32.xlu0 %v3675
        %v3677 = vpop.xlane.xlu0 %3676
        %v3678 = vsel %vm1973, %v3670, 0.0
        %3679 = vadd.xlane.f32.xlu0 %v3678
        %v3680 = vpop.xlane.xlu0 %3679
        %v3681 = vsel %vm1973, %v3672, 0.0
        %3682 = vadd.xlane.f32.xlu0 %v3681
        %v3683 = vpop.xlane.xlu0 %3682
        %v3684 = vsel %vm1973, %v3674, 0.0
        %3685 = vadd.xlane.f32.xlu0 %v3684
        %v3686 = vpop.xlane.xlu0 %3685
        %v3687 = vrcp.pop %v3677
        %v3688 = vmul.f32 %v3677, %v3687
        %v3689 = vsub.f32 1.0, %v3688
        %v3690 = vmul.f32 %v3687, %v3689
        %v3691 = vadd.f32 %v3687, %v3690
        %vm3692 = vweird.f32 %v3677
        %vm3693 = vweird.f32 %v3687
        %vm3694 = vmor %vm3692, %vm3693
        %v3695 = vsel %vm3694, %v3687, %v3691
        %v3696 = vand.u32 2147483647, %v3677
        %vm3697 = vcmp.eq.f32.partialorder %v3696, 8.507059e+37
        %v3698 = vand.u32 %v3677, 2147483648
        %v3699 = vor.u32 1.1754944e-38, %v3698
        %v3700 = vsel %vm3697, %v3699, %v3695
        %v3701 = vmul.f32 %v3668, %v3700
        %v3702 = vrcp.pop %v3680
        %v3703 = vmul.f32 %v3680, %v3702
        %v3704 = vsub.f32 1.0, %v3703
        %v3705 = vmul.f32 %v3702, %v3704
        %v3706 = vadd.f32 %v3702, %v3705
        %vm3707 = vweird.f32 %v3680
        %vm3708 = vweird.f32 %v3702
        %vm3709 = vmor %vm3707, %vm3708
        %v3710 = vsel %vm3709, %v3702, %v3706
        %v3711 = vand.u32 2147483647, %v3680
        %vm3712 = vcmp.eq.f32.partialorder %v3711, 8.507059e+37
        %v3713 = vand.u32 %v3680, 2147483648
        %v3714 = vor.u32 1.1754944e-38, %v3713
        %v3715 = vsel %vm3712, %v3714, %v3710
        %v3716 = vmul.f32 %v3670, %v3715
        %v3717 = vrcp.pop %v3683
        %v3718 = vmul.f32 %v3683, %v3717
        %v3719 = vsub.f32 1.0, %v3718
        %v3720 = vmul.f32 %v3717, %v3719
        %v3721 = vadd.f32 %v3717, %v3720
        %vm3722 = vweird.f32 %v3683
        %vm3723 = vweird.f32 %v3717
        %vm3724 = vmor %vm3722, %vm3723
        %v3725 = vsel %vm3724, %v3717, %v3721
        %v3726 = vand.u32 2147483647, %v3683
        %vm3727 = vcmp.eq.f32.partialorder %v3726, 8.507059e+37
        %v3728 = vand.u32 %v3683, 2147483648
        %v3729 = vor.u32 1.1754944e-38, %v3728
        %v3730 = vsel %vm3727, %v3729, %v3725
        %v3731 = vmul.f32 %v3672, %v3730
        %v3732 = vrcp.pop %v3686
        %v3733 = vmul.f32 %v3686, %v3732
        %v3734 = vsub.f32 1.0, %v3733
        %v3735 = vmul.f32 %v3732, %v3734
        %v3736 = vadd.f32 %v3732, %v3735
        %vm3737 = vweird.f32 %v3686
        %vm3738 = vweird.f32 %v3732
        %vm3739 = vmor %vm3737, %vm3738
        %v3740 = vsel %vm3739, %v3732, %v3736
        %v3741 = vand.u32 2147483647, %v3686
        %vm3742 = vcmp.eq.f32.partialorder %v3741, 8.507059e+37
        %v3743 = vand.u32 %v3686, 2147483648
        %v3744 = vor.u32 1.1754944e-38, %v3743
        %v3745 = vsel %vm3742, %v3744, %v3740
        %v3746 = vmul.f32 %v3674, %v3745
        %v3748 = vsel %vm1973, %v3701, 0
        %3750 = vmatpush.msra.mxu0 0.0
        %3751 = vmatpush.msra.mxu0 0.0
        %3752 = vmatpush.msra.mxu0 0.0
        %3753 = vmatpush.msra.mxu0 0.0
        %3754 = vmatpush.msra.mxu0 0.0
        %3755 = vmatpush.msra.mxu0 0.0
        %3756 = vmatpush.msra.mxu0 0.0
        %3757 = vmatpush.msra.mxu0 0.0
        %3758 = vmatpush.msra.mxu0 0.0
        %3759 = vmatpush.msra.mxu0 0.0
        %3760 = vmatpush.msra.mxu0 0.0
        %3761 = vmatpush.msra.mxu0 0.0
        %3762 = vmatpush.msra.mxu0 0.0
        %3763 = vmatpush.msra.mxu0 0.0
        %3764 = vmatpush.msra.mxu0 %v3528
        %3765 = vmatpush.msra.mxu0 %v3474
        %3766 = vmatmul.f32.gmra.mxu0 %v3748
        %v3767 = vpop.f32.mrf.mxu0
        %v3768 = vadd.f32 0.0, %v3767
        %3769 = vdwg.mxu0
        %v3771 = vsel %vm1973, %v3716, 0
        %3773 = vmatpush.msra.mxu0 0.0
        %3774 = vmatpush.msra.mxu0 0.0
        %3775 = vmatpush.msra.mxu0 0.0
        %3776 = vmatpush.msra.mxu0 0.0
        %3777 = vmatpush.msra.mxu0 0.0
        %3778 = vmatpush.msra.mxu0 0.0
        %3779 = vmatpush.msra.mxu0 0.0
        %3780 = vmatpush.msra.mxu0 0.0
        %3781 = vmatpush.msra.mxu0 0.0
        %3782 = vmatpush.msra.mxu0 0.0
        %3783 = vmatpush.msra.mxu0 0.0
        %3784 = vmatpush.msra.mxu0 0.0
        %3785 = vmatpush.msra.mxu0 0.0
        %3786 = vmatpush.msra.mxu0 0.0
        %3787 = vmatpush.msra.mxu0 %v3530
        %3788 = vmatpush.msra.mxu0 %v3476
        %3789 = vmatmul.f32.gmra.mxu0 %v3771
        %v3790 = vpop.f32.mrf.mxu0
        %v3791 = vadd.f32 0.0, %v3790
        %3792 = vdwg.mxu0
        %v3794 = vsel %vm1973, %v3731, 0
        %3796 = vmatpush.msra.mxu0 0.0
        %3797 = vmatpush.msra.mxu0 0.0
        %3798 = vmatpush.msra.mxu0 0.0
        %3799 = vmatpush.msra.mxu0 0.0
        %3800 = vmatpush.msra.mxu0 0.0
        %3801 = vmatpush.msra.mxu0 0.0
        %3802 = vmatpush.msra.mxu0 0.0
        %3803 = vmatpush.msra.mxu0 0.0
        %3804 = vmatpush.msra.mxu0 0.0
        %3805 = vmatpush.msra.mxu0 0.0
        %3806 = vmatpush.msra.mxu0 0.0
        %3807 = vmatpush.msra.mxu0 0.0
        %3808 = vmatpush.msra.mxu0 0.0
        %3809 = vmatpush.msra.mxu0 0.0
        %3810 = vmatpush.msra.mxu0 %v3532
        %3811 = vmatpush.msra.mxu0 %v3478
        %3812 = vmatmul.f32.gmra.mxu0 %v3794
        %v3813 = vpop.f32.mrf.mxu0
        %v3814 = vadd.f32 0.0, %v3813
        %3815 = vdwg.mxu0
        %v3817 = vsel %vm1973, %v3746, 0
        %3819 = vmatpush.msra.mxu0 0.0
        %3820 = vmatpush.msra.mxu0 0.0
        %3821 = vmatpush.msra.mxu0 0.0
        %3822 = vmatpush.msra.mxu0 0.0
        %3823 = vmatpush.msra.mxu0 0.0
        %3824 = vmatpush.msra.mxu0 0.0
        %3825 = vmatpush.msra.mxu0 0.0
        %3826 = vmatpush.msra.mxu0 0.0
        %3827 = vmatpush.msra.mxu0 0.0
        %3828 = vmatpush.msra.mxu0 0.0
        %3829 = vmatpush.msra.mxu0 0.0
        %3830 = vmatpush.msra.mxu0 0.0
        %3831 = vmatpush.msra.mxu0 0.0
        %3832 = vmatpush.msra.mxu0 0.0
        %3833 = vmatpush.msra.mxu0 %v3534
        %3834 = vmatpush.msra.mxu0 %v3480
        %3835 = vmatmul.f32.gmra.mxu0 %v3817
        %v3836 = vpop.f32.mrf.mxu0
        %v3837 = vadd.f32 0.0, %v3836
        %3838 = vdwg.mxu0
        %v3839 = vrot.slane %v3814, 4
        %v3840 = vsel %vm1203, %v3839, %v3768
        %v3841 = vrot.slane %v3768, 4
        %v3842 = vsel %vm1203, %v3814, %v3841
        %v3844 = vunpack.c.l.s4 1983009808
        %v3845 = vunpack.c.0.s8 %v3844
        %v3846 = vperm.slane %v3840, %v3845
        %v3848 = vunpack.c.l.s4 1983009808
        %v3849 = vunpack.c.0.s8 %v3848
        %v3850 = vperm.slane %v3842, %v3849
        %v3851 = vrot.slane %v3837, 4
        %v3852 = vsel %vm1203, %v3851, %v3791
        %v3853 = vrot.slane %v3791, 4
        %v3854 = vsel %vm1203, %v3837, %v3853
        %v3856 = vunpack.c.l.s4 1983009808
        %v3857 = vunpack.c.0.s8 %v3856
        %v3858 = vperm.slane %v3852, %v3857
        %v3860 = vunpack.c.l.s4 1983009808
        %v3861 = vunpack.c.0.s8 %v3860
        %v3862 = vperm.slane %v3854, %v3861
        %v3863 = vrot.slane %v3858, 4
        %v3864 = vsel %vm1203, %v3863, %v3846
        %v3865 = vrot.slane %v3846, 4
        %v3866 = vsel %vm1203, %v3858, %v3865
        %v3868 = vunpack.c.l.s4 1934713408
        %v3869 = vunpack.c.0.s8 %v3868
        %v3870 = vperm.slane %v3864, %v3869
        %v3872 = vunpack.c.l.s4 1934713408
        %v3873 = vunpack.c.0.s8 %v3872
        %v3874 = vperm.slane %v3866, %v3873
        %v3875 = vrot.slane %v3862, 4
        %v3876 = vsel %vm1203, %v3875, %v3850
        %v3877 = vrot.slane %v3850, 4
        %v3878 = vsel %vm1203, %v3862, %v3877
        %v3880 = vunpack.c.l.s4 1934713408
        %v3881 = vunpack.c.0.s8 %v3880
        %v3882 = vperm.slane %v3876, %v3881
        %v3884 = vunpack.c.l.s4 1934713408
        %v3885 = vunpack.c.0.s8 %v3884
        %v3886 = vperm.slane %v3878, %v3885
        %v3887 = vrot.slane %v3870, 4
        %v3888 = vsel %vm1203, 0.0, %v3887
        %v3889 = vrot.slane %v3874, 4
        %v3890 = vsel %vm1203, 0.0, %v3889
        %v3891 = vrot.slane %v3882, 4
        %v3892 = vsel %vm1203, 0.0, %v3891
        %v3893 = vrot.slane %v3886, 4
        %v3894 = vsel %vm1203, 0.0, %v3893
        %v3895 = vsel %vm1203, %v3889, %v3870
        %v3897 = vunpack.c.l.s4 1983009808
        %v3898 = vunpack.c.0.s8 %v3897
        %v3899 = vperm.slane %v3895, %v3898
        %v3900 = vrot.slane %v3890, 4
        %v3901 = vsel %vm1203, %v3900, %v3888
        %v3903 = vunpack.c.l.s4 1983009808
        %v3904 = vunpack.c.0.s8 %v3903
        %v3905 = vperm.slane %v3901, %v3904
        %v3906 = vsel %vm1203, %v3893, %v3882
        %v3908 = vunpack.c.l.s4 1983009808
        %v3909 = vunpack.c.0.s8 %v3908
        %v3910 = vperm.slane %v3906, %v3909
        %v3911 = vrot.slane %v3894, 4
        %v3912 = vsel %vm1203, %v3911, %v3892
        %v3914 = vunpack.c.l.s4 1983009808
        %v3915 = vunpack.c.0.s8 %v3914
        %v3916 = vperm.slane %v3912, %v3915
        %v3917 = vrot.slane %v3905, 4
        %v3918 = vsel %vm1203, %v3917, %v3899
        %v3919 = vrot.slane %v3899, 4
        %v3920 = vsel %vm1203, %v3905, %v3919
        %v3922 = vunpack.c.l.s4 1934713408
        %v3923 = vunpack.c.0.s8 %v3922
        %v3924 = vperm.slane %v3918, %v3923
        %v3926 = vunpack.c.l.s4 1934713408
        %v3927 = vunpack.c.0.s8 %v3926
        %v3928 = vperm.slane %v3920, %v3927
        %v3929 = vrot.slane %v3916, 4
        %v3930 = vsel %vm1203, %v3929, %v3910
        %v3931 = vrot.slane %v3910, 4
        %v3932 = vsel %vm1203, %v3916, %v3931
        %v3934 = vunpack.c.l.s4 1934713408
        %v3935 = vunpack.c.0.s8 %v3934
        %v3936 = vperm.slane %v3930, %v3935
        %v3938 = vunpack.c.l.s4 1934713408
        %v3939 = vunpack.c.0.s8 %v3938
        %v3940 = vperm.slane %v3932, %v3939
        %v3941 = vrot.slane %v3936, 4
        %v3942 = vsel %vm1203, %v3941, %v3924
        %v3943 = vrot.slane %v3924, 4
        %v3944 = vsel %vm1203, %v3936, %v3943
        %v3945 = vrot.slane %v3940, 4
        %v3946 = vsel %vm1203, %v3945, %v3928
        %v3947 = vrot.slane %v3928, 4
        %v3948 = vsel %vm1203, %v3940, %v3947
        %3950 = vrot.lane.b32.xlu0 %v3944, 8
        %v3951 = vpop.permute.xlu0 %3950
        %3954 = vrot.lane.b32.xlu0 %v3946, 16
        %v3955 = vpop.permute.xlu0 %3954
        %3958 = vrot.lane.b32.xlu0 %v3948, 24
        %v3959 = vpop.permute.xlu0 %3958
        %v3961 = vsel %vm1557, %v3942, %v3951
        %v3962 = vsel %vm1973, %v3961, %v3955
        %v3963 = vsel %vm1975, %v3962, %v3959
        %3965 = vrot.lane.b32.xlu0 %v2885, 120
        %v3966 = vpop.permute.xlu0 %3965
        %3968 = vrot.lane.b32.xlu0 %v2885, 112
        %v3969 = vpop.permute.xlu0 %3968
        %3971 = vrot.lane.b32.xlu0 %v2885, 104
        %v3972 = vpop.permute.xlu0 %3971
        %v3974 = vrot.slane %v3969, 4
        %v3975 = vsel %vm1203, %v3974, %v2885
        %v3976 = vrot.slane %v2885, 4
        %v3977 = vsel %vm1203, %v3969, %v3976
        %v3979 = vunpack.c.l.s4 1983009808
        %v3980 = vunpack.c.0.s8 %v3979
        %v3981 = vperm.slane %v3975, %v3980
        %v3983 = vunpack.c.l.s4 1983009808
        %v3984 = vunpack.c.0.s8 %v3983
        %v3985 = vperm.slane %v3977, %v3984
        %v3986 = vrot.slane %v3972, 4
        %v3987 = vsel %vm1203, %v3986, %v3966
        %v3988 = vrot.slane %v3966, 4
        %v3989 = vsel %vm1203, %v3972, %v3988
        %v3991 = vunpack.c.l.s4 1983009808
        %v3992 = vunpack.c.0.s8 %v3991
        %v3993 = vperm.slane %v3987, %v3992
        %v3995 = vunpack.c.l.s4 1983009808
        %v3996 = vunpack.c.0.s8 %v3995
        %v3997 = vperm.slane %v3989, %v3996
        %v3998 = vrot.slane %v3993, 4
        %v3999 = vsel %vm1203, %v3998, %v3981
        %v4000 = vrot.slane %v3981, 4
        %v4001 = vsel %vm1203, %v3993, %v4000
        %v4003 = vunpack.c.l.s4 1934713408
        %v4004 = vunpack.c.0.s8 %v4003
        %v4005 = vperm.slane %v3999, %v4004
        %v4007 = vunpack.c.l.s4 1934713408
        %v4008 = vunpack.c.0.s8 %v4007
        %v4009 = vperm.slane %v4001, %v4008
        %v4010 = vrot.slane %v3997, 4
        %v4011 = vsel %vm1203, %v4010, %v3985
        %v4012 = vrot.slane %v3985, 4
        %v4013 = vsel %vm1203, %v3997, %v4012
        %v4015 = vunpack.c.l.s4 1934713408
        %v4016 = vunpack.c.0.s8 %v4015
        %v4017 = vperm.slane %v4011, %v4016
        %v4019 = vunpack.c.l.s4 1934713408
        %v4020 = vunpack.c.0.s8 %v4019
        %v4021 = vperm.slane %v4013, %v4020
        %v4022 = vrot.slane %v4005, 4
        %v4023 = vsel %vm1203, 0.0, %v4022
        %v4024 = vrot.slane %v4009, 4
        %v4025 = vsel %vm1203, 0.0, %v4024
        %v4026 = vrot.slane %v4017, 4
        %v4027 = vsel %vm1203, 0.0, %v4026
        %v4028 = vrot.slane %v4021, 4
        %v4029 = vsel %vm1203, 0.0, %v4028
        %v4030 = vsel %vm1203, %v4024, %v4005
        %v4032 = vunpack.c.l.s4 1983009808
        %v4033 = vunpack.c.0.s8 %v4032
        %v4034 = vperm.slane %v4030, %v4033
        %v4035 = vrot.slane %v4025, 4
        %v4036 = vsel %vm1203, %v4035, %v4023
        %v4038 = vunpack.c.l.s4 1983009808
        %v4039 = vunpack.c.0.s8 %v4038
        %v4040 = vperm.slane %v4036, %v4039
        %v4041 = vsel %vm1203, %v4028, %v4017
        %v4043 = vunpack.c.l.s4 1983009808
        %v4044 = vunpack.c.0.s8 %v4043
        %v4045 = vperm.slane %v4041, %v4044
        %v4046 = vrot.slane %v4029, 4
        %v4047 = vsel %vm1203, %v4046, %v4027
        %v4049 = vunpack.c.l.s4 1983009808
        %v4050 = vunpack.c.0.s8 %v4049
        %v4051 = vperm.slane %v4047, %v4050
        %v4052 = vrot.slane %v4040, 4
        %v4053 = vsel %vm1203, %v4052, %v4034
        %v4054 = vrot.slane %v4034, 4
        %v4055 = vsel %vm1203, %v4040, %v4054
        %v4057 = vunpack.c.l.s4 1934713408
        %v4058 = vunpack.c.0.s8 %v4057
        %v4059 = vperm.slane %v4053, %v4058
        %v4061 = vunpack.c.l.s4 1934713408
        %v4062 = vunpack.c.0.s8 %v4061
        %v4063 = vperm.slane %v4055, %v4062
        %v4064 = vrot.slane %v4051, 4
        %v4065 = vsel %vm1203, %v4064, %v4045
        %v4066 = vrot.slane %v4045, 4
        %v4067 = vsel %vm1203, %v4051, %v4066
        %v4069 = vunpack.c.l.s4 1934713408
        %v4070 = vunpack.c.0.s8 %v4069
        %v4071 = vperm.slane %v4065, %v4070
        %v4073 = vunpack.c.l.s4 1934713408
        %v4074 = vunpack.c.0.s8 %v4073
        %v4075 = vperm.slane %v4067, %v4074
        %v4076 = vrot.slane %v4071, 4
        %v4077 = vsel %vm1203, %v4076, %v4059
        %v4078 = vrot.slane %v4059, 4
        %v4079 = vsel %vm1203, %v4071, %v4078
        %v4080 = vrot.slane %v4075, 4
        %v4081 = vsel %vm1203, %v4080, %v4063
        %v4082 = vrot.slane %v4063, 4
        %v4083 = vsel %vm1203, %v4075, %v4082
        %4086 = vrot.lane.b32.xlu0 %v2926, 120
        %v4087 = vpop.permute.xlu0 %4086
        %4088 = vrot.lane.b32.xlu0 %v2929, 120
        %v4089 = vpop.permute.xlu0 %4088
        %4092 = vrot.lane.b32.xlu0 %v2926, 112
        %v4093 = vpop.permute.xlu0 %4092
        %4094 = vrot.lane.b32.xlu0 %v2929, 112
        %v4095 = vpop.permute.xlu0 %4094
        %4098 = vrot.lane.b32.xlu0 %v2926, 104
        %v4099 = vpop.permute.xlu0 %4098
        %4100 = vrot.lane.b32.xlu0 %v2929, 104
        %v4101 = vpop.permute.xlu0 %4100
        %v4104 = vrot.slane %v4093, 4
        %v4105 = vsel %vm1203, %v4104, %v2926
        %v4106 = vrot.slane %v2926, 4
        %v4107 = vsel %vm1203, %v4093, %v4106
        %v4109 = vunpack.c.l.s4 1983009808
        %v4110 = vunpack.c.0.s8 %v4109
        %v4111 = vperm.slane %v4105, %v4110
        %v4113 = vunpack.c.l.s4 1983009808
        %v4114 = vunpack.c.0.s8 %v4113
        %v4115 = vperm.slane %v4107, %v4114
        %v4116 = vrot.slane %v4099, 4
        %v4117 = vsel %vm1203, %v4116, %v4087
        %v4118 = vrot.slane %v4087, 4
        %v4119 = vsel %vm1203, %v4099, %v4118
        %v4121 = vunpack.c.l.s4 1983009808
        %v4122 = vunpack.c.0.s8 %v4121
        %v4123 = vperm.slane %v4117, %v4122
        %v4125 = vunpack.c.l.s4 1983009808
        %v4126 = vunpack.c.0.s8 %v4125
        %v4127 = vperm.slane %v4119, %v4126
        %v4128 = vrot.slane %v4123, 4
        %v4129 = vsel %vm1203, %v4128, %v4111
        %v4130 = vrot.slane %v4111, 4
        %v4131 = vsel %vm1203, %v4123, %v4130
        %v4133 = vunpack.c.l.s4 1934713408
        %v4134 = vunpack.c.0.s8 %v4133
        %v4135 = vperm.slane %v4129, %v4134
        %v4137 = vunpack.c.l.s4 1934713408
        %v4138 = vunpack.c.0.s8 %v4137
        %v4139 = vperm.slane %v4131, %v4138
        %v4140 = vrot.slane %v4127, 4
        %v4141 = vsel %vm1203, %v4140, %v4115
        %v4142 = vrot.slane %v4115, 4
        %v4143 = vsel %vm1203, %v4127, %v4142
        %v4145 = vunpack.c.l.s4 1934713408
        %v4146 = vunpack.c.0.s8 %v4145
        %v4147 = vperm.slane %v4141, %v4146
        %v4149 = vunpack.c.l.s4 1934713408
        %v4150 = vunpack.c.0.s8 %v4149
        %v4151 = vperm.slane %v4143, %v4150
        %v4152 = vrot.slane %v4135, 4
        %v4153 = vsel %vm1203, 0.0, %v4152
        %v4154 = vrot.slane %v4139, 4
        %v4155 = vsel %vm1203, 0.0, %v4154
        %v4156 = vrot.slane %v4147, 4
        %v4157 = vsel %vm1203, 0.0, %v4156
        %v4158 = vrot.slane %v4151, 4
        %v4159 = vsel %vm1203, 0.0, %v4158
        %v4160 = vrot.slane %v4095, 4
        %v4161 = vsel %vm1203, %v4160, %v2929
        %v4162 = vrot.slane %v2929, 4
        %v4163 = vsel %vm1203, %v4095, %v4162
        %v4165 = vunpack.c.l.s4 1983009808
        %v4166 = vunpack.c.0.s8 %v4165
        %v4167 = vperm.slane %v4161, %v4166
        %v4169 = vunpack.c.l.s4 1983009808
        %v4170 = vunpack.c.0.s8 %v4169
        %v4171 = vperm.slane %v4163, %v4170
        %v4172 = vrot.slane %v4101, 4
        %v4173 = vsel %vm1203, %v4172, %v4089
        %v4174 = vrot.slane %v4089, 4
        %v4175 = vsel %vm1203, %v4101, %v4174
        %v4177 = vunpack.c.l.s4 1983009808
        %v4178 = vunpack.c.0.s8 %v4177
        %v4179 = vperm.slane %v4173, %v4178
        %v4181 = vunpack.c.l.s4 1983009808
        %v4182 = vunpack.c.0.s8 %v4181
        %v4183 = vperm.slane %v4175, %v4182
        %v4184 = vrot.slane %v4179, 4
        %v4185 = vsel %vm1203, %v4184, %v4167
        %v4186 = vrot.slane %v4167, 4
        %v4187 = vsel %vm1203, %v4179, %v4186
        %v4189 = vunpack.c.l.s4 1934713408
        %v4190 = vunpack.c.0.s8 %v4189
        %v4191 = vperm.slane %v4185, %v4190
        %v4193 = vunpack.c.l.s4 1934713408
        %v4194 = vunpack.c.0.s8 %v4193
        %v4195 = vperm.slane %v4187, %v4194
        %v4196 = vrot.slane %v4183, 4
        %v4197 = vsel %vm1203, %v4196, %v4171
        %v4198 = vrot.slane %v4171, 4
        %v4199 = vsel %vm1203, %v4183, %v4198
        %v4201 = vunpack.c.l.s4 1934713408
        %v4202 = vunpack.c.0.s8 %v4201
        %v4203 = vperm.slane %v4197, %v4202
        %v4205 = vunpack.c.l.s4 1934713408
        %v4206 = vunpack.c.0.s8 %v4205
        %v4207 = vperm.slane %v4199, %v4206
        %v4208 = vrot.slane %v4191, 4
        %v4209 = vsel %vm1203, 0.0, %v4208
        %v4210 = vrot.slane %v4195, 4
        %v4211 = vsel %vm1203, 0.0, %v4210
        %v4212 = vrot.slane %v4203, 4
        %v4213 = vsel %vm1203, 0.0, %v4212
        %v4214 = vrot.slane %v4207, 4
        %v4215 = vsel %vm1203, 0.0, %v4214
        %v4216 = vsel %vm1203, %v4154, %v4135
        %v4218 = vunpack.c.l.s4 1983009808
        %v4219 = vunpack.c.0.s8 %v4218
        %v4220 = vperm.slane %v4216, %v4219
        %v4221 = vrot.slane %v4155, 4
        %v4222 = vsel %vm1203, %v4221, %v4153
        %v4224 = vunpack.c.l.s4 1983009808
        %v4225 = vunpack.c.0.s8 %v4224
        %v4226 = vperm.slane %v4222, %v4225
        %v4227 = vsel %vm1203, %v4158, %v4147
        %v4229 = vunpack.c.l.s4 1983009808
        %v4230 = vunpack.c.0.s8 %v4229
        %v4231 = vperm.slane %v4227, %v4230
        %v4232 = vrot.slane %v4159, 4
        %v4233 = vsel %vm1203, %v4232, %v4157
        %v4235 = vunpack.c.l.s4 1983009808
        %v4236 = vunpack.c.0.s8 %v4235
        %v4237 = vperm.slane %v4233, %v4236
        %v4238 = vrot.slane %v4226, 4
        %v4239 = vsel %vm1203, %v4238, %v4220
        %v4240 = vrot.slane %v4220, 4
        %v4241 = vsel %vm1203, %v4226, %v4240
        %v4243 = vunpack.c.l.s4 1934713408
        %v4244 = vunpack.c.0.s8 %v4243
        %v4245 = vperm.slane %v4239, %v4244
        %v4247 = vunpack.c.l.s4 1934713408
        %v4248 = vunpack.c.0.s8 %v4247
        %v4249 = vperm.slane %v4241, %v4248
        %v4250 = vrot.slane %v4237, 4
        %v4251 = vsel %vm1203, %v4250, %v4231
        %v4252 = vrot.slane %v4231, 4
        %v4253 = vsel %vm1203, %v4237, %v4252
        %v4255 = vunpack.c.l.s4 1934713408
        %v4256 = vunpack.c.0.s8 %v4255
        %v4257 = vperm.slane %v4251, %v4256
        %v4259 = vunpack.c.l.s4 1934713408
        %v4260 = vunpack.c.0.s8 %v4259
        %v4261 = vperm.slane %v4253, %v4260
        %v4262 = vrot.slane %v4257, 4
        %v4263 = vsel %vm1203, %v4262, %v4245
        %v4264 = vrot.slane %v4245, 4
        %v4265 = vsel %vm1203, %v4257, %v4264
        %v4266 = vrot.slane %v4261, 4
        %v4267 = vsel %vm1203, %v4266, %v4249
        %v4268 = vrot.slane %v4249, 4
        %v4269 = vsel %vm1203, %v4261, %v4268
        %v4270 = vsel %vm1203, %v4210, %v4191
        %v4272 = vunpack.c.l.s4 1983009808
        %v4273 = vunpack.c.0.s8 %v4272
        %v4274 = vperm.slane %v4270, %v4273
        %v4275 = vrot.slane %v4211, 4
        %v4276 = vsel %vm1203, %v4275, %v4209
        %v4278 = vunpack.c.l.s4 1983009808
        %v4279 = vunpack.c.0.s8 %v4278
        %v4280 = vperm.slane %v4276, %v4279
        %v4281 = vsel %vm1203, %v4214, %v4203
        %v4283 = vunpack.c.l.s4 1983009808
        %v4284 = vunpack.c.0.s8 %v4283
        %v4285 = vperm.slane %v4281, %v4284
        %v4286 = vrot.slane %v4215, 4
        %v4287 = vsel %vm1203, %v4286, %v4213
        %v4289 = vunpack.c.l.s4 1983009808
        %v4290 = vunpack.c.0.s8 %v4289
        %v4291 = vperm.slane %v4287, %v4290
        %v4292 = vrot.slane %v4280, 4
        %v4293 = vsel %vm1203, %v4292, %v4274
        %v4294 = vrot.slane %v4274, 4
        %v4295 = vsel %vm1203, %v4280, %v4294
        %v4297 = vunpack.c.l.s4 1934713408
        %v4298 = vunpack.c.0.s8 %v4297
        %v4299 = vperm.slane %v4293, %v4298
        %v4301 = vunpack.c.l.s4 1934713408
        %v4302 = vunpack.c.0.s8 %v4301
        %v4303 = vperm.slane %v4295, %v4302
        %v4304 = vrot.slane %v4291, 4
        %v4305 = vsel %vm1203, %v4304, %v4285
        %v4306 = vrot.slane %v4285, 4
        %v4307 = vsel %vm1203, %v4291, %v4306
        %v4309 = vunpack.c.l.s4 1934713408
        %v4310 = vunpack.c.0.s8 %v4309
        %v4311 = vperm.slane %v4305, %v4310
        %v4313 = vunpack.c.l.s4 1934713408
        %v4314 = vunpack.c.0.s8 %v4313
        %v4315 = vperm.slane %v4307, %v4314
        %v4316 = vrot.slane %v4311, 4
        %v4317 = vsel %vm1203, %v4316, %v4299
        %v4318 = vrot.slane %v4299, 4
        %v4319 = vsel %vm1203, %v4311, %v4318
        %v4320 = vrot.slane %v4315, 4
        %v4321 = vsel %vm1203, %v4320, %v4303
        %v4322 = vrot.slane %v4303, 4
        %v4323 = vsel %vm1203, %v4315, %v4322
        %4324 = vrot.lane.b32.xlu0 %v2926, 96
        %v4325 = vpop.permute.xlu0 %4324
        %4326 = vrot.lane.b32.xlu0 %v2929, 96
        %v4327 = vpop.permute.xlu0 %4326
        %4328 = vrot.lane.b32.xlu0 %v4087, 96
        %v4329 = vpop.permute.xlu0 %4328
        %4330 = vrot.lane.b32.xlu0 %v4089, 96
        %v4331 = vpop.permute.xlu0 %4330
        %4332 = vrot.lane.b32.xlu0 %v4093, 96
        %v4333 = vpop.permute.xlu0 %4332
        %4334 = vrot.lane.b32.xlu0 %v4095, 96
        %v4335 = vpop.permute.xlu0 %4334
        %4336 = vrot.lane.b32.xlu0 %v4099, 96
        %v4337 = vpop.permute.xlu0 %4336
        %4338 = vrot.lane.b32.xlu0 %v4101, 96
        %v4339 = vpop.permute.xlu0 %4338
        %v4348 = vrot.slane %v4333, 4
        %v4349 = vsel %vm1203, %v4348, %v4325
        %v4350 = vrot.slane %v4325, 4
        %v4351 = vsel %vm1203, %v4333, %v4350
        %v4353 = vunpack.c.l.s4 1983009808
        %v4354 = vunpack.c.0.s8 %v4353
        %v4355 = vperm.slane %v4349, %v4354
        %v4357 = vunpack.c.l.s4 1983009808
        %v4358 = vunpack.c.0.s8 %v4357
        %v4359 = vperm.slane %v4351, %v4358
        %v4360 = vrot.slane %v4337, 4
        %v4361 = vsel %vm1203, %v4360, %v4329
        %v4362 = vrot.slane %v4329, 4
        %v4363 = vsel %vm1203, %v4337, %v4362
        %v4365 = vunpack.c.l.s4 1983009808
        %v4366 = vunpack.c.0.s8 %v4365
        %v4367 = vperm.slane %v4361, %v4366
        %v4369 = vunpack.c.l.s4 1983009808
        %v4370 = vunpack.c.0.s8 %v4369
        %v4371 = vperm.slane %v4363, %v4370
        %v4372 = vrot.slane %v4367, 4
        %v4373 = vsel %vm1203, %v4372, %v4355
        %v4374 = vrot.slane %v4355, 4
        %v4375 = vsel %vm1203, %v4367, %v4374
        %v4377 = vunpack.c.l.s4 1934713408
        %v4378 = vunpack.c.0.s8 %v4377
        %v4379 = vperm.slane %v4373, %v4378
        %v4381 = vunpack.c.l.s4 1934713408
        %v4382 = vunpack.c.0.s8 %v4381
        %v4383 = vperm.slane %v4375, %v4382
        %v4384 = vrot.slane %v4371, 4
        %v4385 = vsel %vm1203, %v4384, %v4359
        %v4386 = vrot.slane %v4359, 4
        %v4387 = vsel %vm1203, %v4371, %v4386
        %v4389 = vunpack.c.l.s4 1934713408
        %v4390 = vunpack.c.0.s8 %v4389
        %v4391 = vperm.slane %v4385, %v4390
        %v4393 = vunpack.c.l.s4 1934713408
        %v4394 = vunpack.c.0.s8 %v4393
        %v4395 = vperm.slane %v4387, %v4394
        %v4396 = vrot.slane %v4379, 4
        %v4397 = vsel %vm1203, 0.0, %v4396
        %v4398 = vrot.slane %v4383, 4
        %v4399 = vsel %vm1203, 0.0, %v4398
        %v4400 = vrot.slane %v4391, 4
        %v4401 = vsel %vm1203, 0.0, %v4400
        %v4402 = vrot.slane %v4395, 4
        %v4403 = vsel %vm1203, 0.0, %v4402
        %v4404 = vrot.slane %v4335, 4
        %v4405 = vsel %vm1203, %v4404, %v4327
        %v4406 = vrot.slane %v4327, 4
        %v4407 = vsel %vm1203, %v4335, %v4406
        %v4409 = vunpack.c.l.s4 1983009808
        %v4410 = vunpack.c.0.s8 %v4409
        %v4411 = vperm.slane %v4405, %v4410
        %v4413 = vunpack.c.l.s4 1983009808
        %v4414 = vunpack.c.0.s8 %v4413
        %v4415 = vperm.slane %v4407, %v4414
        %v4416 = vrot.slane %v4339, 4
        %v4417 = vsel %vm1203, %v4416, %v4331
        %v4418 = vrot.slane %v4331, 4
        %v4419 = vsel %vm1203, %v4339, %v4418
        %v4421 = vunpack.c.l.s4 1983009808
        %v4422 = vunpack.c.0.s8 %v4421
        %v4423 = vperm.slane %v4417, %v4422
        %v4425 = vunpack.c.l.s4 1983009808
        %v4426 = vunpack.c.0.s8 %v4425
        %v4427 = vperm.slane %v4419, %v4426
        %v4428 = vrot.slane %v4423, 4
        %v4429 = vsel %vm1203, %v4428, %v4411
        %v4430 = vrot.slane %v4411, 4
        %v4431 = vsel %vm1203, %v4423, %v4430
        %v4433 = vunpack.c.l.s4 1934713408
        %v4434 = vunpack.c.0.s8 %v4433
        %v4435 = vperm.slane %v4429, %v4434
        %v4437 = vunpack.c.l.s4 1934713408
        %v4438 = vunpack.c.0.s8 %v4437
        %v4439 = vperm.slane %v4431, %v4438
        %v4440 = vrot.slane %v4427, 4
        %v4441 = vsel %vm1203, %v4440, %v4415
        %v4442 = vrot.slane %v4415, 4
        %v4443 = vsel %vm1203, %v4427, %v4442
        %v4445 = vunpack.c.l.s4 1934713408
        %v4446 = vunpack.c.0.s8 %v4445
        %v4447 = vperm.slane %v4441, %v4446
        %v4449 = vunpack.c.l.s4 1934713408
        %v4450 = vunpack.c.0.s8 %v4449
        %v4451 = vperm.slane %v4443, %v4450
        %v4452 = vrot.slane %v4435, 4
        %v4453 = vsel %vm1203, 0.0, %v4452
        %v4454 = vrot.slane %v4439, 4
        %v4455 = vsel %vm1203, 0.0, %v4454
        %v4456 = vrot.slane %v4447, 4
        %v4457 = vsel %vm1203, 0.0, %v4456
        %v4458 = vrot.slane %v4451, 4
        %v4459 = vsel %vm1203, 0.0, %v4458
        %v4460 = vsel %vm1203, %v4398, %v4379
        %v4462 = vunpack.c.l.s4 1983009808
        %v4463 = vunpack.c.0.s8 %v4462
        %v4464 = vperm.slane %v4460, %v4463
        %v4465 = vrot.slane %v4399, 4
        %v4466 = vsel %vm1203, %v4465, %v4397
        %v4468 = vunpack.c.l.s4 1983009808
        %v4469 = vunpack.c.0.s8 %v4468
        %v4470 = vperm.slane %v4466, %v4469
        %v4471 = vsel %vm1203, %v4402, %v4391
        %v4473 = vunpack.c.l.s4 1983009808
        %v4474 = vunpack.c.0.s8 %v4473
        %v4475 = vperm.slane %v4471, %v4474
        %v4476 = vrot.slane %v4403, 4
        %v4477 = vsel %vm1203, %v4476, %v4401
        %v4479 = vunpack.c.l.s4 1983009808
        %v4480 = vunpack.c.0.s8 %v4479
        %v4481 = vperm.slane %v4477, %v4480
        %v4482 = vrot.slane %v4470, 4
        %v4483 = vsel %vm1203, %v4482, %v4464
        %v4484 = vrot.slane %v4464, 4
        %v4485 = vsel %vm1203, %v4470, %v4484
        %v4487 = vunpack.c.l.s4 1934713408
        %v4488 = vunpack.c.0.s8 %v4487
        %v4489 = vperm.slane %v4483, %v4488
        %v4491 = vunpack.c.l.s4 1934713408
        %v4492 = vunpack.c.0.s8 %v4491
        %v4493 = vperm.slane %v4485, %v4492
        %v4494 = vrot.slane %v4481, 4
        %v4495 = vsel %vm1203, %v4494, %v4475
        %v4496 = vrot.slane %v4475, 4
        %v4497 = vsel %vm1203, %v4481, %v4496
        %v4499 = vunpack.c.l.s4 1934713408
        %v4500 = vunpack.c.0.s8 %v4499
        %v4501 = vperm.slane %v4495, %v4500
        %v4503 = vunpack.c.l.s4 1934713408
        %v4504 = vunpack.c.0.s8 %v4503
        %v4505 = vperm.slane %v4497, %v4504
        %v4506 = vrot.slane %v4501, 4
        %v4507 = vsel %vm1203, %v4506, %v4489
        %v4508 = vrot.slane %v4489, 4
        %v4509 = vsel %vm1203, %v4501, %v4508
        %v4510 = vrot.slane %v4505, 4
        %v4511 = vsel %vm1203, %v4510, %v4493
        %v4512 = vrot.slane %v4493, 4
        %v4513 = vsel %vm1203, %v4505, %v4512
        %v4514 = vsel %vm1203, %v4454, %v4435
        %v4516 = vunpack.c.l.s4 1983009808
        %v4517 = vunpack.c.0.s8 %v4516
        %v4518 = vperm.slane %v4514, %v4517
        %v4519 = vrot.slane %v4455, 4
        %v4520 = vsel %vm1203, %v4519, %v4453
        %v4522 = vunpack.c.l.s4 1983009808
        %v4523 = vunpack.c.0.s8 %v4522
        %v4524 = vperm.slane %v4520, %v4523
        %v4525 = vsel %vm1203, %v4458, %v4447
        %v4527 = vunpack.c.l.s4 1983009808
        %v4528 = vunpack.c.0.s8 %v4527
        %v4529 = vperm.slane %v4525, %v4528
        %v4530 = vrot.slane %v4459, 4
        %v4531 = vsel %vm1203, %v4530, %v4457
        %v4533 = vunpack.c.l.s4 1983009808
        %v4534 = vunpack.c.0.s8 %v4533
        %v4535 = vperm.slane %v4531, %v4534
        %v4536 = vrot.slane %v4524, 4
        %v4537 = vsel %vm1203, %v4536, %v4518
        %v4538 = vrot.slane %v4518, 4
        %v4539 = vsel %vm1203, %v4524, %v4538
        %v4541 = vunpack.c.l.s4 1934713408
        %v4542 = vunpack.c.0.s8 %v4541
        %v4543 = vperm.slane %v4537, %v4542
        %v4545 = vunpack.c.l.s4 1934713408
        %v4546 = vunpack.c.0.s8 %v4545
        %v4547 = vperm.slane %v4539, %v4546
        %v4548 = vrot.slane %v4535, 4
        %v4549 = vsel %vm1203, %v4548, %v4529
        %v4550 = vrot.slane %v4529, 4
        %v4551 = vsel %vm1203, %v4535, %v4550
        %v4553 = vunpack.c.l.s4 1934713408
        %v4554 = vunpack.c.0.s8 %v4553
        %v4555 = vperm.slane %v4549, %v4554
        %v4557 = vunpack.c.l.s4 1934713408
        %v4558 = vunpack.c.0.s8 %v4557
        %v4559 = vperm.slane %v4551, %v4558
        %v4560 = vrot.slane %v4555, 4
        %v4561 = vsel %vm1203, %v4560, %v4543
        %v4562 = vrot.slane %v4543, 4
        %v4563 = vsel %vm1203, %v4555, %v4562
        %v4564 = vrot.slane %v4559, 4
        %v4565 = vsel %vm1203, %v4564, %v4547
        %v4566 = vrot.slane %v4547, 4
        %v4567 = vsel %vm1203, %v4559, %v4566
        %v4569 = vsel %vm1557, %v4077, 0
        %v4572 = vsel %vm1557, %v4263, 0
        %v4575 = vsel %vm1557, %v4317, 0
        %4577 = vmatpush.xpose.msra.mxu0 0.0
        %4578 = vmatpush.xpose.msra.mxu0 0.0
        %4579 = vmatpush.xpose.msra.mxu0 0.0
        %4580 = vmatpush.xpose.msra.mxu0 0.0
        %4581 = vmatpush.xpose.msra.mxu0 0.0
        %4582 = vmatpush.xpose.msra.mxu0 0.0
        %4583 = vmatpush.xpose.msra.mxu0 0.0
        %4584 = vmatpush.xpose.msra.mxu0 0.0
        %4585 = vmatpush.xpose.msra.mxu0 0.0
        %4586 = vmatpush.xpose.msra.mxu0 0.0
        %4587 = vmatpush.xpose.msra.mxu0 0.0
        %4588 = vmatpush.xpose.msra.mxu0 0.0
        %4589 = vmatpush.xpose.msra.mxu0 0.0
        %4590 = vmatpush.xpose.msra.mxu0 0.0
        %4591 = vmatpush.xpose.msra.mxu0 %v4575
        %4592 = vmatpush.xpose.msra.mxu0 %v4572
        %4593 = vmatmul.f32.gmra.mxu0 %v4569
        %v4594 = vpop.f32.mrf.mxu0
        %v4595 = vadd.f32 0.0, %v4594
        %4596 = vdwg.mxu0
        %v4598 = vsel %vm1557, %v4079, 0
        %v4601 = vsel %vm1557, %v4265, 0
        %v4604 = vsel %vm1557, %v4319, 0
        %4606 = vmatpush.xpose.msra.mxu0 0.0
        %4607 = vmatpush.xpose.msra.mxu0 0.0
        %4608 = vmatpush.xpose.msra.mxu0 0.0
        %4609 = vmatpush.xpose.msra.mxu0 0.0
        %4610 = vmatpush.xpose.msra.mxu0 0.0
        %4611 = vmatpush.xpose.msra.mxu0 0.0
        %4612 = vmatpush.xpose.msra.mxu0 0.0
        %4613 = vmatpush.xpose.msra.mxu0 0.0
        %4614 = vmatpush.xpose.msra.mxu0 0.0
        %4615 = vmatpush.xpose.msra.mxu0 0.0
        %4616 = vmatpush.xpose.msra.mxu0 0.0
        %4617 = vmatpush.xpose.msra.mxu0 0.0
        %4618 = vmatpush.xpose.msra.mxu0 0.0
        %4619 = vmatpush.xpose.msra.mxu0 0.0
        %4620 = vmatpush.xpose.msra.mxu0 %v4604
        %4621 = vmatpush.xpose.msra.mxu0 %v4601
        %4622 = vmatmul.f32.gmra.mxu0 %v4598
        %v4623 = vpop.f32.mrf.mxu0
        %v4624 = vadd.f32 0.0, %v4623
        %4625 = vdwg.mxu0
        %v4627 = vsel %vm1557, %v4081, 0
        %v4630 = vsel %vm1557, %v4267, 0
        %v4633 = vsel %vm1557, %v4321, 0
        %4635 = vmatpush.xpose.msra.mxu0 0.0
        %4636 = vmatpush.xpose.msra.mxu0 0.0
        %4637 = vmatpush.xpose.msra.mxu0 0.0
        %4638 = vmatpush.xpose.msra.mxu0 0.0
        %4639 = vmatpush.xpose.msra.mxu0 0.0
        %4640 = vmatpush.xpose.msra.mxu0 0.0
        %4641 = vmatpush.xpose.msra.mxu0 0.0
        %4642 = vmatpush.xpose.msra.mxu0 0.0
        %4643 = vmatpush.xpose.msra.mxu0 0.0
        %4644 = vmatpush.xpose.msra.mxu0 0.0
        %4645 = vmatpush.xpose.msra.mxu0 0.0
        %4646 = vmatpush.xpose.msra.mxu0 0.0
        %4647 = vmatpush.xpose.msra.mxu0 0.0
        %4648 = vmatpush.xpose.msra.mxu0 0.0
        %4649 = vmatpush.xpose.msra.mxu0 %v4633
        %4650 = vmatpush.xpose.msra.mxu0 %v4630
        %4651 = vmatmul.f32.gmra.mxu0 %v4627
        %v4652 = vpop.f32.mrf.mxu0
        %v4653 = vadd.f32 0.0, %v4652
        %4654 = vdwg.mxu0
        %v4656 = vsel %vm1557, %v4083, 0
        %v4659 = vsel %vm1557, %v4269, 0
        %v4662 = vsel %vm1557, %v4323, 0
        %4664 = vmatpush.xpose.msra.mxu0 0.0
        %4665 = vmatpush.xpose.msra.mxu0 0.0
        %4666 = vmatpush.xpose.msra.mxu0 0.0
        %4667 = vmatpush.xpose.msra.mxu0 0.0
        %4668 = vmatpush.xpose.msra.mxu0 0.0
        %4669 = vmatpush.xpose.msra.mxu0 0.0
        %4670 = vmatpush.xpose.msra.mxu0 0.0
        %4671 = vmatpush.xpose.msra.mxu0 0.0
        %4672 = vmatpush.xpose.msra.mxu0 0.0
        %4673 = vmatpush.xpose.msra.mxu0 0.0
        %4674 = vmatpush.xpose.msra.mxu0 0.0
        %4675 = vmatpush.xpose.msra.mxu0 0.0
        %4676 = vmatpush.xpose.msra.mxu0 0.0
        %4677 = vmatpush.xpose.msra.mxu0 0.0
        %4678 = vmatpush.xpose.msra.mxu0 %v4662
        %4679 = vmatpush.xpose.msra.mxu0 %v4659
        %4680 = vmatmul.f32.gmra.mxu0 %v4656
        %v4681 = vpop.f32.mrf.mxu0
        %v4682 = vadd.f32 0.0, %v4681
        %4683 = vdwg.mxu0
        %v4684 = vsel %vm1973, %v4595, -inf
        %4685 = vmax.xlane.f32.xlu0 %v4684
        %v4686 = vpop.xlane.xlu0 %4685
        %v4687 = vsel %vm1973, %v4624, -inf
        %4688 = vmax.xlane.f32.xlu0 %v4687
        %v4689 = vpop.xlane.xlu0 %4688
        %v4690 = vsel %vm1973, %v4653, -inf
        %4691 = vmax.xlane.f32.xlu0 %v4690
        %v4692 = vpop.xlane.xlu0 %4691
        %v4693 = vsel %vm1973, %v4682, -inf
        %4694 = vmax.xlane.f32.xlu0 %v4693
        %v4695 = vpop.xlane.xlu0 %4694
        %v4696 = vsub.f32 %v4595, %v4686
        %v4697 = vsub.f32 %v4624, %v4689
        %v4698 = vsub.f32 %v4653, %v4692
        %v4699 = vsub.f32 %v4682, %v4695
        %v4700 = vmul.f32 %v4696, 1.442695
        %v4701 = vpow.pop %v4700
        %v4702 = vmul.f32 %v4697, 1.442695
        %v4703 = vpow.pop %v4702
        %v4704 = vmul.f32 %v4698, 1.442695
        %v4705 = vpow.pop %v4704
        %v4706 = vmul.f32 %v4699, 1.442695
        %v4707 = vpow.pop %v4706
        %v4708 = vsel %vm1973, %v4701, 0.0
        %4709 = vadd.xlane.f32.xlu0 %v4708
        %v4710 = vpop.xlane.xlu0 %4709
        %v4711 = vsel %vm1973, %v4703, 0.0
        %4712 = vadd.xlane.f32.xlu0 %v4711
        %v4713 = vpop.xlane.xlu0 %4712
        %v4714 = vsel %vm1973, %v4705, 0.0
        %4715 = vadd.xlane.f32.xlu0 %v4714
        %v4716 = vpop.xlane.xlu0 %4715
        %v4717 = vsel %vm1973, %v4707, 0.0
        %4718 = vadd.xlane.f32.xlu0 %v4717
        %v4719 = vpop.xlane.xlu0 %4718
        %v4720 = vrcp.pop %v4710
        %v4721 = vmul.f32 %v4710, %v4720
        %v4722 = vsub.f32 1.0, %v4721
        %v4723 = vmul.f32 %v4720, %v4722
        %v4724 = vadd.f32 %v4720, %v4723
        %vm4725 = vweird.f32 %v4710
        %vm4726 = vweird.f32 %v4720
        %vm4727 = vmor %vm4725, %vm4726
        %v4728 = vsel %vm4727, %v4720, %v4724
        %v4729 = vand.u32 2147483647, %v4710
        %vm4730 = vcmp.eq.f32.partialorder %v4729, 8.507059e+37
        %v4731 = vand.u32 %v4710, 2147483648
        %v4732 = vor.u32 1.1754944e-38, %v4731
        %v4733 = vsel %vm4730, %v4732, %v4728
        %v4734 = vmul.f32 %v4701, %v4733
        %v4735 = vrcp.pop %v4713
        %v4736 = vmul.f32 %v4713, %v4735
        %v4737 = vsub.f32 1.0, %v4736
        %v4738 = vmul.f32 %v4735, %v4737
        %v4739 = vadd.f32 %v4735, %v4738
        %vm4740 = vweird.f32 %v4713
        %vm4741 = vweird.f32 %v4735
        %vm4742 = vmor %vm4740, %vm4741
        %v4743 = vsel %vm4742, %v4735, %v4739
        %v4744 = vand.u32 2147483647, %v4713
        %vm4745 = vcmp.eq.f32.partialorder %v4744, 8.507059e+37
        %v4746 = vand.u32 %v4713, 2147483648
        %v4747 = vor.u32 1.1754944e-38, %v4746
        %v4748 = vsel %vm4745, %v4747, %v4743
        %v4749 = vmul.f32 %v4703, %v4748
        %v4750 = vrcp.pop %v4716
        %v4751 = vmul.f32 %v4716, %v4750
        %v4752 = vsub.f32 1.0, %v4751
        %v4753 = vmul.f32 %v4750, %v4752
        %v4754 = vadd.f32 %v4750, %v4753
        %vm4755 = vweird.f32 %v4716
        %vm4756 = vweird.f32 %v4750
        %vm4757 = vmor %vm4755, %vm4756
        %v4758 = vsel %vm4757, %v4750, %v4754
        %v4759 = vand.u32 2147483647, %v4716
        %vm4760 = vcmp.eq.f32.partialorder %v4759, 8.507059e+37
        %v4761 = vand.u32 %v4716, 2147483648
        %v4762 = vor.u32 1.1754944e-38, %v4761
        %v4763 = vsel %vm4760, %v4762, %v4758
        %v4764 = vmul.f32 %v4705, %v4763
        %v4765 = vrcp.pop %v4719
        %v4766 = vmul.f32 %v4719, %v4765
        %v4767 = vsub.f32 1.0, %v4766
        %v4768 = vmul.f32 %v4765, %v4767
        %v4769 = vadd.f32 %v4765, %v4768
        %vm4770 = vweird.f32 %v4719
        %vm4771 = vweird.f32 %v4765
        %vm4772 = vmor %vm4770, %vm4771
        %v4773 = vsel %vm4772, %v4765, %v4769
        %v4774 = vand.u32 2147483647, %v4719
        %vm4775 = vcmp.eq.f32.partialorder %v4774, 8.507059e+37
        %v4776 = vand.u32 %v4719, 2147483648
        %v4777 = vor.u32 1.1754944e-38, %v4776
        %v4778 = vsel %vm4775, %v4777, %v4773
        %v4779 = vmul.f32 %v4707, %v4778
        %v4781 = vsel %vm1973, %v4734, 0
        %4783 = vmatpush.msra.mxu0 0.0
        %4784 = vmatpush.msra.mxu0 0.0
        %4785 = vmatpush.msra.mxu0 0.0
        %4786 = vmatpush.msra.mxu0 0.0
        %4787 = vmatpush.msra.mxu0 0.0
        %4788 = vmatpush.msra.mxu0 0.0
        %4789 = vmatpush.msra.mxu0 0.0
        %4790 = vmatpush.msra.mxu0 0.0
        %4791 = vmatpush.msra.mxu0 0.0
        %4792 = vmatpush.msra.mxu0 0.0
        %4793 = vmatpush.msra.mxu0 0.0
        %4794 = vmatpush.msra.mxu0 0.0
        %4795 = vmatpush.msra.mxu0 0.0
        %4796 = vmatpush.msra.mxu0 0.0
        %4797 = vmatpush.msra.mxu0 %v4561
        %4798 = vmatpush.msra.mxu0 %v4507
        %4799 = vmatmul.f32.gmra.mxu0 %v4781
        %v4800 = vpop.f32.mrf.mxu0
        %v4801 = vadd.f32 0.0, %v4800
        %4802 = vdwg.mxu0
        %v4804 = vsel %vm1973, %v4749, 0
        %4806 = vmatpush.msra.mxu0 0.0
        %4807 = vmatpush.msra.mxu0 0.0
        %4808 = vmatpush.msra.mxu0 0.0
        %4809 = vmatpush.msra.mxu0 0.0
        %4810 = vmatpush.msra.mxu0 0.0
        %4811 = vmatpush.msra.mxu0 0.0
        %4812 = vmatpush.msra.mxu0 0.0
        %4813 = vmatpush.msra.mxu0 0.0
        %4814 = vmatpush.msra.mxu0 0.0
        %4815 = vmatpush.msra.mxu0 0.0
        %4816 = vmatpush.msra.mxu0 0.0
        %4817 = vmatpush.msra.mxu0 0.0
        %4818 = vmatpush.msra.mxu0 0.0
        %4819 = vmatpush.msra.mxu0 0.0
        %4820 = vmatpush.msra.mxu0 %v4563
        %4821 = vmatpush.msra.mxu0 %v4509
        %4822 = vmatmul.f32.gmra.mxu0 %v4804
        %v4823 = vpop.f32.mrf.mxu0
        %v4824 = vadd.f32 0.0, %v4823
        %4825 = vdwg.mxu0
        %v4827 = vsel %vm1973, %v4764, 0
        %4829 = vmatpush.msra.mxu0 0.0
        %4830 = vmatpush.msra.mxu0 0.0
        %4831 = vmatpush.msra.mxu0 0.0
        %4832 = vmatpush.msra.mxu0 0.0
        %4833 = vmatpush.msra.mxu0 0.0
        %4834 = vmatpush.msra.mxu0 0.0
        %4835 = vmatpush.msra.mxu0 0.0
        %4836 = vmatpush.msra.mxu0 0.0
        %4837 = vmatpush.msra.mxu0 0.0
        %4838 = vmatpush.msra.mxu0 0.0
        %4839 = vmatpush.msra.mxu0 0.0
        %4840 = vmatpush.msra.mxu0 0.0
        %4841 = vmatpush.msra.mxu0 0.0
        %4842 = vmatpush.msra.mxu0 0.0
        %4843 = vmatpush.msra.mxu0 %v4565
        %4844 = vmatpush.msra.mxu0 %v4511
        %4845 = vmatmul.f32.gmra.mxu0 %v4827
        %v4846 = vpop.f32.mrf.mxu0
        %v4847 = vadd.f32 0.0, %v4846
        %4848 = vdwg.mxu0
        %v4850 = vsel %vm1973, %v4779, 0
        %4852 = vmatpush.msra.mxu0 0.0
        %4853 = vmatpush.msra.mxu0 0.0
        %4854 = vmatpush.msra.mxu0 0.0
        %4855 = vmatpush.msra.mxu0 0.0
        %4856 = vmatpush.msra.mxu0 0.0
        %4857 = vmatpush.msra.mxu0 0.0
        %4858 = vmatpush.msra.mxu0 0.0
        %4859 = vmatpush.msra.mxu0 0.0
        %4860 = vmatpush.msra.mxu0 0.0
        %4861 = vmatpush.msra.mxu0 0.0
        %4862 = vmatpush.msra.mxu0 0.0
        %4863 = vmatpush.msra.mxu0 0.0
        %4864 = vmatpush.msra.mxu0 0.0
        %4865 = vmatpush.msra.mxu0 0.0
        %4866 = vmatpush.msra.mxu0 %v4567
        %4867 = vmatpush.msra.mxu0 %v4513
        %4868 = vmatmul.f32.gmra.mxu0 %v4850
        %v4869 = vpop.f32.mrf.mxu0
        %v4870 = vadd.f32 0.0, %v4869
        %4871 = vdwg.mxu0
        %v4872 = vrot.slane %v4847, 4
        %v4873 = vsel %vm1203, %v4872, %v4801
        %v4874 = vrot.slane %v4801, 4
        %v4875 = vsel %vm1203, %v4847, %v4874
        %v4877 = vunpack.c.l.s4 1983009808
        %v4878 = vunpack.c.0.s8 %v4877
        %v4879 = vperm.slane %v4873, %v4878
        %v4881 = vunpack.c.l.s4 1983009808
        %v4882 = vunpack.c.0.s8 %v4881
        %v4883 = vperm.slane %v4875, %v4882
        %v4884 = vrot.slane %v4870, 4
        %v4885 = vsel %vm1203, %v4884, %v4824
        %v4886 = vrot.slane %v4824, 4
        %v4887 = vsel %vm1203, %v4870, %v4886
        %v4889 = vunpack.c.l.s4 1983009808
        %v4890 = vunpack.c.0.s8 %v4889
        %v4891 = vperm.slane %v4885, %v4890
        %v4893 = vunpack.c.l.s4 1983009808
        %v4894 = vunpack.c.0.s8 %v4893
        %v4895 = vperm.slane %v4887, %v4894
        %v4896 = vrot.slane %v4891, 4
        %v4897 = vsel %vm1203, %v4896, %v4879
        %v4898 = vrot.slane %v4879, 4
        %v4899 = vsel %vm1203, %v4891, %v4898
        %v4901 = vunpack.c.l.s4 1934713408
        %v4902 = vunpack.c.0.s8 %v4901
        %v4903 = vperm.slane %v4897, %v4902
        %v4905 = vunpack.c.l.s4 1934713408
        %v4906 = vunpack.c.0.s8 %v4905
        %v4907 = vperm.slane %v4899, %v4906
        %v4908 = vrot.slane %v4895, 4
        %v4909 = vsel %vm1203, %v4908, %v4883
        %v4910 = vrot.slane %v4883, 4
        %v4911 = vsel %vm1203, %v4895, %v4910
        %v4913 = vunpack.c.l.s4 1934713408
        %v4914 = vunpack.c.0.s8 %v4913
        %v4915 = vperm.slane %v4909, %v4914
        %v4917 = vunpack.c.l.s4 1934713408
        %v4918 = vunpack.c.0.s8 %v4917
        %v4919 = vperm.slane %v4911, %v4918
        %v4920 = vrot.slane %v4903, 4
        %v4921 = vsel %vm1203, 0.0, %v4920
        %v4922 = vrot.slane %v4907, 4
        %v4923 = vsel %vm1203, 0.0, %v4922
        %v4924 = vrot.slane %v4915, 4
        %v4925 = vsel %vm1203, 0.0, %v4924
        %v4926 = vrot.slane %v4919, 4
        %v4927 = vsel %vm1203, 0.0, %v4926
        %v4928 = vsel %vm1203, %v4922, %v4903
        %v4930 = vunpack.c.l.s4 1983009808
        %v4931 = vunpack.c.0.s8 %v4930
        %v4932 = vperm.slane %v4928, %v4931
        %v4933 = vrot.slane %v4923, 4
        %v4934 = vsel %vm1203, %v4933, %v4921
        %v4936 = vunpack.c.l.s4 1983009808
        %v4937 = vunpack.c.0.s8 %v4936
        %v4938 = vperm.slane %v4934, %v4937
        %v4939 = vsel %vm1203, %v4926, %v4915
        %v4941 = vunpack.c.l.s4 1983009808
        %v4942 = vunpack.c.0.s8 %v4941
        %v4943 = vperm.slane %v4939, %v4942
        %v4944 = vrot.slane %v4927, 4
        %v4945 = vsel %vm1203, %v4944, %v4925
        %v4947 = vunpack.c.l.s4 1983009808
        %v4948 = vunpack.c.0.s8 %v4947
        %v4949 = vperm.slane %v4945, %v4948
        %v4950 = vrot.slane %v4938, 4
        %v4951 = vsel %vm1203, %v4950, %v4932
        %v4952 = vrot.slane %v4932, 4
        %v4953 = vsel %vm1203, %v4938, %v4952
        %v4955 = vunpack.c.l.s4 1934713408
        %v4956 = vunpack.c.0.s8 %v4955
        %v4957 = vperm.slane %v4951, %v4956
        %v4959 = vunpack.c.l.s4 1934713408
        %v4960 = vunpack.c.0.s8 %v4959
        %v4961 = vperm.slane %v4953, %v4960
        %v4962 = vrot.slane %v4949, 4
        %v4963 = vsel %vm1203, %v4962, %v4943
        %v4964 = vrot.slane %v4943, 4
        %v4965 = vsel %vm1203, %v4949, %v4964
        %v4967 = vunpack.c.l.s4 1934713408
        %v4968 = vunpack.c.0.s8 %v4967
        %v4969 = vperm.slane %v4963, %v4968
        %v4971 = vunpack.c.l.s4 1934713408
        %v4972 = vunpack.c.0.s8 %v4971
        %v4973 = vperm.slane %v4965, %v4972
        %v4974 = vrot.slane %v4969, 4
        %v4975 = vsel %vm1203, %v4974, %v4957
        %v4976 = vrot.slane %v4957, 4
        %v4977 = vsel %vm1203, %v4969, %v4976
        %v4978 = vrot.slane %v4973, 4
        %v4979 = vsel %vm1203, %v4978, %v4961
        %v4980 = vrot.slane %v4961, 4
        %v4981 = vsel %vm1203, %v4973, %v4980
        %4983 = vrot.lane.b32.xlu0 %v4977, 8
        %v4984 = vpop.permute.xlu0 %4983
        %4987 = vrot.lane.b32.xlu0 %v4979, 16
        %v4988 = vpop.permute.xlu0 %4987
        %4991 = vrot.lane.b32.xlu0 %v4981, 24
        %v4992 = vpop.permute.xlu0 %4991
        %v4994 = vsel %vm1557, %v4975, %v4984
        %v4995 = vsel %vm1973, %v4994, %v4988
        %v4996 = vsel %vm1975, %v4995, %v4992
        %v4998 = vperm.slane %v1136, 0
        %v5001 = vsel %vm1162, %v3963, 0
        %v5004 = vsel %vm1162, %v4996, 0
        %5006 = vmatpush.msra.mxu0 0.0
        %5007 = vmatpush.msra.mxu0 0.0
        %5008 = vmatpush.msra.mxu0 0.0
        %5009 = vmatpush.msra.mxu0 0.0
        %5010 = vmatpush.msra.mxu0 0.0
        %5011 = vmatpush.msra.mxu0 0.0
        %5012 = vmatpush.msra.mxu0 0.0
        %5013 = vmatpush.msra.mxu0 0.0
        %5014 = vmatpush.msra.mxu0 0.0
        %5015 = vmatpush.msra.mxu0 0.0
        %5016 = vmatpush.msra.mxu0 0.0
        %5017 = vmatpush.msra.mxu0 0.0
        %5018 = vmatpush.msra.mxu0 %v1135
        %5019 = vmatpush.msra.mxu0 %v1134
        %5020 = vmatpush.msra.mxu0 %v1133
        %5021 = vmatpush.msra.mxu0 %v1132
        %5022 = vmatmul.f32.gmra.mxu0 %v5001
        %v5023 = vpop.f32.mrf.mxu0
        %v5024 = vadd.f32 %v4998, %v5023
        %5025 = vmatmul.f32.gmra.mxu0 %v5004
        %v5026 = vpop.f32.mrf.mxu0
        %v5027 = vadd.f32 %v4998, %v5026
        %5028 = vdwg.mxu0
        %v5029 = vadd.f32 %v2853, %v5024
        %v5030 = vadd.f32 %v2854, %v5027
        %v5031 = vld [vmem:[%s901] sm:$0x1]
        %v5032 = vld [vmem:[%s910] sm:$0x1]
        %v5033 = vsel %vm1162, %v5029, 0.0
        %5034 = vadd.xlane.f32.xlu0 %v5033
        %v5035 = vpop.xlane.xlu0 %5034
        %v5036 = vsel %vm1162, %v5030, 0.0
        %5037 = vadd.xlane.f32.xlu0 %v5036
        %v5038 = vpop.xlane.xlu0 %5037
        %v5039 = vmul.f32 %v5035, %v2806
        %v5040 = vmul.f32 %v5038, %v2806
        %v5041 = vsub.f32 %v5029, %v5039
        %v5042 = vsub.f32 %v5030, %v5040
        %v5043 = vmul.f32 %v5041, %v5041
        %v5044 = vmul.f32 %v5042, %v5042
        %v5045 = vsel %vm1162, %v5043, 0.0
        %5046 = vadd.xlane.f32.xlu0 %v5045
        %v5047 = vpop.xlane.xlu0 %5046
        %v5048 = vsel %vm1162, %v5044, 0.0
        %5049 = vadd.xlane.f32.xlu0 %v5048
        %v5050 = vpop.xlane.xlu0 %5049
        %v5051 = vmul.f32 %v5047, %v2806
        %v5052 = vmul.f32 %v5050, %v2806
        %v5053 = vadd.f32 %v5051, 1e-05
        %v5054 = vadd.f32 %v5052, 1e-05
        %v5055 = vrsqrt.pop %v5053
        %v5056 = vmul.f32 %v5055, %v5053
        %v5057 = vmul.f32 %v5056, %v5055
        %v5058 = vmul.f32 0.5, %v5057
        %v5059 = vsub.f32 1.5, %v5058
        %v5060 = vmul.f32 %v5055, %v5059
        %vm5061 = vweird.f32 %v5053
        %vm5062 = vweird.f32 %v5055
        %vm5063 = vmor %vm5061, %vm5062
        %v5064 = vsel %vm5063, %v5055, %v5060
        %v5065 = vrsqrt.pop %v5054
        %v5066 = vmul.f32 %v5065, %v5054
        %v5067 = vmul.f32 %v5066, %v5065
        %v5068 = vmul.f32 0.5, %v5067
        %v5069 = vsub.f32 1.5, %v5068
        %v5070 = vmul.f32 %v5065, %v5069
        %vm5071 = vweird.f32 %v5054
        %vm5072 = vweird.f32 %v5065
        %vm5073 = vmor %vm5071, %vm5072
        %v5074 = vsel %vm5073, %v5065, %v5070
        %v5075 = vmul.f32 %v5041, %v5064
        %v5076 = vmul.f32 %v5042, %v5074
        %v5078 = vperm.slane %v5031, 0
        %v5080 = vmul.f32 %v5075, %v5078
        %v5081 = vmul.f32 %v5076, %v5078
        %v5083 = vperm.slane %v5032, 0
        %v5085 = vadd.f32 %v5080, %v5083
        %v5086 = vadd.f32 %v5081, %v5083
        %v5088 = vperm.slane %v1141, 0
        %v5091 = vsel %vm1162, %v5085, 0
        %v5094 = vsel %vm1162, %v5086, 0
        %5096 = vmatpush.msra.mxu0 0.0
        %5097 = vmatpush.msra.mxu0 0.0
        %5098 = vmatpush.msra.mxu0 0.0
        %5099 = vmatpush.msra.mxu0 0.0
        %5100 = vmatpush.msra.mxu0 0.0
        %5101 = vmatpush.msra.mxu0 0.0
        %5102 = vmatpush.msra.mxu0 0.0
        %5103 = vmatpush.msra.mxu0 0.0
        %5104 = vmatpush.msra.mxu0 0.0
        %5105 = vmatpush.msra.mxu0 0.0
        %5106 = vmatpush.msra.mxu0 0.0
        %5107 = vmatpush.msra.mxu0 0.0
        %5108 = vmatpush.msra.mxu0 %v1140
        %5109 = vmatpush.msra.mxu0 %v1139
        %5110 = vmatpush.msra.mxu0 %v1138
        %5111 = vmatpush.msra.mxu0 %v1137
        %5112 = vmatmul.f32.gmra.mxu0 %v5091
        %v5113 = vpop.f32.mrf.mxu0
        %v5114 = vadd.f32 %v5088, %v5113
        %5115 = vmatmul.f32.gmra.mxu0 %v5094
        %v5116 = vpop.f32.mrf.mxu0
        %v5117 = vadd.f32 %v5088, %v5116
        %5118 = vdwg.mxu0
        %v5119 = vmax.f32 %v5114, 0.0
        %v5120 = vmax.f32 %v5117, 0.0
        %v5122 = vperm.slane %v1158, 0
        %5124 = vmatpush.msra.mxu0 %v1157
        %5125 = vmatpush.msra.mxu0 %v1156
        %5126 = vmatpush.msra.mxu0 %v1155
        %5127 = vmatpush.msra.mxu0 %v1154
        %5128 = vmatpush.msra.mxu0 %v1153
        %5129 = vmatpush.msra.mxu0 %v1152
        %5130 = vmatpush.msra.mxu0 %v1151
        %5131 = vmatpush.msra.mxu0 %v1150
        %5132 = vmatpush.msra.mxu0 %v1149
        %5133 = vmatpush.msra.mxu0 %v1148
        %5134 = vmatpush.msra.mxu0 %v1147
        %5135 = vmatpush.msra.mxu0 %v1146
        %5136 = vmatpush.msra.mxu0 %v1145
        %5137 = vmatpush.msra.mxu0 %v1144
        %5138 = vmatpush.msra.mxu0 %v1143
        %5139 = vmatpush.msra.mxu0 %v1142
        %5140 = vmatmul.f32.gmra.mxu0 %v5119
        %v5141 = vpop.f32.mrf.mxu0
        %v5142 = vadd.f32 %v5122, %v5141
        %5143 = vmatmul.f32.gmra.mxu0 %v5120
        %v5144 = vpop.f32.mrf.mxu0
        %v5145 = vadd.f32 %v5122, %v5144
        %5146 = vdwg.mxu0
        %v5147 = vadd.f32 %v5085, %v5142
        %v5148 = vadd.f32 %v5086, %v5145
        %v5149 = vld [vmem:[%s1093] sm:$0x1]
        %v5150 = vld [vmem:[%s1096] sm:$0x1]
        %v5151 = vsel %vm1162, %v5147, 0.0
        %5152 = vadd.xlane.f32.xlu0 %v5151
        %v5153 = vpop.xlane.xlu0 %5152
        %v5154 = vsel %vm1162, %v5148, 0.0
        %5155 = vadd.xlane.f32.xlu0 %v5154
        %v5156 = vpop.xlane.xlu0 %5155
        %v5157 = vmul.f32 %v5153, %v2806
        %v5158 = vmul.f32 %v5156, %v2806
        %v5159 = vsub.f32 %v5147, %v5157
        %v5160 = vsub.f32 %v5148, %v5158
        %v5161 = vmul.f32 %v5159, %v5159
        %v5162 = vmul.f32 %v5160, %v5160
        %v5163 = vsel %vm1162, %v5161, 0.0
        %5164 = vadd.xlane.f32.xlu0 %v5163
        %v5165 = vpop.xlane.xlu0 %5164
        %v5166 = vsel %vm1162, %v5162, 0.0
        %5167 = vadd.xlane.f32.xlu0 %v5166
        %v5168 = vpop.xlane.xlu0 %5167
        %v5169 = vmul.f32 %v5165, %v2806
        %v5170 = vmul.f32 %v5168, %v2806
        %v5171 = vadd.f32 %v5169, 1e-05
        %v5172 = vadd.f32 %v5170, 1e-05
        %v5173 = vrsqrt.pop %v5171
        %v5174 = vmul.f32 %v5173, %v5171
        %v5175 = vmul.f32 %v5174, %v5173
        %v5176 = vmul.f32 0.5, %v5175
        %v5177 = vsub.f32 1.5, %v5176
        %v5178 = vmul.f32 %v5173, %v5177
        %vm5179 = vweird.f32 %v5171
        %vm5180 = vweird.f32 %v5173
        %vm5181 = vmor %vm5179, %vm5180
        %v5182 = vsel %vm5181, %v5173, %v5178
        %v5183 = vrsqrt.pop %v5172
        %v5184 = vmul.f32 %v5183, %v5172
        %v5185 = vmul.f32 %v5184, %v5183
        %v5186 = vmul.f32 0.5, %v5185
        %v5187 = vsub.f32 1.5, %v5186
        %v5188 = vmul.f32 %v5183, %v5187
        %vm5189 = vweird.f32 %v5172
        %vm5190 = vweird.f32 %v5183
        %vm5191 = vmor %vm5189, %vm5190
        %v5192 = vsel %vm5191, %v5183, %v5188
        %v5193 = vmul.f32 %v5159, %v5182
        %v5194 = vmul.f32 %v5160, %v5192
        %v5196 = vperm.slane %v5149, 0
        %v5198 = vmul.f32 %v5193, %v5196
        %v5199 = vmul.f32 %v5194, %v5196
        %v5201 = vperm.slane %v5150, 0
        %v5203 = vadd.f32 %v5198, %v5201
        %v5204 = vadd.f32 %v5199, %v5201
        %5205 = vst.msk [vmem:[#allocation2] sm:$0xff] %vm1162, %v5203
        %5206 = vst.msk [vmem:[#allocation2 + $0x8] sm:$0xff] %vm1162, %v5204
        %p5207 = scmp.eq.s32.totalorder %s36, 1
        // Predicated region
        $region141: #{decoder_forward.1} parent=107 // pred_check
          %p5208 = pneg %p5207
        $region142: #{decoder_forward.1} parent=107 // pred_check_branch
          %5210 = sbr.rel (%p5208) target = $region144
        $region143: #{decoder_forward.1} parent=107 // pred_region
          %5211 = vst.msk [vmem:[#allocation13] sm:$0xff] %vm1162, %v5203
          %5212 = vst.msk [vmem:[#allocation13 + $0x8] sm:$0xff] %vm1162, %v5204
        $region144: #{decoder_forward.1} parent=107 // pred_fallthru
          _
        // Predicated region
        $region145: #{decoder_forward.1} parent=107 // pred_check
          %p5213 = pneg %p611
        $region146: #{decoder_forward.1} parent=107 // pred_check_branch
          %5215 = sbr.rel (%p5213) target = $region148
        $region147: #{decoder_forward.1} parent=107 // pred_region
          %5217 = vsyncadd [#allocation5], 0
          %s5218 = sshll.u32 [#allocation13], 4
          %s5219 = int_to_ptr.vmem [resolvable:$true] %s5218
          %s5220 = sshll.u32 %s22, 4
          %s5221 = int_to_ptr.hbm [resolvable:$true] %s5220
          %5226 = dma.vmem_to_hbm [thread:$0]  %s5219, 256, %s5221, [#allocation5], 128, 128, 8
        $region148: #{decoder_forward.1} parent=107 // pred_fallthru
          _
        // Predicated region
        $region149: #{decoder_forward.1} parent=107 // pred_check
          %p5227 = pneg %p611
        $region150: #{decoder_forward.1} parent=107 // pred_check_branch
          %5229 = sbr.rel (%p5227) target = $region152
        $region151: #{decoder_forward.1} parent=107 // pred_region
          %5231 = dma.done [#allocation5], 256
        $region152: #{decoder_forward.1} parent=107 // pred_fallthru
          _
      $region108: #{decoder_forward.1} parent=5 // pred_fallthru
        _
      %p5232 = scmp.le.s32.totalorder 2, %s31
      // Predicated region
      $region153: #{decoder_forward.1} parent=5 // pred_check
        %p5233 = pneg %p5232
      $region154: #{decoder_forward.1} parent=5 // pred_check_branch
        %5235 = sbr.rel (%p5233) target = $region156
      $region155: #{decoder_forward.1} parent=5 // pred_region
        %s5236 = ssub.s32 %s31, 2
      $region156: #{decoder_forward.1} parent=5 // pred_fallthru
        _
    $region6: #{decoder_forward.1} parent=1 // loop_footer
      %s35 = sadd.s32 1, %s31
    $region7: #{decoder_forward.1} parent=1 // loop_footer_branch
      %30 = sbr.rel target = $region3
    $region8: #{decoder_forward.1} parent=1 // loop_exit
      _
    %5237 = vsyncpa [#allocation4], 1
    %s5238 = scalar_lea.sflag [#allocation4], 1
    %5239 = vsyncpa %s5238, 1
    %5240 = vsyncpa [#allocation7], 1
    %5241 = vsyncpa [#allocation5], 1
    %s5242 = scalar_lea.sflag [#allocation5], 1
    %5243 = vsyncpa %s5242, 1

</llo_original>
